<compile_context>
chip_gen: v7x
topology: tpu7x:2x2x1
jax: 0.10.0
libtpu: 0.0.40
codegen_flags: <defaults>
</compile_context>

<pallas_src>
import functools

import jax
import jax.numpy as jnp
from jax.experimental import pallas as pl
from jax.experimental.pallas import tpu as pltpu


C1P = 128     # conv1 output channels (36) zero-padded to a full lane tile
K1P = 128     # conv1 im2col K (9 * f_in) zero-padded to a full lane tile
NBP = 128     # class logits zero-padded to a full lane tile
_WPAD = 8     # sublane-aligned left margin of the conv2 scratch (>= 1 zero col)


# ----------------------------------------------------------------------------
# Fused Pallas kernel: conv1+ReLU -> conv2+ReLU -> ScalePool -> fc1+ReLU -> fc2
# ----------------------------------------------------------------------------
def _kanazawa_fused_kernel(p1_ref, w1_ref, w2_ref, fc1w_ref, fc1b_ref,
                           fc2w_ref, fc2b_ref, o_ref, h1_ref,
                           *, nscales, ntaps, hout, wout, scale_facs):
    """One batch element per grid step.

    p1_ref   : (1, hout*wout, K1P)  bf16  conv1 im2col patches (stride-2 windows)
    w1_ref   : (K1P, C1P)           bf16  conv1 weight, im2col layout
    w2_ref   : (ntaps*9*C1P, C2)    bf16  conv2 weight, im2col layout
    fc1w_ref : (C2, F1)  bf16 ; fc1b_ref : (1, F1)  f32
    fc2w_ref : (F1, NBP) bf16 ; fc2b_ref : (1, NBP) f32
    o_ref    : (1, 8, NBP)          f32   logits (broadcast over sublanes)
    h1_ref   : (nscales+ntaps-1, hout+2, wout+2*_WPAD, C1P) f32 VMEM scratch
    """
    hw = hout * wout
    c2 = w2_ref.shape[1]

    # Zero the scratch: its spatial margins give conv2's zero padding and the
    # untouched trailing scale slots give the Dirichlet boundary (s >= nratio).
    h1_ref[...] = jnp.zeros_like(h1_ref)

    # ---- conv1 (srange=0, stride=2) + ReLU: one im2col matmul on the MXU ----
    a1 = jnp.dot(p1_ref[0], w1_ref[...], preferred_element_type=jnp.float32)
    a1 = jnp.maximum(a1, 0.0).reshape(hout, wout, C1P)
    # Input is scale-replicated (x.unsqueeze(1).repeat) and the per-scale kernel
    # rescaling is not modeled (see TODO above), so conv1's feature map is
    # identical for every scale channel: write it into each scale slot.
    for s in range(nscales):
        h1_ref[s, 1:1 + hout, _WPAD:_WPAD + wout, :] = a1

    # ---- conv2 (scale cross-correlation over ntaps) + ReLU + ScalePool ----
    w2 = w2_ref[...]
    pooled = jnp.zeros((1, c2), jnp.float32)
    inv_hw = 1.0 / float(hw)
    for s in range(nscales):
        # One lane-aligned im2col operand per scale: K = ntaps*9*C1P.
        parts = []
        for u in range(ntaps):
            for dy in range(3):
                for dx in range(3):
                    win = h1_ref[s + u, dy:dy + hout,
                                 _WPAD - 1 + dx:_WPAD - 1 + dx + wout, :]
                    parts.append(win.reshape(hw, C1P))
        patches = jnp.concatenate(parts, axis=-1).astype(jnp.bfloat16)
        a2 = jnp.dot(patches, w2, preferred_element_type=jnp.float32)
        a2 = jnp.maximum(a2, 0.0)                                   # (hw, c2)
        # ScalePool contribution: ratio**(-2 s) * spatial mean.
        pooled = pooled + (scale_facs[s] * inv_hw) * jnp.sum(
            a2, axis=0, keepdims=True)

    # ---- fc1 + ReLU + fc2 ----
    # Replicate the pooled row over 8 sublanes to avoid M=1 matmuls; every row
    # of the result is identical and the wrapper reads row 0.
    pooled8 = jnp.broadcast_to(pooled, (8, c2))
    h3 = jnp.dot(pooled8.astype(jnp.bfloat16), fc1w_ref[...],
                 preferred_element_type=jnp.float32) + fc1b_ref[...]
    h3 = jnp.maximum(h3, 0.0)
    logits = jnp.dot(h3.astype(jnp.bfloat16), fc2w_ref[...],
                     preferred_element_type=jnp.float32) + fc2b_ref[...]
    o_ref[0] = logits


# ----------------------------------------------------------------------------
# Wrapper: input/weight packing + pallas_call
# ----------------------------------------------------------------------------
def kanazawa_forward(params, x_nchw, *, ratio, nratio, srange=1):
    """x_nchw: (B, f_in, H, W) -> logits (B, nb_classes)."""
    B, cin, H, W = x_nchw.shape
    assert H % 2 == 0 and W % 2 == 0, "wrapper assumes even spatial dims"
    hout, wout = H // 2, W // 2                  # conv1: k=3, pad=1, stride=2
    assert (hout * wout) % 8 == 0

    w1, w2 = params["w1"], params["w2"]
    c1, c2 = w1.shape[-1], w2.shape[-1]
    ntaps = w2.shape[0]
    assert ntaps == srange + 1 and w1.shape[2] == cin and w2.shape[3] == c1
    k1 = 9 * cin
    assert k1 <= K1P and c1 <= C1P
    fc1w, fc1b = params["fc1_w"], params["fc1_b"]
    fc2w, fc2b = params["fc2_w"], params["fc2_b"]
    f1, nb = fc1w.shape[1], fc2w.shape[1]
    assert fc1w.shape[0] == c2 and fc2w.shape[0] == f1 and nb <= NBP

    # conv1 im2col patches: stride-2 output windows extracted directly (no
    # full-resolution conv + subsample), K zero-padded to a full lane tile.
    x = jnp.transpose(x_nchw, (0, 2, 3, 1)).astype(jnp.float32)     # (B,H,W,Cin)
    xp = jnp.pad(x, ((0, 0), (1, 1), (1, 1), (0, 0)))
    shifts = [xp[:, dy:dy + 2 * hout:2, dx:dx + 2 * wout:2, :]
              for dy in range(3) for dx in range(3)]
    p1 = jnp.concatenate(shifts, axis=-1).reshape(B, hout * wout, k1)
    p1 = jnp.pad(p1, ((0, 0), (0, 0), (0, K1P - k1))).astype(jnp.bfloat16)

    # Weights in im2col layout, zero-padded to lane-aligned K/N, bf16 for MXU.
    w1p = jnp.pad(w1.reshape(k1, c1),
                  ((0, K1P - k1), (0, C1P - c1))).astype(jnp.bfloat16)
    w2p = jnp.pad(w2, ((0, 0), (0, 0), (0, 0), (0, C1P - c1), (0, 0)))
    w2p = w2p.reshape(ntaps * 9 * C1P, c2).astype(jnp.bfloat16)
    fc1w_b = fc1w.astype(jnp.bfloat16)
    fc1b_b = fc1b.reshape(1, f1).astype(jnp.float32)
    fc2w_b = jnp.pad(fc2w, ((0, 0), (0, NBP - nb))).astype(jnp.bfloat16)
    fc2b_b = jnp.pad(fc2b, (0, NBP - nb)).reshape(1, NBP).astype(jnp.float32)

    kern = functools.partial(
        _kanazawa_fused_kernel, nscales=nratio, ntaps=ntaps,
        hout=hout, wout=wout,
        scale_facs=tuple(float(ratio) ** (-2.0 * i) for i in range(nratio)))

    out = pl.pallas_call(
        kern,
        out_shape=jax.ShapeDtypeStruct((B, 8, NBP), jnp.float32),
        grid_spec=pltpu.PrefetchScalarGridSpec(
            num_scalar_prefetch=0,
            grid=(B,),
            in_specs=[
                pl.BlockSpec((1, hout * wout, K1P), lambda b: (b, 0, 0)),
                pl.BlockSpec((K1P, C1P), lambda b: (0, 0)),
                pl.BlockSpec((ntaps * 9 * C1P, c2), lambda b: (0, 0)),
                pl.BlockSpec((c2, f1), lambda b: (0, 0)),
                pl.BlockSpec((1, f1), lambda b: (0, 0)),
                pl.BlockSpec((f1, NBP), lambda b: (0, 0)),
                pl.BlockSpec((1, NBP), lambda b: (0, 0)),
            ],
            out_specs=pl.BlockSpec((1, 8, NBP), lambda b: (b, 0, 0)),
            scratch_shapes=[
                pltpu.VMEM((nratio + ntaps - 1, hout + 2, wout + 2 * _WPAD, C1P),
                           jnp.float32)],
        ),
        compiler_params=pltpu.CompilerParams(dimension_semantics=("parallel",)),
    )(p1, w1p, w2p, fc1w_b, fc1b_b, fc2w_b, fc2b_b)

    return out[:, 0, :nb]


# ----------------------------------------------------------------------------
# Params + pure-JAX reference (f32) for a correctness check
# ----------------------------------------------------------------------------
def init_params(key, f_in, nb_classes=10, srange=1):
    c1, c2, f1 = 36, 64, 150
    ntaps = srange + 1
    k1, k2, k3, k4, k5, k6 = jax.random.split(key, 6)
    return {
        "w1": jax.random.normal(k1, (3, 3, f_in, c1), jnp.float32)
              / jnp.sqrt(9.0 * f_in),
        "w2": jax.random.normal(k2, (ntaps, 3, 3, c1, c2), jnp.float32)
              / jnp.sqrt(ntaps * 9.0 * c1),
        "fc1_w": jax.random.normal(k3, (c2, f1), jnp.float32) / jnp.sqrt(1.0 * c2),
        "fc1_b": 0.01 * jax.random.normal(k4, (f1,), jnp.float32),
        "fc2_w": jax.random.normal(k5, (f1, nb_classes), jnp.float32)
                 / jnp.sqrt(1.0 * f1),
        "fc2_b": 0.01 * jax.random.normal(k6, (nb_classes,), jnp.float32),
    }


def kanazawa_reference(params, x_nchw, *, ratio, nratio, srange=1):
    """Pure-JAX (XLA) reference with identical semantics, f32 throughout."""
    B, cin, H, W = x_nchw.shape
    x = jnp.transpose(x_nchw, (0, 2, 3, 1)).astype(jnp.float32)

    def conv3x3(inp, w, stride):
        return jax.lax.conv_general_dilated(
            inp, w, window_strides=(stride, stride), padding=((1, 1), (1, 1)),
            dimension_numbers=("NHWC", "HWIO", "NHWC"))

    h1 = jax.nn.relu(conv3x3(x, params["w1"], 2))           # conv1 (srange=0)
    h1 = jnp.broadcast_to(h1[:, None], (B, nratio) + h1.shape[1:])
    ntaps = params["w2"].shape[0]
    h2 = []
    for s in range(nratio):
        acc = jnp.zeros(h1.shape[:1] + h1.shape[2:4] + (params["w2"].shape[-1],),
                        jnp.float32)
        for u in range(ntaps):
            if s + u < nratio:                                # Dirichlet boundary
                acc = acc + conv3x3(h1[:, s + u], params["w2"][u], 1)
        h2.append(jax.nn.relu(acc))
    h2 = jnp.stack(h2, axis=1)                                # (B,S,h,w,c2)
    facs = jnp.asarray([ratio ** (-2.0 * i) for i in range(nratio)], jnp.float32)
    pooled = jnp.einsum("bshwc,s->bc", h2, facs) / (h2.shape[2] * h2.shape[3])
    h3 = jax.nn.relu(pooled @ params["fc1_w"] + params["fc1_b"])
    return h3 @ params["fc2_w"] + params["fc2_b"]


if __name__ == "__main__":
    B, f_in, H, W = 2, 3, 16, 16
    ratio = 2.0 ** (1.0 / 3.0)
    nratio = 3
    srange = 1
    nb_classes = 10

    key = jax.random.PRNGKey(0)
    kp, kx = jax.random.split(key)
    params = init_params(kp, f_in, nb_classes=nb_classes, srange=srange)
    x = jax.random.normal(kx, (B, f_in, H, W), jnp.float32)

    fwd = jax.jit(functools.partial(
        kanazawa_forward, ratio=ratio, nratio=nratio, srange=srange))
    out = jax.block_until_ready(fwd(params, x))
    assert out.shape == (B, nb_classes), out.shape
    assert bool(jnp.all(jnp.isfinite(out)))

    ref = kanazawa_reference(params, x, ratio=ratio, nratio=nratio, srange=srange)
    assert bool(jnp.allclose(out, ref, rtol=1e-1, atol=1e-1)), (out, ref)

    print("KERNEL_OK")
</pallas_src>

<mosaic_0001>
module attributes {stable_mosaic.version = 11 : i64} {
  func.func @_kanazawa_fused_kernel(%arg0: i32, %arg1: memref<1x64x128xbf16, #tpu.memory_space<vmem>>, %arg2: memref<128x128xbf16, #tpu.memory_space<vmem>>, %arg3: memref<2304x64xbf16, #tpu.memory_space<vmem>>, %arg4: memref<64x150xbf16, #tpu.memory_space<vmem>>, %arg5: memref<1x150xf32, #tpu.memory_space<vmem>>, %arg6: memref<150x128xbf16, #tpu.memory_space<vmem>>, %arg7: memref<1x128xf32, #tpu.memory_space<vmem>>, %arg8: memref<1x8x128xf32, #tpu.memory_space<vmem>>, %arg9: memref<4x10x24x128xf32, #tpu.memory_space<vmem>>) attributes {dimension_semantics = [#tpu.dimension_semantics<parallel>], iteration_bounds = array<i64: 2>, scalar_prefetch = 0 : i64, scratch_operands = 1 : i64, tpu.core_type = #tpu.core_type<tc>, window_params = [{transform_indices = @transform_0, window_bounds = array<i64: 1, 64, 128>}, {pipeline_mode = #tpu.pipeline_mode<synchronous>, transform_indices = @transform_1, window_bounds = array<i64: 128, 128>}, {pipeline_mode = #tpu.pipeline_mode<synchronous>, transform_indices = @transform_2, window_bounds = array<i64: 2304, 64>}, {pipeline_mode = #tpu.pipeline_mode<synchronous>, transform_indices = @transform_3, window_bounds = array<i64: 64, 150>}, {pipeline_mode = #tpu.pipeline_mode<synchronous>, transform_indices = @transform_4, window_bounds = array<i64: 1, 150>}, {pipeline_mode = #tpu.pipeline_mode<synchronous>, transform_indices = @transform_5, window_bounds = array<i64: 150, 128>}, {pipeline_mode = #tpu.pipeline_mode<synchronous>, transform_indices = @transform_6, window_bounds = array<i64: 1, 128>}, {transform_indices = @transform_7, window_bounds = array<i64: 1, 8, 128>}]} {
    %cst = arith.constant 0.000000e+00 : f32
    %0 = vector.broadcast %cst : f32 to vector<4x10x24x128xf32>
    %c0 = arith.constant 0 : index
    %c0_0 = arith.constant 0 : index
    %c0_1 = arith.constant 0 : index
    %c0_2 = arith.constant 0 : index
    %1 = vector.load %arg9[%c0, %c0_0, %c0_1, %c0_2] : memref<4x10x24x128xf32, #tpu.memory_space<vmem>>, vector<4x10x24x128xf32>
    tpu.vector_store %arg9[%c0, %c0_0, %c0_1, %c0_2], %0 {strides = array<i32>} : memref<4x10x24x128xf32, #tpu.memory_space<vmem>>, vector<4x10x24x128xf32>,
    %c0_3 = arith.constant 0 : index
    %c0_4 = arith.constant 0 : index
    %c0_5 = arith.constant 0 : index
    %2 = vector.load %arg1[%c0_3, %c0_4, %c0_5] : memref<1x64x128xbf16, #tpu.memory_space<vmem>>, vector<1x64x128xbf16>
    %3 = vector.shape_cast %2 : vector<1x64x128xbf16> to vector<64x128xbf16>
    %c0_6 = arith.constant 0 : index
    %c0_7 = arith.constant 0 : index
    %4 = vector.load %arg2[%c0_6, %c0_7] : memref<128x128xbf16, #tpu.memory_space<vmem>>, vector<128x128xbf16>
    %cst_8 = arith.constant dense<0.000000e+00> : vector<64x128xf32>
    %5 = tpu.matmul %3, %4, %cst_8 {dimension_numbers = #tpu.dot_dimension_numbers<[1], [0], [0], [1], [0, 0, 1, 1], [], []>} : vector<64x128xbf16>, vector<128x128xbf16>, vector<64x128xf32> -> vector<64x128xf32>
    %cst_9 = arith.constant 0.000000e+00 : f32
    %6 = vector.broadcast %cst_9 : f32 to vector<64x128xf32>
    %7 = arith.maximumf %5, %6 : vector<64x128xf32>
    %8 = vector.shape_cast %7 : vector<64x128xf32> to vector<8x8x128xf32>
    %c0_10 = arith.constant 0 : index
    %c1 = arith.constant 1 : index
    %c8 = arith.constant 8 : index
    %c0_11 = arith.constant 0 : index
    %9 = vector.load %arg9[%c0_10, %c1, %c8, %c0_11] : memref<4x10x24x128xf32, #tpu.memory_space<vmem>>, vector<1x8x8x128xf32>
    %10 = vector.shape_cast %9 : vector<1x8x8x128xf32> to vector<8x8x128xf32>
    %11 = vector.shape_cast %8 : vector<8x8x128xf32> to vector<1x8x8x128xf32>
    tpu.vector_store %arg9[%c0_10, %c1, %c8, %c0_11], %11 {strides = array<i32>} : memref<4x10x24x128xf32, #tpu.memory_space<vmem>>, vector<1x8x8x128xf32>,
    %c1_12 = arith.constant 1 : index
    %c1_13 = arith.constant 1 : index
    %c8_14 = arith.constant 8 : index
    %c0_15 = arith.constant 0 : index
    %12 = vector.load %arg9[%c1_12, %c1_13, %c8_14, %c0_15] : memref<4x10x24x128xf32, #tpu.memory_space<vmem>>, vector<1x8x8x128xf32>
    %13 = vector.shape_cast %12 : vector<1x8x8x128xf32> to vector<8x8x128xf32>
    %14 = vector.shape_cast %8 : vector<8x8x128xf32> to vector<1x8x8x128xf32>
    tpu.vector_store %arg9[%c1_12, %c1_13, %c8_14, %c0_15], %14 {strides = array<i32>} : memref<4x10x24x128xf32, #tpu.memory_space<vmem>>, vector<1x8x8x128xf32>,
    %c2 = arith.constant 2 : index
    %c1_16 = arith.constant 1 : index
    %c8_17 = arith.constant 8 : index
    %c0_18 = arith.constant 0 : index
    %15 = vector.load %arg9[%c2, %c1_16, %c8_17, %c0_18] : memref<4x10x24x128xf32, #tpu.memory_space<vmem>>, vector<1x8x8x128xf32>
    %16 = vector.shape_cast %15 : vector<1x8x8x128xf32> to vector<8x8x128xf32>
    %17 = vector.shape_cast %8 : vector<8x8x128xf32> to vector<1x8x8x128xf32>
    tpu.vector_store %arg9[%c2, %c1_16, %c8_17, %c0_18], %17 {strides = array<i32>} : memref<4x10x24x128xf32, #tpu.memory_space<vmem>>, vector<1x8x8x128xf32>,
    %c0_19 = arith.constant 0 : index
    %c0_20 = arith.constant 0 : index
    %18 = vector.load %arg3[%c0_19, %c0_20] : memref<2304x64xbf16, #tpu.memory_space<vmem>>, vector<2304x64xbf16>
    %cst_21 = arith.constant 0.000000e+00 : f32
    %19 = vector.broadcast %cst_21 : f32 to vector<1x64xf32>
    %c0_22 = arith.constant 0 : index
    %c0_23 = arith.constant 0 : index
    %c7 = arith.constant 7 : index
    %c0_24 = arith.constant 0 : index
    %20 = vector.load %arg9[%c0_22, %c0_23, %c7, %c0_24] : memref<4x10x24x128xf32, #tpu.memory_space<vmem>>, vector<1x8x8x128xf32>
    %21 = vector.shape_cast %20 : vector<1x8x8x128xf32> to vector<8x8x128xf32>
    %22 = vector.shape_cast %21 : vector<8x8x128xf32> to vector<64x128xf32>
    %c0_25 = arith.constant 0 : index
    %c0_26 = arith.constant 0 : index
    %c8_27 = arith.constant 8 : index
    %c0_28 = arith.constant 0 : index
    %23 = vector.load %arg9[%c0_25, %c0_26, %c8_27, %c0_28] : memref<4x10x24x128xf32, #tpu.memory_space<vmem>>, vector<1x8x8x128xf32>
    %24 = vector.shape_cast %23 : vector<1x8x8x128xf32> to vector<8x8x128xf32>
    %25 = vector.shape_cast %24 : vector<8x8x128xf32> to vector<64x128xf32>
    %c0_29 = arith.constant 0 : index
    %c0_30 = arith.constant 0 : index
    %c9 = arith.constant 9 : index
    %c0_31 = arith.constant 0 : index
    %26 = vector.load %arg9[%c0_29, %c0_30, %c9, %c0_31] : memref<4x10x24x128xf32, #tpu.memory_space<vmem>>, vector<1x8x8x128xf32>
    %27 = vector.shape_cast %26 : vector<1x8x8x128xf32> to vector<8x8x128xf32>
    %28 = vector.shape_cast %27 : vector<8x8x128xf32> to vector<64x128xf32>
    %c0_32 = arith.constant 0 : index
    %c1_33 = arith.constant 1 : index
    %c7_34 = arith.constant 7 : index
    %c0_35 = arith.constant 0 : index
    %29 = vector.load %arg9[%c0_32, %c1_33, %c7_34, %c0_35] : memref<4x10x24x128xf32, #tpu.memory_space<vmem>>, vector<1x8x8x128xf32>
    %30 = vector.shape_cast %29 : vector<1x8x8x128xf32> to vector<8x8x128xf32>
    %31 = vector.shape_cast %30 : vector<8x8x128xf32> to vector<64x128xf32>
    %c0_36 = arith.constant 0 : index
    %c1_37 = arith.constant 1 : index
    %c8_38 = arith.constant 8 : index
    %c0_39 = arith.constant 0 : index
    %32 = vector.load %arg9[%c0_36, %c1_37, %c8_38, %c0_39] : memref<4x10x24x128xf32, #tpu.memory_space<vmem>>, vector<1x8x8x128xf32>
    %33 = vector.shape_cast %32 : vector<1x8x8x128xf32> to vector<8x8x128xf32>
    %34 = vector.shape_cast %33 : vector<8x8x128xf32> to vector<64x128xf32>
    %c0_40 = arith.constant 0 : index
    %c1_41 = arith.constant 1 : index
    %c9_42 = arith.constant 9 : index
    %c0_43 = arith.constant 0 : index
    %35 = vector.load %arg9[%c0_40, %c1_41, %c9_42, %c0_43] : memref<4x10x24x128xf32, #tpu.memory_space<vmem>>, vector<1x8x8x128xf32>
    %36 = vector.shape_cast %35 : vector<1x8x8x128xf32> to vector<8x8x128xf32>
    %37 = vector.shape_cast %36 : vector<8x8x128xf32> to vector<64x128xf32>
    %c0_44 = arith.constant 0 : index
    %c2_45 = arith.constant 2 : index
    %c7_46 = arith.constant 7 : index
    %c0_47 = arith.constant 0 : index
    %38 = vector.load %arg9[%c0_44, %c2_45, %c7_46, %c0_47] : memref<4x10x24x128xf32, #tpu.memory_space<vmem>>, vector<1x8x8x128xf32>
    %39 = vector.shape_cast %38 : vector<1x8x8x128xf32> to vector<8x8x128xf32>
    %40 = vector.shape_cast %39 : vector<8x8x128xf32> to vector<64x128xf32>
    %c0_48 = arith.constant 0 : index
    %c2_49 = arith.constant 2 : index
    %c8_50 = arith.constant 8 : index
    %c0_51 = arith.constant 0 : index
    %41 = vector.load %arg9[%c0_48, %c2_49, %c8_50, %c0_51] : memref<4x10x24x128xf32, #tpu.memory_space<vmem>>, vector<1x8x8x128xf32>
    %42 = vector.shape_cast %41 : vector<1x8x8x128xf32> to vector<8x8x128xf32>
    %43 = vector.shape_cast %42 : vector<8x8x128xf32> to vector<64x128xf32>
    %c0_52 = arith.constant 0 : index
    %c2_53 = arith.constant 2 : index
    %c9_54 = arith.constant 9 : index
    %c0_55 = arith.constant 0 : index
    %44 = vector.load %arg9[%c0_52, %c2_53, %c9_54, %c0_55] : memref<4x10x24x128xf32, #tpu.memory_space<vmem>>, vector<1x8x8x128xf32>
    %45 = vector.shape_cast %44 : vector<1x8x8x128xf32> to vector<8x8x128xf32>
    %46 = vector.shape_cast %45 : vector<8x8x128xf32> to vector<64x128xf32>
    %c1_56 = arith.constant 1 : index
    %c0_57 = arith.constant 0 : index
    %c7_58 = arith.constant 7 : index
    %c0_59 = arith.constant 0 : index
    %47 = vector.load %arg9[%c1_56, %c0_57, %c7_58, %c0_59] : memref<4x10x24x128xf32, #tpu.memory_space<vmem>>, vector<1x8x8x128xf32>
    %48 = vector.shape_cast %47 : vector<1x8x8x128xf32> to vector<8x8x128xf32>
    %49 = vector.shape_cast %48 : vector<8x8x128xf32> to vector<64x128xf32>
    %c1_60 = arith.constant 1 : index
    %c0_61 = arith.constant 0 : index
    %c8_62 = arith.constant 8 : index
    %c0_63 = arith.constant 0 : index
    %50 = vector.load %arg9[%c1_60, %c0_61, %c8_62, %c0_63] : memref<4x10x24x128xf32, #tpu.memory_space<vmem>>, vector<1x8x8x128xf32>
    %51 = vector.shape_cast %50 : vector<1x8x8x128xf32> to vector<8x8x128xf32>
    %52 = vector.shape_cast %51 : vector<8x8x128xf32> to vector<64x128xf32>
    %c1_64 = arith.constant 1 : index
    %c0_65 = arith.constant 0 : index
    %c9_66 = arith.constant 9 : index
    %c0_67 = arith.constant 0 : index
    %53 = vector.load %arg9[%c1_64, %c0_65, %c9_66, %c0_67] : memref<4x10x24x128xf32, #tpu.memory_space<vmem>>, vector<1x8x8x128xf32>
    %54 = vector.shape_cast %53 : vector<1x8x8x128xf32> to vector<8x8x128xf32>
    %55 = vector.shape_cast %54 : vector<8x8x128xf32> to vector<64x128xf32>
    %c1_68 = arith.constant 1 : index
    %c1_69 = arith.constant 1 : index
    %c7_70 = arith.constant 7 : index
    %c0_71 = arith.constant 0 : index
    %56 = vector.load %arg9[%c1_68, %c1_69, %c7_70, %c0_71] : memref<4x10x24x128xf32, #tpu.memory_space<vmem>>, vector<1x8x8x128xf32>
    %57 = vector.shape_cast %56 : vector<1x8x8x128xf32> to vector<8x8x128xf32>
    %58 = vector.shape_cast %57 : vector<8x8x128xf32> to vector<64x128xf32>
    %c1_72 = arith.constant 1 : index
    %c1_73 = arith.constant 1 : index
    %c8_74 = arith.constant 8 : index
    %c0_75 = arith.constant 0 : index
    %59 = vector.load %arg9[%c1_72, %c1_73, %c8_74, %c0_75] : memref<4x10x24x128xf32, #tpu.memory_space<vmem>>, vector<1x8x8x128xf32>
    %60 = vector.shape_cast %59 : vector<1x8x8x128xf32> to vector<8x8x128xf32>
    %61 = vector.shape_cast %60 : vector<8x8x128xf32> to vector<64x128xf32>
    %c1_76 = arith.constant 1 : index
    %c1_77 = arith.constant 1 : index
    %c9_78 = arith.constant 9 : index
    %c0_79 = arith.constant 0 : index
    %62 = vector.load %arg9[%c1_76, %c1_77, %c9_78, %c0_79] : memref<4x10x24x128xf32, #tpu.memory_space<vmem>>, vector<1x8x8x128xf32>
    %63 = vector.shape_cast %62 : vector<1x8x8x128xf32> to vector<8x8x128xf32>
    %64 = vector.shape_cast %63 : vector<8x8x128xf32> to vector<64x128xf32>
    %c1_80 = arith.constant 1 : index
    %c2_81 = arith.constant 2 : index
    %c7_82 = arith.constant 7 : index
    %c0_83 = arith.constant 0 : index
    %65 = vector.load %arg9[%c1_80, %c2_81, %c7_82, %c0_83] : memref<4x10x24x128xf32, #tpu.memory_space<vmem>>, vector<1x8x8x128xf32>
    %66 = vector.shape_cast %65 : vector<1x8x8x128xf32> to vector<8x8x128xf32>
    %67 = vector.shape_cast %66 : vector<8x8x128xf32> to vector<64x128xf32>
    %c1_84 = arith.constant 1 : index
    %c2_85 = arith.constant 2 : index
    %c8_86 = arith.constant 8 : index
    %c0_87 = arith.constant 0 : index
    %68 = vector.load %arg9[%c1_84, %c2_85, %c8_86, %c0_87] : memref<4x10x24x128xf32, #tpu.memory_space<vmem>>, vector<1x8x8x128xf32>
    %69 = vector.shape_cast %68 : vector<1x8x8x128xf32> to vector<8x8x128xf32>
    %70 = vector.shape_cast %69 : vector<8x8x128xf32> to vector<64x128xf32>
    %c1_88 = arith.constant 1 : index
    %c2_89 = arith.constant 2 : index
    %c9_90 = arith.constant 9 : index
    %c0_91 = arith.constant 0 : index
    %71 = vector.load %arg9[%c1_88, %c2_89, %c9_90, %c0_91] : memref<4x10x24x128xf32, #tpu.memory_space<vmem>>, vector<1x8x8x128xf32>
    %72 = vector.shape_cast %71 : vector<1x8x8x128xf32> to vector<8x8x128xf32>
    %73 = vector.shape_cast %72 : vector<8x8x128xf32> to vector<64x128xf32>
    %74 = tpu.concatenate %22, %25, %28, %31, %34, %37, %40, %43, %46, %49, %52, %55, %58, %61, %64, %67 in 1 : vector<64x128xf32>, vector<64x128xf32>, vector<64x128xf32>, vector<64x128xf32>, vector<64x128xf32>, vector<64x128xf32>, vector<64x128xf32>, vector<64x128xf32>, vector<64x128xf32>, vector<64x128xf32>, vector<64x128xf32>, vector<64x128xf32>, vector<64x128xf32>, vector<64x128xf32>, vector<64x128xf32>, vector<64x128xf32> -> vector<64x2048xf32>
    %75 = tpu.concatenate %70, %73 in 1 : vector<64x128xf32>, vector<64x128xf32> -> vector<64x256xf32>
    %76 = tpu.concatenate %74, %75 in 1 : vector<64x2048xf32>, vector<64x256xf32> -> vector<64x2304xf32>
    %77 = arith.truncf %76 : vector<64x2304xf32> to vector<64x2304xbf16>
    %cst_92 = arith.constant dense<0.000000e+00> : vector<64x64xf32>
    %78 = tpu.matmul %77, %18, %cst_92 {dimension_numbers = #tpu.dot_dimension_numbers<[1], [0], [0], [1], [0, 0, 1, 1], [], []>} : vector<64x2304xbf16>, vector<2304x64xbf16>, vector<64x64xf32> -> vector<64x64xf32>
    %cst_93 = arith.constant 0.000000e+00 : f32
    %79 = vector.broadcast %cst_93 : f32 to vector<64x64xf32>
    %80 = arith.maximumf %78, %79 : vector<64x64xf32>
    %cst_94 = arith.constant dense<0.000000e+00> : vector<64xf32>
    %81 = vector.multi_reduction <add>, %80, %cst_94 [0] : vector<64x64xf32> to vector<64xf32>
    %82 = vector.shape_cast %81 : vector<64xf32> to vector<1x64xf32>
    %cst_95 = arith.constant 1.562500e-02 : f32
    %83 = vector.broadcast %cst_95 : f32 to vector<1x64xf32>
    %84 = arith.mulf %83, %82 : vector<1x64xf32>
    %85 = arith.addf %19, %84 : vector<1x64xf32>
    %c1_96 = arith.constant 1 : index
    %c0_97 = arith.constant 0 : index
    %c7_98 = arith.constant 7 : index
    %c0_99 = arith.constant 0 : index
    %86 = vector.load %arg9[%c1_96, %c0_97, %c7_98, %c0_99] : memref<4x10x24x128xf32, #tpu.memory_space<vmem>>, vector<1x8x8x128xf32>
    %87 = vector.shape_cast %86 : vector<1x8x8x128xf32> to vector<8x8x128xf32>
    %88 = vector.shape_cast %87 : vector<8x8x128xf32> to vector<64x128xf32>
    %c1_100 = arith.constant 1 : index
    %c0_101 = arith.constant 0 : index
    %c8_102 = arith.constant 8 : index
    %c0_103 = arith.constant 0 : index
    %89 = vector.load %arg9[%c1_100, %c0_101, %c8_102, %c0_103] : memref<4x10x24x128xf32, #tpu.memory_space<vmem>>, vector<1x8x8x128xf32>
    %90 = vector.shape_cast %89 : vector<1x8x8x128xf32> to vector<8x8x128xf32>
    %91 = vector.shape_cast %90 : vector<8x8x128xf32> to vector<64x128xf32>
    %c1_104 = arith.constant 1 : index
    %c0_105 = arith.constant 0 : index
    %c9_106 = arith.constant 9 : index
    %c0_107 = arith.constant 0 : index
    %92 = vector.load %arg9[%c1_104, %c0_105, %c9_106, %c0_107] : memref<4x10x24x128xf32, #tpu.memory_space<vmem>>, vector<1x8x8x128xf32>
    %93 = vector.shape_cast %92 : vector<1x8x8x128xf32> to vector<8x8x128xf32>
    %94 = vector.shape_cast %93 : vector<8x8x128xf32> to vector<64x128xf32>
    %c1_108 = arith.constant 1 : index
    %c1_109 = arith.constant 1 : index
    %c7_110 = arith.constant 7 : index
    %c0_111 = arith.constant 0 : index
    %95 = vector.load %arg9[%c1_108, %c1_109, %c7_110, %c0_111] : memref<4x10x24x128xf32, #tpu.memory_space<vmem>>, vector<1x8x8x128xf32>
    %96 = vector.shape_cast %95 : vector<1x8x8x128xf32> to vector<8x8x128xf32>
    %97 = vector.shape_cast %96 : vector<8x8x128xf32> to vector<64x128xf32>
    %c1_112 = arith.constant 1 : index
    %c1_113 = arith.constant 1 : index
    %c8_114 = arith.constant 8 : index
    %c0_115 = arith.constant 0 : index
    %98 = vector.load %arg9[%c1_112, %c1_113, %c8_114, %c0_115] : memref<4x10x24x128xf32, #tpu.memory_space<vmem>>, vector<1x8x8x128xf32>
    %99 = vector.shape_cast %98 : vector<1x8x8x128xf32> to vector<8x8x128xf32>
    %100 = vector.shape_cast %99 : vector<8x8x128xf32> to vector<64x128xf32>
    %c1_116 = arith.constant 1 : index
    %c1_117 = arith.constant 1 : index
    %c9_118 = arith.constant 9 : index
    %c0_119 = arith.constant 0 : index
    %101 = vector.load %arg9[%c1_116, %c1_117, %c9_118, %c0_119] : memref<4x10x24x128xf32, #tpu.memory_space<vmem>>, vector<1x8x8x128xf32>
    %102 = vector.shape_cast %101 : vector<1x8x8x128xf32> to vector<8x8x128xf32>
    %103 = vector.shape_cast %102 : vector<8x8x128xf32> to vector<64x128xf32>
    %c1_120 = arith.constant 1 : index
    %c2_121 = arith.constant 2 : index
    %c7_122 = arith.constant 7 : index
    %c0_123 = arith.constant 0 : index
    %104 = vector.load %arg9[%c1_120, %c2_121, %c7_122, %c0_123] : memref<4x10x24x128xf32, #tpu.memory_space<vmem>>, vector<1x8x8x128xf32>
    %105 = vector.shape_cast %104 : vector<1x8x8x128xf32> to vector<8x8x128xf32>
    %106 = vector.shape_cast %105 : vector<8x8x128xf32> to vector<64x128xf32>
    %c1_124 = arith.constant 1 : index
    %c2_125 = arith.constant 2 : index
    %c8_126 = arith.constant 8 : index
    %c0_127 = arith.constant 0 : index
    %107 = vector.load %arg9[%c1_124, %c2_125, %c8_126, %c0_127] : memref<4x10x24x128xf32, #tpu.memory_space<vmem>>, vector<1x8x8x128xf32>
    %108 = vector.shape_cast %107 : vector<1x8x8x128xf32> to vector<8x8x128xf32>
    %109 = vector.shape_cast %108 : vector<8x8x128xf32> to vector<64x128xf32>
    %c1_128 = arith.constant 1 : index
    %c2_129 = arith.constant 2 : index
    %c9_130 = arith.constant 9 : index
    %c0_131 = arith.constant 0 : index
    %110 = vector.load %arg9[%c1_128, %c2_129, %c9_130, %c0_131] : memref<4x10x24x128xf32, #tpu.memory_space<vmem>>, vector<1x8x8x128xf32>
    %111 = vector.shape_cast %110 : vector<1x8x8x128xf32> to vector<8x8x128xf32>
    %112 = vector.shape_cast %111 : vector<8x8x128xf32> to vector<64x128xf32>
    %c2_132 = arith.constant 2 : index
    %c0_133 = arith.constant 0 : index
    %c7_134 = arith.constant 7 : index
    %c0_135 = arith.constant 0 : index
    %113 = vector.load %arg9[%c2_132, %c0_133, %c7_134, %c0_135] : memref<4x10x24x128xf32, #tpu.memory_space<vmem>>, vector<1x8x8x128xf32>
    %114 = vector.shape_cast %113 : vector<1x8x8x128xf32> to vector<8x8x128xf32>
    %115 = vector.shape_cast %114 : vector<8x8x128xf32> to vector<64x128xf32>
    %c2_136 = arith.constant 2 : index
    %c0_137 = arith.constant 0 : index
    %c8_138 = arith.constant 8 : index
    %c0_139 = arith.constant 0 : index
    %116 = vector.load %arg9[%c2_136, %c0_137, %c8_138, %c0_139] : memref<4x10x24x128xf32, #tpu.memory_space<vmem>>, vector<1x8x8x128xf32>
    %117 = vector.shape_cast %116 : vector<1x8x8x128xf32> to vector<8x8x128xf32>
    %118 = vector.shape_cast %117 : vector<8x8x128xf32> to vector<64x128xf32>
    %c2_140 = arith.constant 2 : index
    %c0_141 = arith.constant 0 : index
    %c9_142 = arith.constant 9 : index
    %c0_143 = arith.constant 0 : index
    %119 = vector.load %arg9[%c2_140, %c0_141, %c9_142, %c0_143] : memref<4x10x24x128xf32, #tpu.memory_space<vmem>>, vector<1x8x8x128xf32>
    %120 = vector.shape_cast %119 : vector<1x8x8x128xf32> to vector<8x8x128xf32>
    %121 = vector.shape_cast %120 : vector<8x8x128xf32> to vector<64x128xf32>
    %c2_144 = arith.constant 2 : index
    %c1_145 = arith.constant 1 : index
    %c7_146 = arith.constant 7 : index
    %c0_147 = arith.constant 0 : index
    %122 = vector.load %arg9[%c2_144, %c1_145, %c7_146, %c0_147] : memref<4x10x24x128xf32, #tpu.memory_space<vmem>>, vector<1x8x8x128xf32>
    %123 = vector.shape_cast %122 : vector<1x8x8x128xf32> to vector<8x8x128xf32>
    %124 = vector.shape_cast %123 : vector<8x8x128xf32> to vector<64x128xf32>
    %c2_148 = arith.constant 2 : index
    %c1_149 = arith.constant 1 : index
    %c8_150 = arith.constant 8 : index
    %c0_151 = arith.constant 0 : index
    %125 = vector.load %arg9[%c2_148, %c1_149, %c8_150, %c0_151] : memref<4x10x24x128xf32, #tpu.memory_space<vmem>>, vector<1x8x8x128xf32>
    %126 = vector.shape_cast %125 : vector<1x8x8x128xf32> to vector<8x8x128xf32>
    %127 = vector.shape_cast %126 : vector<8x8x128xf32> to vector<64x128xf32>
    %c2_152 = arith.constant 2 : index
    %c1_153 = arith.constant 1 : index
    %c9_154 = arith.constant 9 : index
    %c0_155 = arith.constant 0 : index
    %128 = vector.load %arg9[%c2_152, %c1_153, %c9_154, %c0_155] : memref<4x10x24x128xf32, #tpu.memory_space<vmem>>, vector<1x8x8x128xf32>
    %129 = vector.shape_cast %128 : vector<1x8x8x128xf32> to vector<8x8x128xf32>
    %130 = vector.shape_cast %129 : vector<8x8x128xf32> to vector<64x128xf32>
    %c2_156 = arith.constant 2 : index
    %c2_157 = arith.constant 2 : index
    %c7_158 = arith.constant 7 : index
    %c0_159 = arith.constant 0 : index
    %131 = vector.load %arg9[%c2_156, %c2_157, %c7_158, %c0_159] : memref<4x10x24x128xf32, #tpu.memory_space<vmem>>, vector<1x8x8x128xf32>
    %132 = vector.shape_cast %131 : vector<1x8x8x128xf32> to vector<8x8x128xf32>
    %133 = vector.shape_cast %132 : vector<8x8x128xf32> to vector<64x128xf32>
    %c2_160 = arith.constant 2 : index
    %c2_161 = arith.constant 2 : index
    %c8_162 = arith.constant 8 : index
    %c0_163 = arith.constant 0 : index
    %134 = vector.load %arg9[%c2_160, %c2_161, %c8_162, %c0_163] : memref<4x10x24x128xf32, #tpu.memory_space<vmem>>, vector<1x8x8x128xf32>
    %135 = vector.shape_cast %134 : vector<1x8x8x128xf32> to vector<8x8x128xf32>
    %136 = vector.shape_cast %135 : vector<8x8x128xf32> to vector<64x128xf32>
    %c2_164 = arith.constant 2 : index
    %c2_165 = arith.constant 2 : index
    %c9_166 = arith.constant 9 : index
    %c0_167 = arith.constant 0 : index
    %137 = vector.load %arg9[%c2_164, %c2_165, %c9_166, %c0_167] : memref<4x10x24x128xf32, #tpu.memory_space<vmem>>, vector<1x8x8x128xf32>
    %138 = vector.shape_cast %137 : vector<1x8x8x128xf32> to vector<8x8x128xf32>
    %139 = vector.shape_cast %138 : vector<8x8x128xf32> to vector<64x128xf32>
    %140 = tpu.concatenate %88, %91, %94, %97, %100, %103, %106, %109, %112, %115, %118, %121, %124, %127, %130, %133 in 1 : vector<64x128xf32>, vector<64x128xf32>, vector<64x128xf32>, vector<64x128xf32>, vector<64x128xf32>, vector<64x128xf32>, vector<64x128xf32>, vector<64x128xf32>, vector<64x128xf32>, vector<64x128xf32>, vector<64x128xf32>, vector<64x128xf32>, vector<64x128xf32>, vector<64x128xf32>, vector<64x128xf32>, vector<64x128xf32> -> vector<64x2048xf32>
    %141 = tpu.concatenate %136, %139 in 1 : vector<64x128xf32>, vector<64x128xf32> -> vector<64x256xf32>
    %142 = tpu.concatenate %140, %141 in 1 : vector<64x2048xf32>, vector<64x256xf32> -> vector<64x2304xf32>
    %143 = arith.truncf %142 : vector<64x2304xf32> to vector<64x2304xbf16>
    %cst_168 = arith.constant dense<0.000000e+00> : vector<64x64xf32>
    %144 = tpu.matmul %143, %18, %cst_168 {dimension_numbers = #tpu.dot_dimension_numbers<[1], [0], [0], [1], [0, 0, 1, 1], [], []>} : vector<64x2304xbf16>, vector<2304x64xbf16>, vector<64x64xf32> -> vector<64x64xf32>
    %cst_169 = arith.constant 0.000000e+00 : f32
    %145 = vector.broadcast %cst_169 : f32 to vector<64x64xf32>
    %146 = arith.maximumf %144, %145 : vector<64x64xf32>
    %cst_170 = arith.constant dense<0.000000e+00> : vector<64xf32>
    %147 = vector.multi_reduction <add>, %146, %cst_170 [0] : vector<64x64xf32> to vector<64xf32>
    %148 = vector.shape_cast %147 : vector<64xf32> to vector<1x64xf32>
    %cst_171 = arith.constant 0.00984313338 : f32
    %149 = vector.broadcast %cst_171 : f32 to vector<1x64xf32>
    %150 = arith.mulf %149, %148 : vector<1x64xf32>
    %151 = arith.addf %85, %150 : vector<1x64xf32>
    %c2_172 = arith.constant 2 : index
    %c0_173 = arith.constant 0 : index
    %c7_174 = arith.constant 7 : index
    %c0_175 = arith.constant 0 : index
    %152 = vector.load %arg9[%c2_172, %c0_173, %c7_174, %c0_175] : memref<4x10x24x128xf32, #tpu.memory_space<vmem>>, vector<1x8x8x128xf32>
    %153 = vector.shape_cast %152 : vector<1x8x8x128xf32> to vector<8x8x128xf32>
    %154 = vector.shape_cast %153 : vector<8x8x128xf32> to vector<64x128xf32>
    %c2_176 = arith.constant 2 : index
    %c0_177 = arith.constant 0 : index
    %c8_178 = arith.constant 8 : index
    %c0_179 = arith.constant 0 : index
    %155 = vector.load %arg9[%c2_176, %c0_177, %c8_178, %c0_179] : memref<4x10x24x128xf32, #tpu.memory_space<vmem>>, vector<1x8x8x128xf32>
    %156 = vector.shape_cast %155 : vector<1x8x8x128xf32> to vector<8x8x128xf32>
    %157 = vector.shape_cast %156 : vector<8x8x128xf32> to vector<64x128xf32>
    %c2_180 = arith.constant 2 : index
    %c0_181 = arith.constant 0 : index
    %c9_182 = arith.constant 9 : index
    %c0_183 = arith.constant 0 : index
    %158 = vector.load %arg9[%c2_180, %c0_181, %c9_182, %c0_183] : memref<4x10x24x128xf32, #tpu.memory_space<vmem>>, vector<1x8x8x128xf32>
    %159 = vector.shape_cast %158 : vector<1x8x8x128xf32> to vector<8x8x128xf32>
    %160 = vector.shape_cast %159 : vector<8x8x128xf32> to vector<64x128xf32>
    %c2_184 = arith.constant 2 : index
    %c1_185 = arith.constant 1 : index
    %c7_186 = arith.constant 7 : index
    %c0_187 = arith.constant 0 : index
    %161 = vector.load %arg9[%c2_184, %c1_185, %c7_186, %c0_187] : memref<4x10x24x128xf32, #tpu.memory_space<vmem>>, vector<1x8x8x128xf32>
    %162 = vector.shape_cast %161 : vector<1x8x8x128xf32> to vector<8x8x128xf32>
    %163 = vector.shape_cast %162 : vector<8x8x128xf32> to vector<64x128xf32>
    %c2_188 = arith.constant 2 : index
    %c1_189 = arith.constant 1 : index
    %c8_190 = arith.constant 8 : index
    %c0_191 = arith.constant 0 : index
    %164 = vector.load %arg9[%c2_188, %c1_189, %c8_190, %c0_191] : memref<4x10x24x128xf32, #tpu.memory_space<vmem>>, vector<1x8x8x128xf32>
    %165 = vector.shape_cast %164 : vector<1x8x8x128xf32> to vector<8x8x128xf32>
    %166 = vector.shape_cast %165 : vector<8x8x128xf32> to vector<64x128xf32>
    %c2_192 = arith.constant 2 : index
    %c1_193 = arith.constant 1 : index
    %c9_194 = arith.constant 9 : index
    %c0_195 = arith.constant 0 : index
    %167 = vector.load %arg9[%c2_192, %c1_193, %c9_194, %c0_195] : memref<4x10x24x128xf32, #tpu.memory_space<vmem>>, vector<1x8x8x128xf32>
    %168 = vector.shape_cast %167 : vector<1x8x8x128xf32> to vector<8x8x128xf32>
    %169 = vector.shape_cast %168 : vector<8x8x128xf32> to vector<64x128xf32>
    %c2_196 = arith.constant 2 : index
    %c2_197 = arith.constant 2 : index
    %c7_198 = arith.constant 7 : index
    %c0_199 = arith.constant 0 : index
    %170 = vector.load %arg9[%c2_196, %c2_197, %c7_198, %c0_199] : memref<4x10x24x128xf32, #tpu.memory_space<vmem>>, vector<1x8x8x128xf32>
    %171 = vector.shape_cast %170 : vector<1x8x8x128xf32> to vector<8x8x128xf32>
    %172 = vector.shape_cast %171 : vector<8x8x128xf32> to vector<64x128xf32>
    %c2_200 = arith.constant 2 : index
    %c2_201 = arith.constant 2 : index
    %c8_202 = arith.constant 8 : index
    %c0_203 = arith.constant 0 : index
    %173 = vector.load %arg9[%c2_200, %c2_201, %c8_202, %c0_203] : memref<4x10x24x128xf32, #tpu.memory_space<vmem>>, vector<1x8x8x128xf32>
    %174 = vector.shape_cast %173 : vector<1x8x8x128xf32> to vector<8x8x128xf32>
    %175 = vector.shape_cast %174 : vector<8x8x128xf32> to vector<64x128xf32>
    %c2_204 = arith.constant 2 : index
    %c2_205 = arith.constant 2 : index
    %c9_206 = arith.constant 9 : index
    %c0_207 = arith.constant 0 : index
    %176 = vector.load %arg9[%c2_204, %c2_205, %c9_206, %c0_207] : memref<4x10x24x128xf32, #tpu.memory_space<vmem>>, vector<1x8x8x128xf32>
    %177 = vector.shape_cast %176 : vector<1x8x8x128xf32> to vector<8x8x128xf32>
    %178 = vector.shape_cast %177 : vector<8x8x128xf32> to vector<64x128xf32>
    %c3 = arith.constant 3 : index
    %c0_208 = arith.constant 0 : index
    %c7_209 = arith.constant 7 : index
    %c0_210 = arith.constant 0 : index
    %179 = vector.load %arg9[%c3, %c0_208, %c7_209, %c0_210] : memref<4x10x24x128xf32, #tpu.memory_space<vmem>>, vector<1x8x8x128xf32>
    %180 = vector.shape_cast %179 : vector<1x8x8x128xf32> to vector<8x8x128xf32>
    %181 = vector.shape_cast %180 : vector<8x8x128xf32> to vector<64x128xf32>
    %c3_211 = arith.constant 3 : index
    %c0_212 = arith.constant 0 : index
    %c8_213 = arith.constant 8 : index
    %c0_214 = arith.constant 0 : index
    %182 = vector.load %arg9[%c3_211, %c0_212, %c8_213, %c0_214] : memref<4x10x24x128xf32, #tpu.memory_space<vmem>>, vector<1x8x8x128xf32>
    %183 = vector.shape_cast %182 : vector<1x8x8x128xf32> to vector<8x8x128xf32>
    %184 = vector.shape_cast %183 : vector<8x8x128xf32> to vector<64x128xf32>
    %c3_215 = arith.constant 3 : index
    %c0_216 = arith.constant 0 : index
    %c9_217 = arith.constant 9 : index
    %c0_218 = arith.constant 0 : index
    %185 = vector.load %arg9[%c3_215, %c0_216, %c9_217, %c0_218] : memref<4x10x24x128xf32, #tpu.memory_space<vmem>>, vector<1x8x8x128xf32>
    %186 = vector.shape_cast %185 : vector<1x8x8x128xf32> to vector<8x8x128xf32>
    %187 = vector.shape_cast %186 : vector<8x8x128xf32> to vector<64x128xf32>
    %c3_219 = arith.constant 3 : index
    %c1_220 = arith.constant 1 : index
    %c7_221 = arith.constant 7 : index
    %c0_222 = arith.constant 0 : index
    %188 = vector.load %arg9[%c3_219, %c1_220, %c7_221, %c0_222] : memref<4x10x24x128xf32, #tpu.memory_space<vmem>>, vector<1x8x8x128xf32>
    %189 = vector.shape_cast %188 : vector<1x8x8x128xf32> to vector<8x8x128xf32>
    %190 = vector.shape_cast %189 : vector<8x8x128xf32> to vector<64x128xf32>
    %c3_223 = arith.constant 3 : index
    %c1_224 = arith.constant 1 : index
    %c8_225 = arith.constant 8 : index
    %c0_226 = arith.constant 0 : index
    %191 = vector.load %arg9[%c3_223, %c1_224, %c8_225, %c0_226] : memref<4x10x24x128xf32, #tpu.memory_space<vmem>>, vector<1x8x8x128xf32>
    %192 = vector.shape_cast %191 : vector<1x8x8x128xf32> to vector<8x8x128xf32>
    %193 = vector.shape_cast %192 : vector<8x8x128xf32> to vector<64x128xf32>
    %c3_227 = arith.constant 3 : index
    %c1_228 = arith.constant 1 : index
    %c9_229 = arith.constant 9 : index
    %c0_230 = arith.constant 0 : index
    %194 = vector.load %arg9[%c3_227, %c1_228, %c9_229, %c0_230] : memref<4x10x24x128xf32, #tpu.memory_space<vmem>>, vector<1x8x8x128xf32>
    %195 = vector.shape_cast %194 : vector<1x8x8x128xf32> to vector<8x8x128xf32>
    %196 = vector.shape_cast %195 : vector<8x8x128xf32> to vector<64x128xf32>
    %c3_231 = arith.constant 3 : index
    %c2_232 = arith.constant 2 : index
    %c7_233 = arith.constant 7 : index
    %c0_234 = arith.constant 0 : index
    %197 = vector.load %arg9[%c3_231, %c2_232, %c7_233, %c0_234] : memref<4x10x24x128xf32, #tpu.memory_space<vmem>>, vector<1x8x8x128xf32>
    %198 = vector.shape_cast %197 : vector<1x8x8x128xf32> to vector<8x8x128xf32>
    %199 = vector.shape_cast %198 : vector<8x8x128xf32> to vector<64x128xf32>
    %c3_235 = arith.constant 3 : index
    %c2_236 = arith.constant 2 : index
    %c8_237 = arith.constant 8 : index
    %c0_238 = arith.constant 0 : index
    %200 = vector.load %arg9[%c3_235, %c2_236, %c8_237, %c0_238] : memref<4x10x24x128xf32, #tpu.memory_space<vmem>>, vector<1x8x8x128xf32>
    %201 = vector.shape_cast %200 : vector<1x8x8x128xf32> to vector<8x8x128xf32>
    %202 = vector.shape_cast %201 : vector<8x8x128xf32> to vector<64x128xf32>
    %c3_239 = arith.constant 3 : index
    %c2_240 = arith.constant 2 : index
    %c9_241 = arith.constant 9 : index
    %c0_242 = arith.constant 0 : index
    %203 = vector.load %arg9[%c3_239, %c2_240, %c9_241, %c0_242] : memref<4x10x24x128xf32, #tpu.memory_space<vmem>>, vector<1x8x8x128xf32>
    %204 = vector.shape_cast %203 : vector<1x8x8x128xf32> to vector<8x8x128xf32>
    %205 = vector.shape_cast %204 : vector<8x8x128xf32> to vector<64x128xf32>
    %206 = tpu.concatenate %154, %157, %160, %163, %166, %169, %172, %175, %178, %181, %184, %187, %190, %193, %196, %199 in 1 : vector<64x128xf32>, vector<64x128xf32>, vector<64x128xf32>, vector<64x128xf32>, vector<64x128xf32>, vector<64x128xf32>, vector<64x128xf32>, vector<64x128xf32>, vector<64x128xf32>, vector<64x128xf32>, vector<64x128xf32>, vector<64x128xf32>, vector<64x128xf32>, vector<64x128xf32>, vector<64x128xf32>, vector<64x128xf32> -> vector<64x2048xf32>
    %207 = tpu.concatenate %202, %205 in 1 : vector<64x128xf32>, vector<64x128xf32> -> vector<64x256xf32>
    %208 = tpu.concatenate %206, %207 in 1 : vector<64x2048xf32>, vector<64x256xf32> -> vector<64x2304xf32>
    %209 = arith.truncf %208 : vector<64x2304xf32> to vector<64x2304xbf16>
    %cst_243 = arith.constant dense<0.000000e+00> : vector<64x64xf32>
    %210 = tpu.matmul %209, %18, %cst_243 {dimension_numbers = #tpu.dot_dimension_numbers<[1], [0], [0], [1], [0, 0, 1, 1], [], []>} : vector<64x2304xbf16>, vector<2304x64xbf16>, vector<64x64xf32> -> vector<64x64xf32>
    %cst_244 = arith.constant 0.000000e+00 : f32
    %211 = vector.broadcast %cst_244 : f32 to vector<64x64xf32>
    %212 = arith.maximumf %210, %211 : vector<64x64xf32>
    %cst_245 = arith.constant dense<0.000000e+00> : vector<64xf32>
    %213 = vector.multi_reduction <add>, %212, %cst_245 [0] : vector<64x64xf32> to vector<64xf32>
    %214 = vector.shape_cast %213 : vector<64xf32> to vector<1x64xf32>
    %cst_246 = arith.constant 0.00620078528 : f32
    %215 = vector.broadcast %cst_246 : f32 to vector<1x64xf32>
    %216 = arith.mulf %215, %214 : vector<1x64xf32>
    %217 = arith.addf %151, %216 : vector<1x64xf32>
    %218 = vector.shape_cast %217 : vector<1x64xf32> to vector<1x64xf32>
    %219 = vector.broadcast %218 : vector<1x64xf32> to vector<8x64xf32>
    %220 = arith.truncf %219 : vector<8x64xf32> to vector<8x64xbf16>
    %c0_247 = arith.constant 0 : index
    %c0_248 = arith.constant 0 : index
    %221 = vector.load %arg4[%c0_247, %c0_248] : memref<64x150xbf16, #tpu.memory_space<vmem>>, vector<64x150xbf16>
    %cst_249 = arith.constant dense<0.000000e+00> : vector<8x150xf32>
    %222 = tpu.matmul %220, %221, %cst_249 {dimension_numbers = #tpu.dot_dimension_numbers<[1], [0], [0], [1], [0, 0, 1, 1], [], []>} : vector<8x64xbf16>, vector<64x150xbf16>, vector<8x150xf32> -> vector<8x150xf32>
    %c0_250 = arith.constant 0 : index
    %c0_251 = arith.constant 0 : index
    %223 = vector.load %arg5[%c0_250, %c0_251] : memref<1x150xf32, #tpu.memory_space<vmem>>, vector<1x150xf32>
    %224 = vector.broadcast %223 : vector<1x150xf32> to vector<8x150xf32>
    %225 = arith.addf %222, %224 : vector<8x150xf32>
    %cst_252 = arith.constant 0.000000e+00 : f32
    %226 = vector.broadcast %cst_252 : f32 to vector<8x150xf32>
    %227 = arith.maximumf %225, %226 : vector<8x150xf32>
    %228 = arith.truncf %227 : vector<8x150xf32> to vector<8x150xbf16>
    %c0_253 = arith.constant 0 : index
    %c0_254 = arith.constant 0 : index
    %229 = vector.load %arg6[%c0_253, %c0_254] : memref<150x128xbf16, #tpu.memory_space<vmem>>, vector<150x128xbf16>
    %cst_255 = arith.constant dense<0.000000e+00> : vector<8x128xf32>
    %230 = tpu.matmul %228, %229, %cst_255 {dimension_numbers = #tpu.dot_dimension_numbers<[1], [0], [0], [1], [0, 0, 1, 1], [], []>} : vector<8x150xbf16>, vector<150x128xbf16>, vector<8x128xf32> -> vector<8x128xf32>
    %c0_256 = arith.constant 0 : index
    %c0_257 = arith.constant 0 : index
    %231 = vector.load %arg7[%c0_256, %c0_257] : memref<1x128xf32, #tpu.memory_space<vmem>>, vector<1x128xf32>
    %232 = vector.broadcast %231 : vector<1x128xf32> to vector<8x128xf32>
    %233 = arith.addf %230, %232 : vector<8x128xf32>
    %c0_258 = arith.constant 0 : index
    %c0_259 = arith.constant 0 : index
    %c0_260 = arith.constant 0 : index
    %234 = vector.load %arg8[%c0_258, %c0_259, %c0_260] : memref<1x8x128xf32, #tpu.memory_space<vmem>>, vector<1x8x128xf32>
    %235 = vector.shape_cast %234 : vector<1x8x128xf32> to vector<8x128xf32>
    %236 = vector.shape_cast %233 : vector<8x128xf32> to vector<1x8x128xf32>
    tpu.vector_store %arg8[%c0_258, %c0_259, %c0_260], %236 {strides = array<i32>} : memref<1x8x128xf32, #tpu.memory_space<vmem>>, vector<1x8x128xf32>,
    return
  }
  func.func @transform_0(%arg0: i32) -> (i32, i32, i32) {
    %c0_i32 = arith.constant 0 : i32
    %c0_i32_0 = arith.constant 0 : i32
    %c0_i32_1 = arith.constant 0 : i32
    return %arg0, %c0_i32, %c0_i32_0 : i32, i32, i32
  }
  func.func @transform_1(%arg0: i32) -> (i32, i32) {
    %c0_i32 = arith.constant 0 : i32
    %c0_i32_0 = arith.constant 0 : i32
    %c0_i32_1 = arith.constant 0 : i32
    return %c0_i32, %c0_i32_0 : i32, i32
  }
  func.func @transform_2(%arg0: i32) -> (i32, i32) {
    %c0_i32 = arith.constant 0 : i32
    %c0_i32_0 = arith.constant 0 : i32
    %c0_i32_1 = arith.constant 0 : i32
    return %c0_i32, %c0_i32_0 : i32, i32
  }
  func.func @transform_3(%arg0: i32) -> (i32, i32) {
    %c0_i32 = arith.constant 0 : i32
    %c0_i32_0 = arith.constant 0 : i32
    %c0_i32_1 = arith.constant 0 : i32
    return %c0_i32, %c0_i32_0 : i32, i32
  }
  func.func @transform_4(%arg0: i32) -> (i32, i32) {
    %c0_i32 = arith.constant 0 : i32
    %c0_i32_0 = arith.constant 0 : i32
    %c0_i32_1 = arith.constant 0 : i32
    return %c0_i32, %c0_i32_0 : i32, i32
  }
  func.func @transform_5(%arg0: i32) -> (i32, i32) {
    %c0_i32 = arith.constant 0 : i32
    %c0_i32_0 = arith.constant 0 : i32
    %c0_i32_1 = arith.constant 0 : i32
    return %c0_i32, %c0_i32_0 : i32, i32
  }
  func.func @transform_6(%arg0: i32) -> (i32, i32) {
    %c0_i32 = arith.constant 0 : i32
    %c0_i32_0 = arith.constant 0 : i32
    %c0_i32_1 = arith.constant 0 : i32
    return %c0_i32, %c0_i32_0 : i32, i32
  }
  func.func @transform_7(%arg0: i32) -> (i32, i32, i32) {
    %c0_i32 = arith.constant 0 : i32
    %c0_i32_0 = arith.constant 0 : i32
    %c0_i32_1 = arith.constant 0 : i32
    return %arg0, %c0_i32, %c0_i32_0 : i32, i32, i32
  }
}

</mosaic_0001>

<llo_original>
// kernel: kanazawa_forward.1
$region0: #{kanazawa_forward.1}
  #allocation0 [shape = 'u32[]', space=smem, size = 0x4, offset = 0x4, fixed_abs, tag = 'smem constant byte address 0x4 - core index']
  #allocation1 [shape = 'u32[144,128]{1,0:T(1,128)}', space=vmem, size = 0x12000, scoped, tag = 'internal scratch']
  #allocation2 [shape = 'f32[4,10,24,128]{3,2,1,0:T(8,128)}', space=vmem, size = 0x78000, scoped, tag = 'scratch operand']
  %s0 = inlined_call_operand.vmem [shape: bf16[2,64,128], index: 0, kind: input, shape index: {}]
  %s1 = inlined_call_operand.vmem [shape: bf16[128,128], index: 1, kind: input, shape index: {}]
  %s2 = inlined_call_operand.vmem [shape: bf16[2304,64], index: 2, kind: input, shape index: {}]
  %s3 = inlined_call_operand.vmem [shape: bf16[64,150], index: 3, kind: input, shape index: {}]
  %s4 = inlined_call_operand.vmem [shape: f32[1,150], index: 4, kind: input, shape index: {}]
  %s5 = inlined_call_operand.vmem [shape: bf16[150,128], index: 5, kind: input, shape index: {}]
  %s6 = inlined_call_operand.vmem [shape: f32[1,128], index: 6, kind: input, shape index: {}]
  %s7 = inlined_call_operand.vmem [shape: f32[2,8,128], index: 7, kind: output, shape index: {}]
  %s8 = sld [smem:[#allocation0]]
  $region61: #{kanazawa_forward.1} parent=0
    _
  %s10 = ssub.s32 1, %s8
  %s11 = scalar_select 0, %s10, %s8
  loop: start=0, step=1, limit=4
  $region2: #{kanazawa_forward.1} parent=0 // loop_pre_header
    _
  $region3: #{kanazawa_forward.1} parent=0 // loop_header
    %s13 = sphi 0, %s17
    %p14 = scmp.ge.s32.totalorder %s13, 4
    %s23 = sphi 0, %s25
    %s26 = sphi 0, %s23
    %s27 = sphi 0, %s26
    %s43 = sphi 0, %s27
    %s47 = sphi 0, %s47
    %s49 = sphi 0, %s47
    %s50 = sphi 0, %s49
    %s64 = sphi 0, %s50
    %s68 = sphi 0, %s68
    %s70 = sphi 0, %s68
    %s71 = sphi 0, %s70
    %s85 = sphi 0, %s71
    %s89 = sphi 0, %s89
    %s91 = sphi 0, %s89
    %s92 = sphi 0, %s91
    %s106 = sphi 0, %s92
    %s110 = sphi 0, %s110
    %s112 = sphi 0, %s110
    %s113 = sphi 0, %s112
    %s127 = sphi 0, %s113
    %s131 = sphi 0, %s131
    %s133 = sphi 0, %s131
    %s134 = sphi 0, %s133
    %s148 = sphi 0, %s134
    %s152 = sphi 0, %s152
    %s154 = sphi 0, %s152
    %s155 = sphi 0, %s154
    %s169 = sphi 0, %s155
    %s175 = sphi 0, %s177
    %s178 = sphi 0, %s175
    %s179 = sphi 0, %s178
    %s195 = sphi 0, %s179
  $region4: #{kanazawa_forward.1} parent=0 // loop_header_branch
    %16 = sbr.rel (%p14) target = $region8
  $region5: #{kanazawa_forward.1} parent=0 // loop_body
    %s18 = ssub.s32 %s13, 1
    %s19 = ssub.s32 %s13, 2
    %s20 = sadd.s32 %s13, 1
    %s21 = ssub.s32 %s13, %s20
    %p22 = scmp.eq.s32.totalorder %s21, 0
    %s24 = sadd.s32 %s23, 1
    %s25 = scalar_select %p22, %s23, %s24
    %p28 = pneg %p22
    %p29 = scmp.eq.s32.totalorder %s13, 1
    %p30 = por %p28, %p29
    %p31 = scmp.ne.s32.totalorder %s23, %s26
    %p32 = scmp.eq.s32.totalorder %s13, 0
    %p33 = por %p31, %p32
    %p34 = scmp.ne.s32.totalorder %s23, %s26
    %p35 = scmp.eq.s32.totalorder %s18, 1
    %p36 = por %p34, %p35
    %p37 = scmp.ne.s32.totalorder %s26, %s27
    %p38 = scmp.eq.s32.totalorder %s18, 0
    %p39 = por %p37, %p38
    %p40 = scmp.ne.s32.totalorder %s26, %s27
    %p41 = scmp.eq.s32.totalorder %s19, 1
    %p42 = por %p40, %p41
    %p44 = scmp.ne.s32.totalorder %s27, %s43
    %p45 = scmp.eq.s32.totalorder %s19, 0
    %p46 = por %p44, %p45
    %s48 = sadd.s32 %s47, 1
    %p51 = scmp.eq.s32.totalorder %s13, 1
    %p52 = scmp.ne.s32.totalorder %s47, %s49
    %p53 = scmp.eq.s32.totalorder %s13, 0
    %p54 = por %p52, %p53
    %p55 = scmp.ne.s32.totalorder %s47, %s49
    %p56 = scmp.eq.s32.totalorder %s18, 1
    %p57 = por %p55, %p56
    %p58 = scmp.ne.s32.totalorder %s49, %s50
    %p59 = scmp.eq.s32.totalorder %s18, 0
    %p60 = por %p58, %p59
    %p61 = scmp.ne.s32.totalorder %s49, %s50
    %p62 = scmp.eq.s32.totalorder %s19, 1
    %p63 = por %p61, %p62
    %p65 = scmp.ne.s32.totalorder %s50, %s64
    %p66 = scmp.eq.s32.totalorder %s19, 0
    %p67 = por %p65, %p66
    %s69 = sadd.s32 %s68, 1
    %p72 = scmp.eq.s32.totalorder %s13, 1
    %p73 = scmp.ne.s32.totalorder %s68, %s70
    %p74 = scmp.eq.s32.totalorder %s13, 0
    %p75 = por %p73, %p74
    %p76 = scmp.ne.s32.totalorder %s68, %s70
    %p77 = scmp.eq.s32.totalorder %s18, 1
    %p78 = por %p76, %p77
    %p79 = scmp.ne.s32.totalorder %s70, %s71
    %p80 = scmp.eq.s32.totalorder %s18, 0
    %p81 = por %p79, %p80
    %p82 = scmp.ne.s32.totalorder %s70, %s71
    %p83 = scmp.eq.s32.totalorder %s19, 1
    %p84 = por %p82, %p83
    %p86 = scmp.ne.s32.totalorder %s71, %s85
    %p87 = scmp.eq.s32.totalorder %s19, 0
    %p88 = por %p86, %p87
    %s90 = sadd.s32 %s89, 1
    %p93 = scmp.eq.s32.totalorder %s13, 1
    %p94 = scmp.ne.s32.totalorder %s89, %s91
    %p95 = scmp.eq.s32.totalorder %s13, 0
    %p96 = por %p94, %p95
    %p97 = scmp.ne.s32.totalorder %s89, %s91
    %p98 = scmp.eq.s32.totalorder %s18, 1
    %p99 = por %p97, %p98
    %p100 = scmp.ne.s32.totalorder %s91, %s92
    %p101 = scmp.eq.s32.totalorder %s18, 0
    %p102 = por %p100, %p101
    %p103 = scmp.ne.s32.totalorder %s91, %s92
    %p104 = scmp.eq.s32.totalorder %s19, 1
    %p105 = por %p103, %p104
    %p107 = scmp.ne.s32.totalorder %s92, %s106
    %p108 = scmp.eq.s32.totalorder %s19, 0
    %p109 = por %p107, %p108
    %s111 = sadd.s32 %s110, 1
    %p114 = scmp.eq.s32.totalorder %s13, 1
    %p115 = scmp.ne.s32.totalorder %s110, %s112
    %p116 = scmp.eq.s32.totalorder %s13, 0
    %p117 = por %p115, %p116
    %p118 = scmp.ne.s32.totalorder %s110, %s112
    %p119 = scmp.eq.s32.totalorder %s18, 1
    %p120 = por %p118, %p119
    %p121 = scmp.ne.s32.totalorder %s112, %s113
    %p122 = scmp.eq.s32.totalorder %s18, 0
    %p123 = por %p121, %p122
    %p124 = scmp.ne.s32.totalorder %s112, %s113
    %p125 = scmp.eq.s32.totalorder %s19, 1
    %p126 = por %p124, %p125
    %p128 = scmp.ne.s32.totalorder %s113, %s127
    %p129 = scmp.eq.s32.totalorder %s19, 0
    %p130 = por %p128, %p129
    %s132 = sadd.s32 %s131, 1
    %p135 = scmp.eq.s32.totalorder %s13, 1
    %p136 = scmp.ne.s32.totalorder %s131, %s133
    %p137 = scmp.eq.s32.totalorder %s13, 0
    %p138 = por %p136, %p137
    %p139 = scmp.ne.s32.totalorder %s131, %s133
    %p140 = scmp.eq.s32.totalorder %s18, 1
    %p141 = por %p139, %p140
    %p142 = scmp.ne.s32.totalorder %s133, %s134
    %p143 = scmp.eq.s32.totalorder %s18, 0
    %p144 = por %p142, %p143
    %p145 = scmp.ne.s32.totalorder %s133, %s134
    %p146 = scmp.eq.s32.totalorder %s19, 1
    %p147 = por %p145, %p146
    %p149 = scmp.ne.s32.totalorder %s134, %s148
    %p150 = scmp.eq.s32.totalorder %s19, 0
    %p151 = por %p149, %p150
    %s153 = sadd.s32 %s152, 1
    %p156 = scmp.eq.s32.totalorder %s13, 1
    %p157 = scmp.ne.s32.totalorder %s152, %s154
    %p158 = scmp.eq.s32.totalorder %s13, 0
    %p159 = por %p157, %p158
    %p160 = scmp.ne.s32.totalorder %s152, %s154
    %p161 = scmp.eq.s32.totalorder %s18, 1
    %p162 = por %p160, %p161
    %p163 = scmp.ne.s32.totalorder %s154, %s155
    %p164 = scmp.eq.s32.totalorder %s18, 0
    %p165 = por %p163, %p164
    %p166 = scmp.ne.s32.totalorder %s154, %s155
    %p167 = scmp.eq.s32.totalorder %s19, 1
    %p168 = por %p166, %p167
    %p170 = scmp.ne.s32.totalorder %s155, %s169
    %p171 = scmp.eq.s32.totalorder %s19, 0
    %p172 = por %p170, %p171
    %s173 = ssub.s32 %s13, %s20
    %p174 = scmp.eq.s32.totalorder %s173, 0
    %s176 = sadd.s32 %s175, 1
    %s177 = scalar_select %p174, %s175, %s176
    %p180 = pneg %p174
    %p181 = scmp.eq.s32.totalorder %s13, 1
    %p182 = por %p180, %p181
    %p183 = scmp.ne.s32.totalorder %s175, %s178
    %p184 = scmp.eq.s32.totalorder %s13, 0
    %p185 = por %p183, %p184
    %p186 = scmp.ne.s32.totalorder %s175, %s178
    %p187 = scmp.eq.s32.totalorder %s18, 1
    %p188 = por %p186, %p187
    %p189 = scmp.ne.s32.totalorder %s178, %s179
    %p190 = scmp.eq.s32.totalorder %s18, 0
    %p191 = por %p189, %p190
    %p192 = scmp.ne.s32.totalorder %s178, %s179
    %p193 = scmp.eq.s32.totalorder %s19, 1
    %p194 = por %p192, %p193
    %p196 = scmp.ne.s32.totalorder %s179, %s195
    %p197 = scmp.eq.s32.totalorder %s19, 0
    %p198 = por %p196, %p197
    %p199 = scmp.le.s32.totalorder 1, %s13
    %p200 = scmp.lt.s32.totalorder %s13, 3
    %p201 = pnand %p199, %p200
    %p202 = pneg %p201
    // Predicated region
    $region9: #{kanazawa_forward.1} parent=5 // pred_check
      _
    $region10: #{kanazawa_forward.1} parent=5 // pred_check_branch
      %204 = sbr.rel (%p201) target = $region12
    $region11: #{kanazawa_forward.1} parent=5 // pred_region
      %s205 = ssub.s32 %s13, 1
      // Predicated region
      $region13: #{kanazawa_forward.1} parent=11 // pred_check
        %p206 = pneg %p60
      $region14: #{kanazawa_forward.1} parent=11 // pred_check_branch
        %208 = sbr.rel (%p206) target = $region16
      $region15: #{kanazawa_forward.1} parent=11 // pred_region
        _
      $region16: #{kanazawa_forward.1} parent=11 // pred_fallthru
        _
      // Predicated region
      $region17: #{kanazawa_forward.1} parent=11 // pred_check
        %p209 = pneg %p81
      $region18: #{kanazawa_forward.1} parent=11 // pred_check_branch
        %211 = sbr.rel (%p209) target = $region20
      $region19: #{kanazawa_forward.1} parent=11 // pred_region
        _
      $region20: #{kanazawa_forward.1} parent=11 // pred_fallthru
        _
      // Predicated region
      $region21: #{kanazawa_forward.1} parent=11 // pred_check
        %p212 = pneg %p102
      $region22: #{kanazawa_forward.1} parent=11 // pred_check_branch
        %214 = sbr.rel (%p212) target = $region24
      $region23: #{kanazawa_forward.1} parent=11 // pred_region
        _
      $region24: #{kanazawa_forward.1} parent=11 // pred_fallthru
        _
      // Predicated region
      $region25: #{kanazawa_forward.1} parent=11 // pred_check
        %p215 = pneg %p123
      $region26: #{kanazawa_forward.1} parent=11 // pred_check_branch
        %217 = sbr.rel (%p215) target = $region28
      $region27: #{kanazawa_forward.1} parent=11 // pred_region
        _
      $region28: #{kanazawa_forward.1} parent=11 // pred_fallthru
        _
      // Predicated region
      $region29: #{kanazawa_forward.1} parent=11 // pred_check
        %p218 = pneg %p144
      $region30: #{kanazawa_forward.1} parent=11 // pred_check_branch
        %220 = sbr.rel (%p218) target = $region32
      $region31: #{kanazawa_forward.1} parent=11 // pred_region
        _
      $region32: #{kanazawa_forward.1} parent=11 // pred_fallthru
        _
      // Predicated region
      $region33: #{kanazawa_forward.1} parent=11 // pred_check
        %p221 = pneg %p165
      $region34: #{kanazawa_forward.1} parent=11 // pred_check_branch
        %223 = sbr.rel (%p221) target = $region36
      $region35: #{kanazawa_forward.1} parent=11 // pred_region
        _
      $region36: #{kanazawa_forward.1} parent=11 // pred_fallthru
        _
    $region12: #{kanazawa_forward.1} parent=5 // pred_fallthru
      _
    %p224 = scmp.lt.s32.totalorder %s13, 2
    // Predicated region
    $region37: #{kanazawa_forward.1} parent=5 // pred_check
      %p225 = pneg %p224
    $region38: #{kanazawa_forward.1} parent=5 // pred_check_branch
      %227 = sbr.rel (%p225) target = $region40
    $region39: #{kanazawa_forward.1} parent=5 // pred_region
      // Predicated region
      $region41: #{kanazawa_forward.1} parent=39 // pred_check
        %p228 = pneg %p33
      $region42: #{kanazawa_forward.1} parent=39 // pred_check_branch
        %230 = sbr.rel (%p228) target = $region44
      $region43: #{kanazawa_forward.1} parent=39 // pred_region
        %p231 = scmp.lt.s32.totalorder %s13, 1
        %s232 = scalar_select %p231, %s13, 1
        %s233 = smul.addr %s232, 8
        %s234 = smul.addr %s233, 4
        %s235 = scalar_lea.vmem %s0, %s234
      $region44: #{kanazawa_forward.1} parent=39 // pred_fallthru
        _
    $region40: #{kanazawa_forward.1} parent=5 // pred_fallthru
      _
    %p236 = scmp.le.s32.totalorder 1, %s13
    %p237 = scmp.lt.s32.totalorder %s13, 3
    %p238 = pnand %p236, %p237
    %p239 = pneg %p238
    // Predicated region
    $region45: #{kanazawa_forward.1} parent=5 // pred_check
      _
    $region46: #{kanazawa_forward.1} parent=5 // pred_check_branch
      %241 = sbr.rel (%p238) target = $region48
    $region47: #{kanazawa_forward.1} parent=5 // pred_region
      %s242 = ssub.s32 %s13, 1
      %p243 = scmp.lt.s32.totalorder %s18, 1
      %s244 = scalar_select %p243, %s18, 1
      %s245 = smul.addr %s244, 8
      %s246 = smul.addr %s245, 4
      %s247 = scalar_lea.vmem %s0, %s246
      %p248 = pneg %p39
      %p249 = pneg %p36
      %p250 = pneg %p60
      %p251 = pneg %p57
      %p252 = pneg %p81
      %p253 = pneg %p78
      %p254 = pneg %p102
      %p255 = pneg %p99
      %p256 = pneg %p123
      %p257 = pneg %p120
      %p258 = pneg %p144
      %p259 = pneg %p141
      %p260 = pneg %p165
      %p261 = pneg %p162
      %p262 = pneg %p191
      %p263 = pneg %p188
      %p264 = scmp.lt.s32.totalorder %s18, 1
      %s265 = scalar_select %p264, %s18, 1
      %s266 = smul.addr %s265, 8
      %s267 = scalar_lea.vmem %s7, %s266
      %p268 = scmp.lt.s32.totalorder %s18, 1
      %s269 = scalar_select %p268, %s18, 1
      %s270 = smul.addr %s269, 8
      %s271 = smul.addr %s270, 4
      %s272 = scalar_lea.vmem %s0, %s271
      %p273 = scmp.lt.s32.totalorder %s18, 1
      %s274 = scalar_select %p273, %s18, 1
      %s275 = smul.addr %s274, 8
      %s276 = scalar_lea.vmem %s7, %s275
      %278 = vst [vmem:[#allocation2] sm:$0xff] 0.0
      %279 = vst [vmem:[#allocation2 + $0x8] sm:$0xff] 0.0
      %280 = vst [vmem:[#allocation2 + $0x10] sm:$0xff] 0.0
      %281 = vst [vmem:[#allocation2 + $0x18] sm:$0xff] 0.0
      %282 = vst [vmem:[#allocation2 + $0x20] sm:$0xff] 0.0
      %283 = vst [vmem:[#allocation2 + $0x28] sm:$0xff] 0.0
      %284 = vst [vmem:[#allocation2 + $0x30] sm:$0xff] 0.0
      %285 = vst [vmem:[#allocation2 + $0x38] sm:$0xff] 0.0
      %286 = vst [vmem:[#allocation2 + $0x40] sm:$0xff] 0.0
      %287 = vst [vmem:[#allocation2 + $0x48] sm:$0xff] 0.0
      %288 = vst [vmem:[#allocation2 + $0x50] sm:$0xff] 0.0
      %289 = vst [vmem:[#allocation2 + $0x58] sm:$0xff] 0.0
      %290 = vst [vmem:[#allocation2 + $0x60] sm:$0xff] 0.0
      %291 = vst [vmem:[#allocation2 + $0x68] sm:$0xff] 0.0
      %292 = vst [vmem:[#allocation2 + $0x70] sm:$0xff] 0.0
      %293 = vst [vmem:[#allocation2 + $0x78] sm:$0xff] 0.0
      %294 = vst [vmem:[#allocation2 + $0x80] sm:$0xff] 0.0
      %295 = vst [vmem:[#allocation2 + $0x88] sm:$0xff] 0.0
      %296 = vst [vmem:[#allocation2 + $0x90] sm:$0xff] 0.0
      %297 = vst [vmem:[#allocation2 + $0x98] sm:$0xff] 0.0
      %298 = vst [vmem:[#allocation2 + $0xa0] sm:$0xff] 0.0
      %299 = vst [vmem:[#allocation2 + $0xa8] sm:$0xff] 0.0
      %300 = vst [vmem:[#allocation2 + $0xb0] sm:$0xff] 0.0
      %301 = vst [vmem:[#allocation2 + $0xb8] sm:$0xff] 0.0
      %302 = vst [vmem:[#allocation2 + $0xc0] sm:$0xff] 0.0
      %303 = vst [vmem:[#allocation2 + $0xc8] sm:$0xff] 0.0
      %304 = vst [vmem:[#allocation2 + $0xd0] sm:$0xff] 0.0
      %305 = vst [vmem:[#allocation2 + $0xd8] sm:$0xff] 0.0
      %306 = vst [vmem:[#allocation2 + $0xe0] sm:$0xff] 0.0
      %307 = vst [vmem:[#allocation2 + $0xe8] sm:$0xff] 0.0
      %308 = vst [vmem:[#allocation2 + $0xf0] sm:$0xff] 0.0
      %309 = vst [vmem:[#allocation2 + $0xf8] sm:$0xff] 0.0
      %310 = vst [vmem:[#allocation2 + $0x100] sm:$0xff] 0.0
      %311 = vst [vmem:[#allocation2 + $0x108] sm:$0xff] 0.0
      %312 = vst [vmem:[#allocation2 + $0x110] sm:$0xff] 0.0
      %313 = vst [vmem:[#allocation2 + $0x118] sm:$0xff] 0.0
      %314 = vst [vmem:[#allocation2 + $0x120] sm:$0xff] 0.0
      %315 = vst [vmem:[#allocation2 + $0x128] sm:$0xff] 0.0
      %316 = vst [vmem:[#allocation2 + $0x130] sm:$0xff] 0.0
      %317 = vst [vmem:[#allocation2 + $0x138] sm:$0xff] 0.0
      %318 = vst [vmem:[#allocation2 + $0x140] sm:$0xff] 0.0
      %319 = vst [vmem:[#allocation2 + $0x148] sm:$0xff] 0.0
      %320 = vst [vmem:[#allocation2 + $0x150] sm:$0xff] 0.0
      %321 = vst [vmem:[#allocation2 + $0x158] sm:$0xff] 0.0
      %322 = vst [vmem:[#allocation2 + $0x160] sm:$0xff] 0.0
      %323 = vst [vmem:[#allocation2 + $0x168] sm:$0xff] 0.0
      %324 = vst [vmem:[#allocation2 + $0x170] sm:$0xff] 0.0
      %325 = vst [vmem:[#allocation2 + $0x178] sm:$0xff] 0.0
      %326 = vst [vmem:[#allocation2 + $0x180] sm:$0xff] 0.0
      %327 = vst [vmem:[#allocation2 + $0x188] sm:$0xff] 0.0
      %328 = vst [vmem:[#allocation2 + $0x190] sm:$0xff] 0.0
      %329 = vst [vmem:[#allocation2 + $0x198] sm:$0xff] 0.0
      %330 = vst [vmem:[#allocation2 + $0x1a0] sm:$0xff] 0.0
      %331 = vst [vmem:[#allocation2 + $0x1a8] sm:$0xff] 0.0
      %332 = vst [vmem:[#allocation2 + $0x1b0] sm:$0xff] 0.0
      %333 = vst [vmem:[#allocation2 + $0x1b8] sm:$0xff] 0.0
      %334 = vst [vmem:[#allocation2 + $0x1c0] sm:$0xff] 0.0
      %335 = vst [vmem:[#allocation2 + $0x1c8] sm:$0xff] 0.0
      %336 = vst [vmem:[#allocation2 + $0x1d0] sm:$0xff] 0.0
      %337 = vst [vmem:[#allocation2 + $0x1d8] sm:$0xff] 0.0
      %338 = vst [vmem:[#allocation2 + $0x1e0] sm:$0xff] 0.0
      %339 = vst [vmem:[#allocation2 + $0x1e8] sm:$0xff] 0.0
      %340 = vst [vmem:[#allocation2 + $0x1f0] sm:$0xff] 0.0
      %341 = vst [vmem:[#allocation2 + $0x1f8] sm:$0xff] 0.0
      %342 = vst [vmem:[#allocation2 + $0x200] sm:$0xff] 0.0
      %343 = vst [vmem:[#allocation2 + $0x208] sm:$0xff] 0.0
      %344 = vst [vmem:[#allocation2 + $0x210] sm:$0xff] 0.0
      %345 = vst [vmem:[#allocation2 + $0x218] sm:$0xff] 0.0
      %346 = vst [vmem:[#allocation2 + $0x220] sm:$0xff] 0.0
      %347 = vst [vmem:[#allocation2 + $0x228] sm:$0xff] 0.0
      %348 = vst [vmem:[#allocation2 + $0x230] sm:$0xff] 0.0
      %349 = vst [vmem:[#allocation2 + $0x238] sm:$0xff] 0.0
      %350 = vst [vmem:[#allocation2 + $0x240] sm:$0xff] 0.0
      %351 = vst [vmem:[#allocation2 + $0x248] sm:$0xff] 0.0
      %352 = vst [vmem:[#allocation2 + $0x250] sm:$0xff] 0.0
      %353 = vst [vmem:[#allocation2 + $0x258] sm:$0xff] 0.0
      %354 = vst [vmem:[#allocation2 + $0x260] sm:$0xff] 0.0
      %355 = vst [vmem:[#allocation2 + $0x268] sm:$0xff] 0.0
      %356 = vst [vmem:[#allocation2 + $0x270] sm:$0xff] 0.0
      %357 = vst [vmem:[#allocation2 + $0x278] sm:$0xff] 0.0
      %358 = vst [vmem:[#allocation2 + $0x280] sm:$0xff] 0.0
      %359 = vst [vmem:[#allocation2 + $0x288] sm:$0xff] 0.0
      %360 = vst [vmem:[#allocation2 + $0x290] sm:$0xff] 0.0
      %361 = vst [vmem:[#allocation2 + $0x298] sm:$0xff] 0.0
      %362 = vst [vmem:[#allocation2 + $0x2a0] sm:$0xff] 0.0
      %363 = vst [vmem:[#allocation2 + $0x2a8] sm:$0xff] 0.0
      %364 = vst [vmem:[#allocation2 + $0x2b0] sm:$0xff] 0.0
      %365 = vst [vmem:[#allocation2 + $0x2b8] sm:$0xff] 0.0
      %366 = vst [vmem:[#allocation2 + $0x2c0] sm:$0xff] 0.0
      %367 = vst [vmem:[#allocation2 + $0x2c8] sm:$0xff] 0.0
      %368 = vst [vmem:[#allocation2 + $0x2d0] sm:$0xff] 0.0
      %369 = vst [vmem:[#allocation2 + $0x2d8] sm:$0xff] 0.0
      %370 = vst [vmem:[#allocation2 + $0x2e0] sm:$0xff] 0.0
      %371 = vst [vmem:[#allocation2 + $0x2e8] sm:$0xff] 0.0
      %372 = vst [vmem:[#allocation2 + $0x2f0] sm:$0xff] 0.0
      %373 = vst [vmem:[#allocation2 + $0x2f8] sm:$0xff] 0.0
      %374 = vst [vmem:[#allocation2 + $0x300] sm:$0xff] 0.0
      %375 = vst [vmem:[#allocation2 + $0x308] sm:$0xff] 0.0
      %376 = vst [vmem:[#allocation2 + $0x310] sm:$0xff] 0.0
      %377 = vst [vmem:[#allocation2 + $0x318] sm:$0xff] 0.0
      %378 = vst [vmem:[#allocation2 + $0x320] sm:$0xff] 0.0
      %379 = vst [vmem:[#allocation2 + $0x328] sm:$0xff] 0.0
      %380 = vst [vmem:[#allocation2 + $0x330] sm:$0xff] 0.0
      %381 = vst [vmem:[#allocation2 + $0x338] sm:$0xff] 0.0
      %382 = vst [vmem:[#allocation2 + $0x340] sm:$0xff] 0.0
      %383 = vst [vmem:[#allocation2 + $0x348] sm:$0xff] 0.0
      %384 = vst [vmem:[#allocation2 + $0x350] sm:$0xff] 0.0
      %385 = vst [vmem:[#allocation2 + $0x358] sm:$0xff] 0.0
      %386 = vst [vmem:[#allocation2 + $0x360] sm:$0xff] 0.0
      %387 = vst [vmem:[#allocation2 + $0x368] sm:$0xff] 0.0
      %388 = vst [vmem:[#allocation2 + $0x370] sm:$0xff] 0.0
      %389 = vst [vmem:[#allocation2 + $0x378] sm:$0xff] 0.0
      %390 = vst [vmem:[#allocation2 + $0x380] sm:$0xff] 0.0
      %391 = vst [vmem:[#allocation2 + $0x388] sm:$0xff] 0.0
      %392 = vst [vmem:[#allocation2 + $0x390] sm:$0xff] 0.0
      %393 = vst [vmem:[#allocation2 + $0x398] sm:$0xff] 0.0
      %394 = vst [vmem:[#allocation2 + $0x3a0] sm:$0xff] 0.0
      %395 = vst [vmem:[#allocation2 + $0x3a8] sm:$0xff] 0.0
      %396 = vst [vmem:[#allocation2 + $0x3b0] sm:$0xff] 0.0
      %397 = vst [vmem:[#allocation2 + $0x3b8] sm:$0xff] 0.0
      %v398 = vld [vmem:[%s272] sm:$0xf]
      %v399 = vld [vmem:[%s272 + $0x4] sm:$0xf]
      %v400 = vld [vmem:[%s272 + $0x8] sm:$0xf]
      %v401 = vld [vmem:[%s272 + $0xc] sm:$0xf]
      %v402 = vld [vmem:[%s272 + $0x10] sm:$0xf]
      %v403 = vld [vmem:[%s272 + $0x14] sm:$0xf]
      %v404 = vld [vmem:[%s272 + $0x18] sm:$0xf]
      %v405 = vld [vmem:[%s272 + $0x1c] sm:$0xf]
      %v406 = vld [vmem:[%s1] sm:$0xf]
      %v407 = vld [vmem:[%s1 + $0x4] sm:$0xf]
      %v408 = vld [vmem:[%s1 + $0x8] sm:$0xf]
      %v409 = vld [vmem:[%s1 + $0xc] sm:$0xf]
      %v410 = vld [vmem:[%s1 + $0x10] sm:$0xf]
      %v411 = vld [vmem:[%s1 + $0x14] sm:$0xf]
      %v412 = vld [vmem:[%s1 + $0x18] sm:$0xf]
      %v413 = vld [vmem:[%s1 + $0x1c] sm:$0xf]
      %v414 = vld [vmem:[%s1 + $0x20] sm:$0xf]
      %v415 = vld [vmem:[%s1 + $0x24] sm:$0xf]
      %v416 = vld [vmem:[%s1 + $0x28] sm:$0xf]
      %v417 = vld [vmem:[%s1 + $0x2c] sm:$0xf]
      %v418 = vld [vmem:[%s1 + $0x30] sm:$0xf]
      %v419 = vld [vmem:[%s1 + $0x34] sm:$0xf]
      %v420 = vld [vmem:[%s1 + $0x38] sm:$0xf]
      %v421 = vld [vmem:[%s1 + $0x3c] sm:$0xf]
      %v430 = vunpack.c.l.b16 %v398
      %v431 = vunpack.c.l.b16 %v399
      %v432 = vunpack.c.l.b16 %v400
      %v433 = vunpack.c.l.b16 %v401
      %v434 = vunpack.c.l.b16 %v402
      %v435 = vunpack.c.l.b16 %v403
      %v436 = vunpack.c.l.b16 %v404
      %v437 = vunpack.c.l.b16 %v405
      %v438 = vpack.c.b16 %v431, %v430
      %v439 = vpack.c.b16 %v433, %v432
      %v440 = vpack.c.b16 %v435, %v434
      %v441 = vpack.c.b16 %v437, %v436
      %v462 = vunpack.c.l.b16 %v406
      %v463 = vunpack.c.l.b16 %v407
      %v464 = vunpack.c.l.b16 %v408
      %v465 = vunpack.c.l.b16 %v409
      %v466 = vunpack.c.l.b16 %v410
      %v467 = vunpack.c.l.b16 %v411
      %v468 = vunpack.c.l.b16 %v412
      %v469 = vunpack.c.l.b16 %v413
      %v470 = vunpack.c.l.b16 %v414
      %v471 = vunpack.c.l.b16 %v415
      %v472 = vunpack.c.l.b16 %v416
      %v473 = vunpack.c.l.b16 %v417
      %v474 = vunpack.c.l.b16 %v418
      %v475 = vunpack.c.l.b16 %v419
      %v476 = vunpack.c.l.b16 %v420
      %v477 = vunpack.c.l.b16 %v421
      %v478 = vpack.c.b16 %v463, %v462
      %v479 = vpack.c.b16 %v465, %v464
      %v480 = vpack.c.b16 %v467, %v466
      %v481 = vpack.c.b16 %v469, %v468
      %v482 = vpack.c.b16 %v471, %v470
      %v483 = vpack.c.b16 %v473, %v472
      %v484 = vpack.c.b16 %v475, %v474
      %v485 = vpack.c.b16 %v477, %v476
      %494 = vmatprep.subr.bf16.mxu0 0
      %495 = vmatpush1.bf16.msra.mxu0 %v478
      %496 = vmatprep.subr.bf16.mxu0 0
      %497 = vmatpush1.bf16.msra.mxu0 %v479
      %498 = vmatprep.subr.bf16.mxu0 0
      %499 = vmatpush1.bf16.msra.mxu0 %v480
      %500 = vmatprep.subr.bf16.mxu0 0
      %501 = vmatpush1.bf16.msra.mxu0 %v481
      %502 = vmatprep.subr.bf16.mxu0 0
      %503 = vmatpush1.bf16.msra.mxu0 %v482
      %504 = vmatprep.subr.bf16.mxu0 0
      %505 = vmatpush1.bf16.msra.mxu0 %v483
      %506 = vmatprep.subr.bf16.mxu0 0
      %507 = vmatpush1.bf16.msra.mxu0 %v484
      %508 = vmatprep.subr.bf16.mxu0 0
      %509 = vmatpush1.bf16.msra.mxu0 %v485
      %510 = vmatprep.subr.bf16.mxu0 0
      %511 = vmatpush1.bf16.msra.mxu0 0
      %512 = vmatprep.subr.bf16.mxu0 0
      %513 = vmatpush1.bf16.msra.mxu0 0
      %514 = vmatprep.subr.bf16.mxu0 0
      %515 = vmatpush1.bf16.msra.mxu0 0
      %516 = vmatprep.subr.bf16.mxu0 0
      %517 = vmatpush1.bf16.msra.mxu0 0
      %518 = vmatprep.subr.bf16.mxu0 0
      %519 = vmatpush1.bf16.msra.mxu0 0
      %520 = vmatprep.subr.bf16.mxu0 0
      %521 = vmatpush1.bf16.msra.mxu0 0
      %522 = vmatprep.subr.bf16.mxu0 0
      %523 = vmatpush1.bf16.msra.mxu0 0
      %524 = vmatprep.subr.bf16.mxu0 0
      %525 = vmatpush1.bf16.msra.mxu0 0
      %526 = vmatprep.mubr.bf16.mxu0 0
      %527 = vmatmul.mubr.bf16.gmra.mrb[0].mxu0 %v438
      %v528 = vpop.f32.mrb[0].mxu0
      %v529 = vadd.f32 0.0, %v528
      %v530 = vpop.f32.mrb[0].mxu0
      %v531 = vpop.f32.mrb[0].mxu0
      %v532 = vadd.f32 0.0, %v531
      %v533 = vpop.f32.mrb[0].mxu0
      %534 = vmatprep.mubr.bf16.mxu0 0
      %535 = vmatmul.mubr.bf16.gmra.mrb[0].mxu0 %v439
      %v536 = vpop.f32.mrb[0].mxu0
      %v537 = vadd.f32 0.0, %v536
      %v538 = vpop.f32.mrb[0].mxu0
      %v539 = vpop.f32.mrb[0].mxu0
      %v540 = vadd.f32 0.0, %v539
      %v541 = vpop.f32.mrb[0].mxu0
      %542 = vmatprep.mubr.bf16.mxu0 0
      %543 = vmatmul.mubr.bf16.gmra.mrb[0].mxu0 %v440
      %v544 = vpop.f32.mrb[0].mxu0
      %v545 = vadd.f32 0.0, %v544
      %v546 = vpop.f32.mrb[0].mxu0
      %v547 = vpop.f32.mrb[0].mxu0
      %v548 = vadd.f32 0.0, %v547
      %v549 = vpop.f32.mrb[0].mxu0
      %550 = vmatprep.mubr.bf16.mxu0 0
      %551 = vmatmul.mubr.bf16.gmra.mrb[0].mxu0 %v441
      %v552 = vpop.f32.mrb[0].mxu0
      %v553 = vadd.f32 0.0, %v552
      %v554 = vpop.f32.mrb[0].mxu0
      %v555 = vpop.f32.mrb[0].mxu0
      %v556 = vadd.f32 0.0, %v555
      %v557 = vpop.f32.mrb[0].mxu0
      %558 = vdwg.mxu0
      %v559 = vmax.f32 %v529, 0.0
      %v560 = vmax.f32 %v532, 0.0
      %v561 = vmax.f32 %v537, 0.0
      %v562 = vmax.f32 %v540, 0.0
      %v563 = vmax.f32 %v545, 0.0
      %v564 = vmax.f32 %v548, 0.0
      %v565 = vmax.f32 %v553, 0.0
      %v566 = vmax.f32 %v556, 0.0
      %s567 = scalar_lea.vmem [#allocation2], 24
      %568 = vst [vmem:[%s567 + $0x8] sm:$0xff] %v559
      %569 = vst [vmem:[%s567 + $0x20] sm:$0xff] %v560
      %570 = vst [vmem:[%s567 + $0x38] sm:$0xff] %v561
      %571 = vst [vmem:[%s567 + $0x50] sm:$0xff] %v562
      %572 = vst [vmem:[%s567 + $0x68] sm:$0xff] %v563
      %573 = vst [vmem:[%s567 + $0x80] sm:$0xff] %v564
      %574 = vst [vmem:[%s567 + $0x98] sm:$0xff] %v565
      %575 = vst [vmem:[%s567 + $0xb0] sm:$0xff] %v566
      %s576 = scalar_lea.vmem [#allocation2], 264
      %577 = vst [vmem:[%s576 + $0x8] sm:$0xff] %v559
      %578 = vst [vmem:[%s576 + $0x20] sm:$0xff] %v560
      %579 = vst [vmem:[%s576 + $0x38] sm:$0xff] %v561
      %580 = vst [vmem:[%s576 + $0x50] sm:$0xff] %v562
      %581 = vst [vmem:[%s576 + $0x68] sm:$0xff] %v563
      %582 = vst [vmem:[%s576 + $0x80] sm:$0xff] %v564
      %583 = vst [vmem:[%s576 + $0x98] sm:$0xff] %v565
      %584 = vst [vmem:[%s576 + $0xb0] sm:$0xff] %v566
      %s585 = scalar_lea.vmem [#allocation2], 504
      %586 = vst [vmem:[%s585 + $0x8] sm:$0xff] %v559
      %587 = vst [vmem:[%s585 + $0x20] sm:$0xff] %v560
      %588 = vst [vmem:[%s585 + $0x38] sm:$0xff] %v561
      %589 = vst [vmem:[%s585 + $0x50] sm:$0xff] %v562
      %590 = vst [vmem:[%s585 + $0x68] sm:$0xff] %v563
      %591 = vst [vmem:[%s585 + $0x80] sm:$0xff] %v564
      %592 = vst [vmem:[%s585 + $0x98] sm:$0xff] %v565
      %593 = vst [vmem:[%s585 + $0xb0] sm:$0xff] %v566
      %v594 = vld [vmem:[%s2] sm:$0xf]
      %v595 = vld [vmem:[%s2 + $0x4] sm:$0xf]
      %v596 = vld [vmem:[%s2 + $0x8] sm:$0xf]
      %v597 = vld [vmem:[%s2 + $0xc] sm:$0xf]
      %v598 = vld [vmem:[%s2 + $0x10] sm:$0xf]
      %v599 = vld [vmem:[%s2 + $0x14] sm:$0xf]
      %v600 = vld [vmem:[%s2 + $0x18] sm:$0xf]
      %v601 = vld [vmem:[%s2 + $0x1c] sm:$0xf]
      %v602 = vld [vmem:[%s2 + $0x20] sm:$0xf]
      %v603 = vld [vmem:[%s2 + $0x24] sm:$0xf]
      %v604 = vld [vmem:[%s2 + $0x28] sm:$0xf]
      %v605 = vld [vmem:[%s2 + $0x2c] sm:$0xf]
      %v606 = vld [vmem:[%s2 + $0x30] sm:$0xf]
      %v607 = vld [vmem:[%s2 + $0x34] sm:$0xf]
      %v608 = vld [vmem:[%s2 + $0x38] sm:$0xf]
      %v609 = vld [vmem:[%s2 + $0x3c] sm:$0xf]
      %v610 = vld [vmem:[%s2 + $0x40] sm:$0xf]
      %v611 = vld [vmem:[%s2 + $0x44] sm:$0xf]
      %v612 = vld [vmem:[%s2 + $0x48] sm:$0xf]
      %v613 = vld [vmem:[%s2 + $0x4c] sm:$0xf]
      %v614 = vld [vmem:[%s2 + $0x50] sm:$0xf]
      %v615 = vld [vmem:[%s2 + $0x54] sm:$0xf]
      %v616 = vld [vmem:[%s2 + $0x58] sm:$0xf]
      %v617 = vld [vmem:[%s2 + $0x5c] sm:$0xf]
      %v618 = vld [vmem:[%s2 + $0x60] sm:$0xf]
      %v619 = vld [vmem:[%s2 + $0x64] sm:$0xf]
      %v620 = vld [vmem:[%s2 + $0x68] sm:$0xf]
      %v621 = vld [vmem:[%s2 + $0x6c] sm:$0xf]
      %v622 = vld [vmem:[%s2 + $0x70] sm:$0xf]
      %v623 = vld [vmem:[%s2 + $0x74] sm:$0xf]
      %v624 = vld [vmem:[%s2 + $0x78] sm:$0xf]
      %v625 = vld [vmem:[%s2 + $0x7c] sm:$0xf]
      %v626 = vld [vmem:[%s2 + $0x80] sm:$0xf]
      %v627 = vld [vmem:[%s2 + $0x84] sm:$0xf]
      %v628 = vld [vmem:[%s2 + $0x88] sm:$0xf]
      %v629 = vld [vmem:[%s2 + $0x8c] sm:$0xf]
      %v630 = vld [vmem:[%s2 + $0x90] sm:$0xf]
      %v631 = vld [vmem:[%s2 + $0x94] sm:$0xf]
      %v632 = vld [vmem:[%s2 + $0x98] sm:$0xf]
      %v633 = vld [vmem:[%s2 + $0x9c] sm:$0xf]
      %v634 = vld [vmem:[%s2 + $0xa0] sm:$0xf]
      %v635 = vld [vmem:[%s2 + $0xa4] sm:$0xf]
      %v636 = vld [vmem:[%s2 + $0xa8] sm:$0xf]
      %v637 = vld [vmem:[%s2 + $0xac] sm:$0xf]
      %v638 = vld [vmem:[%s2 + $0xb0] sm:$0xf]
      %v639 = vld [vmem:[%s2 + $0xb4] sm:$0xf]
      %v640 = vld [vmem:[%s2 + $0xb8] sm:$0xf]
      %v641 = vld [vmem:[%s2 + $0xbc] sm:$0xf]
      %v642 = vld [vmem:[%s2 + $0xc0] sm:$0xf]
      %v643 = vld [vmem:[%s2 + $0xc4] sm:$0xf]
      %v644 = vld [vmem:[%s2 + $0xc8] sm:$0xf]
      %v645 = vld [vmem:[%s2 + $0xcc] sm:$0xf]
      %v646 = vld [vmem:[%s2 + $0xd0] sm:$0xf]
      %v647 = vld [vmem:[%s2 + $0xd4] sm:$0xf]
      %v648 = vld [vmem:[%s2 + $0xd8] sm:$0xf]
      %v649 = vld [vmem:[%s2 + $0xdc] sm:$0xf]
      %v650 = vld [vmem:[%s2 + $0xe0] sm:$0xf]
      %v651 = vld [vmem:[%s2 + $0xe4] sm:$0xf]
      %v652 = vld [vmem:[%s2 + $0xe8] sm:$0xf]
      %v653 = vld [vmem:[%s2 + $0xec] sm:$0xf]
      %v654 = vld [vmem:[%s2 + $0xf0] sm:$0xf]
      %v655 = vld [vmem:[%s2 + $0xf4] sm:$0xf]
      %v656 = vld [vmem:[%s2 + $0xf8] sm:$0xf]
      %v657 = vld [vmem:[%s2 + $0xfc] sm:$0xf]
      %v658 = vld [vmem:[%s2 + $0x100] sm:$0xf]
      %v659 = vld [vmem:[%s2 + $0x104] sm:$0xf]
      %v660 = vld [vmem:[%s2 + $0x108] sm:$0xf]
      %v661 = vld [vmem:[%s2 + $0x10c] sm:$0xf]
      %v662 = vld [vmem:[%s2 + $0x110] sm:$0xf]
      %v663 = vld [vmem:[%s2 + $0x114] sm:$0xf]
      %v664 = vld [vmem:[%s2 + $0x118] sm:$0xf]
      %v665 = vld [vmem:[%s2 + $0x11c] sm:$0xf]
      %v666 = vld [vmem:[%s2 + $0x120] sm:$0xf]
      %v667 = vld [vmem:[%s2 + $0x124] sm:$0xf]
      %v668 = vld [vmem:[%s2 + $0x128] sm:$0xf]
      %v669 = vld [vmem:[%s2 + $0x12c] sm:$0xf]
      %v670 = vld [vmem:[%s2 + $0x130] sm:$0xf]
      %v671 = vld [vmem:[%s2 + $0x134] sm:$0xf]
      %v672 = vld [vmem:[%s2 + $0x138] sm:$0xf]
      %v673 = vld [vmem:[%s2 + $0x13c] sm:$0xf]
      %v674 = vld [vmem:[%s2 + $0x140] sm:$0xf]
      %v675 = vld [vmem:[%s2 + $0x144] sm:$0xf]
      %v676 = vld [vmem:[%s2 + $0x148] sm:$0xf]
      %v677 = vld [vmem:[%s2 + $0x14c] sm:$0xf]
      %v678 = vld [vmem:[%s2 + $0x150] sm:$0xf]
      %v679 = vld [vmem:[%s2 + $0x154] sm:$0xf]
      %v680 = vld [vmem:[%s2 + $0x158] sm:$0xf]
      %v681 = vld [vmem:[%s2 + $0x15c] sm:$0xf]
      %v682 = vld [vmem:[%s2 + $0x160] sm:$0xf]
      %v683 = vld [vmem:[%s2 + $0x164] sm:$0xf]
      %v684 = vld [vmem:[%s2 + $0x168] sm:$0xf]
      %v685 = vld [vmem:[%s2 + $0x16c] sm:$0xf]
      %v686 = vld [vmem:[%s2 + $0x170] sm:$0xf]
      %v687 = vld [vmem:[%s2 + $0x174] sm:$0xf]
      %v688 = vld [vmem:[%s2 + $0x178] sm:$0xf]
      %v689 = vld [vmem:[%s2 + $0x17c] sm:$0xf]
      %v690 = vld [vmem:[%s2 + $0x180] sm:$0xf]
      %v691 = vld [vmem:[%s2 + $0x184] sm:$0xf]
      %v692 = vld [vmem:[%s2 + $0x188] sm:$0xf]
      %v693 = vld [vmem:[%s2 + $0x18c] sm:$0xf]
      %v694 = vld [vmem:[%s2 + $0x190] sm:$0xf]
      %v695 = vld [vmem:[%s2 + $0x194] sm:$0xf]
      %v696 = vld [vmem:[%s2 + $0x198] sm:$0xf]
      %v697 = vld [vmem:[%s2 + $0x19c] sm:$0xf]
      %v698 = vld [vmem:[%s2 + $0x1a0] sm:$0xf]
      %v699 = vld [vmem:[%s2 + $0x1a4] sm:$0xf]
      %v700 = vld [vmem:[%s2 + $0x1a8] sm:$0xf]
      %v701 = vld [vmem:[%s2 + $0x1ac] sm:$0xf]
      %v702 = vld [vmem:[%s2 + $0x1b0] sm:$0xf]
      %v703 = vld [vmem:[%s2 + $0x1b4] sm:$0xf]
      %v704 = vld [vmem:[%s2 + $0x1b8] sm:$0xf]
      %v705 = vld [vmem:[%s2 + $0x1bc] sm:$0xf]
      %v706 = vld [vmem:[%s2 + $0x1c0] sm:$0xf]
      %v707 = vld [vmem:[%s2 + $0x1c4] sm:$0xf]
      %v708 = vld [vmem:[%s2 + $0x1c8] sm:$0xf]
      %v709 = vld [vmem:[%s2 + $0x1cc] sm:$0xf]
      %v710 = vld [vmem:[%s2 + $0x1d0] sm:$0xf]
      %v711 = vld [vmem:[%s2 + $0x1d4] sm:$0xf]
      %v712 = vld [vmem:[%s2 + $0x1d8] sm:$0xf]
      %v713 = vld [vmem:[%s2 + $0x1dc] sm:$0xf]
      %v714 = vld [vmem:[%s2 + $0x1e0] sm:$0xf]
      %v715 = vld [vmem:[%s2 + $0x1e4] sm:$0xf]
      %v716 = vld [vmem:[%s2 + $0x1e8] sm:$0xf]
      %v717 = vld [vmem:[%s2 + $0x1ec] sm:$0xf]
      %v718 = vld [vmem:[%s2 + $0x1f0] sm:$0xf]
      %v719 = vld [vmem:[%s2 + $0x1f4] sm:$0xf]
      %v720 = vld [vmem:[%s2 + $0x1f8] sm:$0xf]
      %v721 = vld [vmem:[%s2 + $0x1fc] sm:$0xf]
      %v722 = vld [vmem:[%s2 + $0x200] sm:$0xf]
      %v723 = vld [vmem:[%s2 + $0x204] sm:$0xf]
      %v724 = vld [vmem:[%s2 + $0x208] sm:$0xf]
      %v725 = vld [vmem:[%s2 + $0x20c] sm:$0xf]
      %v726 = vld [vmem:[%s2 + $0x210] sm:$0xf]
      %v727 = vld [vmem:[%s2 + $0x214] sm:$0xf]
      %v728 = vld [vmem:[%s2 + $0x218] sm:$0xf]
      %v729 = vld [vmem:[%s2 + $0x21c] sm:$0xf]
      %v730 = vld [vmem:[%s2 + $0x220] sm:$0xf]
      %v731 = vld [vmem:[%s2 + $0x224] sm:$0xf]
      %v732 = vld [vmem:[%s2 + $0x228] sm:$0xf]
      %v733 = vld [vmem:[%s2 + $0x22c] sm:$0xf]
      %v734 = vld [vmem:[%s2 + $0x230] sm:$0xf]
      %v735 = vld [vmem:[%s2 + $0x234] sm:$0xf]
      %v736 = vld [vmem:[%s2 + $0x238] sm:$0xf]
      %v737 = vld [vmem:[%s2 + $0x23c] sm:$0xf]
      %v738 = vld [vmem:[%s2 + $0x240] sm:$0xf]
      %v739 = vld [vmem:[%s2 + $0x244] sm:$0xf]
      %v740 = vld [vmem:[%s2 + $0x248] sm:$0xf]
      %v741 = vld [vmem:[%s2 + $0x24c] sm:$0xf]
      %v742 = vld [vmem:[%s2 + $0x250] sm:$0xf]
      %v743 = vld [vmem:[%s2 + $0x254] sm:$0xf]
      %v744 = vld [vmem:[%s2 + $0x258] sm:$0xf]
      %v745 = vld [vmem:[%s2 + $0x25c] sm:$0xf]
      %v746 = vld [vmem:[%s2 + $0x260] sm:$0xf]
      %v747 = vld [vmem:[%s2 + $0x264] sm:$0xf]
      %v748 = vld [vmem:[%s2 + $0x268] sm:$0xf]
      %v749 = vld [vmem:[%s2 + $0x26c] sm:$0xf]
      %v750 = vld [vmem:[%s2 + $0x270] sm:$0xf]
      %v751 = vld [vmem:[%s2 + $0x274] sm:$0xf]
      %v752 = vld [vmem:[%s2 + $0x278] sm:$0xf]
      %v753 = vld [vmem:[%s2 + $0x27c] sm:$0xf]
      %v754 = vld [vmem:[%s2 + $0x280] sm:$0xf]
      %v755 = vld [vmem:[%s2 + $0x284] sm:$0xf]
      %v756 = vld [vmem:[%s2 + $0x288] sm:$0xf]
      %v757 = vld [vmem:[%s2 + $0x28c] sm:$0xf]
      %v758 = vld [vmem:[%s2 + $0x290] sm:$0xf]
      %v759 = vld [vmem:[%s2 + $0x294] sm:$0xf]
      %v760 = vld [vmem:[%s2 + $0x298] sm:$0xf]
      %v761 = vld [vmem:[%s2 + $0x29c] sm:$0xf]
      %v762 = vld [vmem:[%s2 + $0x2a0] sm:$0xf]
      %v763 = vld [vmem:[%s2 + $0x2a4] sm:$0xf]
      %v764 = vld [vmem:[%s2 + $0x2a8] sm:$0xf]
      %v765 = vld [vmem:[%s2 + $0x2ac] sm:$0xf]
      %v766 = vld [vmem:[%s2 + $0x2b0] sm:$0xf]
      %v767 = vld [vmem:[%s2 + $0x2b4] sm:$0xf]
      %v768 = vld [vmem:[%s2 + $0x2b8] sm:$0xf]
      %v769 = vld [vmem:[%s2 + $0x2bc] sm:$0xf]
      %v770 = vld [vmem:[%s2 + $0x2c0] sm:$0xf]
      %v771 = vld [vmem:[%s2 + $0x2c4] sm:$0xf]
      %v772 = vld [vmem:[%s2 + $0x2c8] sm:$0xf]
      %v773 = vld [vmem:[%s2 + $0x2cc] sm:$0xf]
      %v774 = vld [vmem:[%s2 + $0x2d0] sm:$0xf]
      %v775 = vld [vmem:[%s2 + $0x2d4] sm:$0xf]
      %v776 = vld [vmem:[%s2 + $0x2d8] sm:$0xf]
      %v777 = vld [vmem:[%s2 + $0x2dc] sm:$0xf]
      %v778 = vld [vmem:[%s2 + $0x2e0] sm:$0xf]
      %v779 = vld [vmem:[%s2 + $0x2e4] sm:$0xf]
      %v780 = vld [vmem:[%s2 + $0x2e8] sm:$0xf]
      %v781 = vld [vmem:[%s2 + $0x2ec] sm:$0xf]
      %v782 = vld [vmem:[%s2 + $0x2f0] sm:$0xf]
      %v783 = vld [vmem:[%s2 + $0x2f4] sm:$0xf]
      %v784 = vld [vmem:[%s2 + $0x2f8] sm:$0xf]
      %v785 = vld [vmem:[%s2 + $0x2fc] sm:$0xf]
      %v786 = vld [vmem:[%s2 + $0x300] sm:$0xf]
      %v787 = vld [vmem:[%s2 + $0x304] sm:$0xf]
      %v788 = vld [vmem:[%s2 + $0x308] sm:$0xf]
      %v789 = vld [vmem:[%s2 + $0x30c] sm:$0xf]
      %v790 = vld [vmem:[%s2 + $0x310] sm:$0xf]
      %v791 = vld [vmem:[%s2 + $0x314] sm:$0xf]
      %v792 = vld [vmem:[%s2 + $0x318] sm:$0xf]
      %v793 = vld [vmem:[%s2 + $0x31c] sm:$0xf]
      %v794 = vld [vmem:[%s2 + $0x320] sm:$0xf]
      %v795 = vld [vmem:[%s2 + $0x324] sm:$0xf]
      %v796 = vld [vmem:[%s2 + $0x328] sm:$0xf]
      %v797 = vld [vmem:[%s2 + $0x32c] sm:$0xf]
      %v798 = vld [vmem:[%s2 + $0x330] sm:$0xf]
      %v799 = vld [vmem:[%s2 + $0x334] sm:$0xf]
      %v800 = vld [vmem:[%s2 + $0x338] sm:$0xf]
      %v801 = vld [vmem:[%s2 + $0x33c] sm:$0xf]
      %v802 = vld [vmem:[%s2 + $0x340] sm:$0xf]
      %v803 = vld [vmem:[%s2 + $0x344] sm:$0xf]
      %v804 = vld [vmem:[%s2 + $0x348] sm:$0xf]
      %v805 = vld [vmem:[%s2 + $0x34c] sm:$0xf]
      %v806 = vld [vmem:[%s2 + $0x350] sm:$0xf]
      %v807 = vld [vmem:[%s2 + $0x354] sm:$0xf]
      %v808 = vld [vmem:[%s2 + $0x358] sm:$0xf]
      %v809 = vld [vmem:[%s2 + $0x35c] sm:$0xf]
      %v810 = vld [vmem:[%s2 + $0x360] sm:$0xf]
      %v811 = vld [vmem:[%s2 + $0x364] sm:$0xf]
      %v812 = vld [vmem:[%s2 + $0x368] sm:$0xf]
      %v813 = vld [vmem:[%s2 + $0x36c] sm:$0xf]
      %v814 = vld [vmem:[%s2 + $0x370] sm:$0xf]
      %v815 = vld [vmem:[%s2 + $0x374] sm:$0xf]
      %v816 = vld [vmem:[%s2 + $0x378] sm:$0xf]
      %v817 = vld [vmem:[%s2 + $0x37c] sm:$0xf]
      %v818 = vld [vmem:[%s2 + $0x380] sm:$0xf]
      %v819 = vld [vmem:[%s2 + $0x384] sm:$0xf]
      %v820 = vld [vmem:[%s2 + $0x388] sm:$0xf]
      %v821 = vld [vmem:[%s2 + $0x38c] sm:$0xf]
      %v822 = vld [vmem:[%s2 + $0x390] sm:$0xf]
      %v823 = vld [vmem:[%s2 + $0x394] sm:$0xf]
      %v824 = vld [vmem:[%s2 + $0x398] sm:$0xf]
      %v825 = vld [vmem:[%s2 + $0x39c] sm:$0xf]
      %v826 = vld [vmem:[%s2 + $0x3a0] sm:$0xf]
      %v827 = vld [vmem:[%s2 + $0x3a4] sm:$0xf]
      %v828 = vld [vmem:[%s2 + $0x3a8] sm:$0xf]
      %v829 = vld [vmem:[%s2 + $0x3ac] sm:$0xf]
      %v830 = vld [vmem:[%s2 + $0x3b0] sm:$0xf]
      %v831 = vld [vmem:[%s2 + $0x3b4] sm:$0xf]
      %v832 = vld [vmem:[%s2 + $0x3b8] sm:$0xf]
      %v833 = vld [vmem:[%s2 + $0x3bc] sm:$0xf]
      %v834 = vld [vmem:[%s2 + $0x3c0] sm:$0xf]
      %v835 = vld [vmem:[%s2 + $0x3c4] sm:$0xf]
      %v836 = vld [vmem:[%s2 + $0x3c8] sm:$0xf]
      %v837 = vld [vmem:[%s2 + $0x3cc] sm:$0xf]
      %v838 = vld [vmem:[%s2 + $0x3d0] sm:$0xf]
      %v839 = vld [vmem:[%s2 + $0x3d4] sm:$0xf]
      %v840 = vld [vmem:[%s2 + $0x3d8] sm:$0xf]
      %v841 = vld [vmem:[%s2 + $0x3dc] sm:$0xf]
      %v842 = vld [vmem:[%s2 + $0x3e0] sm:$0xf]
      %v843 = vld [vmem:[%s2 + $0x3e4] sm:$0xf]
      %v844 = vld [vmem:[%s2 + $0x3e8] sm:$0xf]
      %v845 = vld [vmem:[%s2 + $0x3ec] sm:$0xf]
      %v846 = vld [vmem:[%s2 + $0x3f0] sm:$0xf]
      %v847 = vld [vmem:[%s2 + $0x3f4] sm:$0xf]
      %v848 = vld [vmem:[%s2 + $0x3f8] sm:$0xf]
      %v849 = vld [vmem:[%s2 + $0x3fc] sm:$0xf]
      %v850 = vld [vmem:[%s2 + $0x400] sm:$0xf]
      %v851 = vld [vmem:[%s2 + $0x404] sm:$0xf]
      %v852 = vld [vmem:[%s2 + $0x408] sm:$0xf]
      %v853 = vld [vmem:[%s2 + $0x40c] sm:$0xf]
      %v854 = vld [vmem:[%s2 + $0x410] sm:$0xf]
      %v855 = vld [vmem:[%s2 + $0x414] sm:$0xf]
      %v856 = vld [vmem:[%s2 + $0x418] sm:$0xf]
      %v857 = vld [vmem:[%s2 + $0x41c] sm:$0xf]
      %v858 = vld [vmem:[%s2 + $0x420] sm:$0xf]
      %v859 = vld [vmem:[%s2 + $0x424] sm:$0xf]
      %v860 = vld [vmem:[%s2 + $0x428] sm:$0xf]
      %v861 = vld [vmem:[%s2 + $0x42c] sm:$0xf]
      %v862 = vld [vmem:[%s2 + $0x430] sm:$0xf]
      %v863 = vld [vmem:[%s2 + $0x434] sm:$0xf]
      %v864 = vld [vmem:[%s2 + $0x438] sm:$0xf]
      %v865 = vld [vmem:[%s2 + $0x43c] sm:$0xf]
      %v866 = vld [vmem:[%s2 + $0x440] sm:$0xf]
      %v867 = vld [vmem:[%s2 + $0x444] sm:$0xf]
      %v868 = vld [vmem:[%s2 + $0x448] sm:$0xf]
      %v869 = vld [vmem:[%s2 + $0x44c] sm:$0xf]
      %v870 = vld [vmem:[%s2 + $0x450] sm:$0xf]
      %v871 = vld [vmem:[%s2 + $0x454] sm:$0xf]
      %v872 = vld [vmem:[%s2 + $0x458] sm:$0xf]
      %v873 = vld [vmem:[%s2 + $0x45c] sm:$0xf]
      %v874 = vld [vmem:[%s2 + $0x460] sm:$0xf]
      %v875 = vld [vmem:[%s2 + $0x464] sm:$0xf]
      %v876 = vld [vmem:[%s2 + $0x468] sm:$0xf]
      %v877 = vld [vmem:[%s2 + $0x46c] sm:$0xf]
      %v878 = vld [vmem:[%s2 + $0x470] sm:$0xf]
      %v879 = vld [vmem:[%s2 + $0x474] sm:$0xf]
      %v880 = vld [vmem:[%s2 + $0x478] sm:$0xf]
      %v881 = vld [vmem:[%s2 + $0x47c] sm:$0xf]
      %v882 = vld [vmem:[#allocation2 + $0x7] sm:$0xff]
      %v883 = vld [vmem:[#allocation2 + $0x1f] sm:$0xff]
      %v884 = vld [vmem:[#allocation2 + $0x37] sm:$0xff]
      %v885 = vld [vmem:[#allocation2 + $0x4f] sm:$0xff]
      %v886 = vld [vmem:[#allocation2 + $0x67] sm:$0xff]
      %v887 = vld [vmem:[#allocation2 + $0x7f] sm:$0xff]
      %v888 = vld [vmem:[#allocation2 + $0x97] sm:$0xff]
      %v889 = vld [vmem:[#allocation2 + $0xaf] sm:$0xff]
      %v890 = vld [vmem:[#allocation2 + $0x8] sm:$0xff]
      %v891 = vld [vmem:[#allocation2 + $0x20] sm:$0xff]
      %v892 = vld [vmem:[#allocation2 + $0x38] sm:$0xff]
      %v893 = vld [vmem:[#allocation2 + $0x50] sm:$0xff]
      %v894 = vld [vmem:[#allocation2 + $0x68] sm:$0xff]
      %v895 = vld [vmem:[#allocation2 + $0x80] sm:$0xff]
      %v896 = vld [vmem:[#allocation2 + $0x98] sm:$0xff]
      %v897 = vld [vmem:[#allocation2 + $0xb0] sm:$0xff]
      %v898 = vld [vmem:[#allocation2 + $0x9] sm:$0xff]
      %v899 = vld [vmem:[#allocation2 + $0x21] sm:$0xff]
      %v900 = vld [vmem:[#allocation2 + $0x39] sm:$0xff]
      %v901 = vld [vmem:[#allocation2 + $0x51] sm:$0xff]
      %v902 = vld [vmem:[#allocation2 + $0x69] sm:$0xff]
      %v903 = vld [vmem:[#allocation2 + $0x81] sm:$0xff]
      %v904 = vld [vmem:[#allocation2 + $0x99] sm:$0xff]
      %v905 = vld [vmem:[#allocation2 + $0xb1] sm:$0xff]
      %v906 = vld [vmem:[%s567 + $0x7] sm:$0xff]
      %v907 = vld [vmem:[%s567 + $0x1f] sm:$0xff]
      %v908 = vld [vmem:[%s567 + $0x37] sm:$0xff]
      %v909 = vld [vmem:[%s567 + $0x4f] sm:$0xff]
      %v910 = vld [vmem:[%s567 + $0x67] sm:$0xff]
      %v911 = vld [vmem:[%s567 + $0x7f] sm:$0xff]
      %v912 = vld [vmem:[%s567 + $0x97] sm:$0xff]
      %v913 = vld [vmem:[%s567 + $0xaf] sm:$0xff]
      %v914 = vld [vmem:[%s567 + $0x8] sm:$0xff]
      %v915 = vld [vmem:[%s567 + $0x20] sm:$0xff]
      %v916 = vld [vmem:[%s567 + $0x38] sm:$0xff]
      %v917 = vld [vmem:[%s567 + $0x50] sm:$0xff]
      %v918 = vld [vmem:[%s567 + $0x68] sm:$0xff]
      %v919 = vld [vmem:[%s567 + $0x80] sm:$0xff]
      %v920 = vld [vmem:[%s567 + $0x98] sm:$0xff]
      %v921 = vld [vmem:[%s567 + $0xb0] sm:$0xff]
      %v922 = vld [vmem:[%s567 + $0x9] sm:$0xff]
      %v923 = vld [vmem:[%s567 + $0x21] sm:$0xff]
      %v924 = vld [vmem:[%s567 + $0x39] sm:$0xff]
      %v925 = vld [vmem:[%s567 + $0x51] sm:$0xff]
      %v926 = vld [vmem:[%s567 + $0x69] sm:$0xff]
      %v927 = vld [vmem:[%s567 + $0x81] sm:$0xff]
      %v928 = vld [vmem:[%s567 + $0x99] sm:$0xff]
      %v929 = vld [vmem:[%s567 + $0xb1] sm:$0xff]
      %s930 = scalar_lea.vmem [#allocation2], 48
      %v931 = vld [vmem:[%s930 + $0x7] sm:$0xff]
      %v932 = vld [vmem:[%s930 + $0x1f] sm:$0xff]
      %v933 = vld [vmem:[%s930 + $0x37] sm:$0xff]
      %v934 = vld [vmem:[%s930 + $0x4f] sm:$0xff]
      %v935 = vld [vmem:[%s930 + $0x67] sm:$0xff]
      %v936 = vld [vmem:[%s930 + $0x7f] sm:$0xff]
      %v937 = vld [vmem:[%s930 + $0x97] sm:$0xff]
      %v938 = vld [vmem:[%s930 + $0xaf] sm:$0xff]
      %v939 = vld [vmem:[%s930 + $0x8] sm:$0xff]
      %v940 = vld [vmem:[%s930 + $0x20] sm:$0xff]
      %v941 = vld [vmem:[%s930 + $0x38] sm:$0xff]
      %v942 = vld [vmem:[%s930 + $0x50] sm:$0xff]
      %v943 = vld [vmem:[%s930 + $0x68] sm:$0xff]
      %v944 = vld [vmem:[%s930 + $0x80] sm:$0xff]
      %v945 = vld [vmem:[%s930 + $0x98] sm:$0xff]
      %v946 = vld [vmem:[%s930 + $0xb0] sm:$0xff]
      %v947 = vld [vmem:[%s930 + $0x9] sm:$0xff]
      %v948 = vld [vmem:[%s930 + $0x21] sm:$0xff]
      %v949 = vld [vmem:[%s930 + $0x39] sm:$0xff]
      %v950 = vld [vmem:[%s930 + $0x51] sm:$0xff]
      %v951 = vld [vmem:[%s930 + $0x69] sm:$0xff]
      %v952 = vld [vmem:[%s930 + $0x81] sm:$0xff]
      %v953 = vld [vmem:[%s930 + $0x99] sm:$0xff]
      %v954 = vld [vmem:[%s930 + $0xb1] sm:$0xff]
      %s955 = scalar_lea.vmem [#allocation2], 240
      %v956 = vld [vmem:[%s955 + $0x7] sm:$0xff]
      %v957 = vld [vmem:[%s955 + $0x1f] sm:$0xff]
      %v958 = vld [vmem:[%s955 + $0x37] sm:$0xff]
      %v959 = vld [vmem:[%s955 + $0x4f] sm:$0xff]
      %v960 = vld [vmem:[%s955 + $0x67] sm:$0xff]
      %v961 = vld [vmem:[%s955 + $0x7f] sm:$0xff]
      %v962 = vld [vmem:[%s955 + $0x97] sm:$0xff]
      %v963 = vld [vmem:[%s955 + $0xaf] sm:$0xff]
      %v964 = vld [vmem:[%s955 + $0x8] sm:$0xff]
      %v965 = vld [vmem:[%s955 + $0x20] sm:$0xff]
      %v966 = vld [vmem:[%s955 + $0x38] sm:$0xff]
      %v967 = vld [vmem:[%s955 + $0x50] sm:$0xff]
      %v968 = vld [vmem:[%s955 + $0x68] sm:$0xff]
      %v969 = vld [vmem:[%s955 + $0x80] sm:$0xff]
      %v970 = vld [vmem:[%s955 + $0x98] sm:$0xff]
      %v971 = vld [vmem:[%s955 + $0xb0] sm:$0xff]
      %v972 = vld [vmem:[%s955 + $0x9] sm:$0xff]
      %v973 = vld [vmem:[%s955 + $0x21] sm:$0xff]
      %v974 = vld [vmem:[%s955 + $0x39] sm:$0xff]
      %v975 = vld [vmem:[%s955 + $0x51] sm:$0xff]
      %v976 = vld [vmem:[%s955 + $0x69] sm:$0xff]
      %v977 = vld [vmem:[%s955 + $0x81] sm:$0xff]
      %v978 = vld [vmem:[%s955 + $0x99] sm:$0xff]
      %v979 = vld [vmem:[%s955 + $0xb1] sm:$0xff]
      %v980 = vld [vmem:[%s576 + $0x7] sm:$0xff]
      %v981 = vld [vmem:[%s576 + $0x1f] sm:$0xff]
      %v982 = vld [vmem:[%s576 + $0x37] sm:$0xff]
      %v983 = vld [vmem:[%s576 + $0x4f] sm:$0xff]
      %v984 = vld [vmem:[%s576 + $0x67] sm:$0xff]
      %v985 = vld [vmem:[%s576 + $0x7f] sm:$0xff]
      %v986 = vld [vmem:[%s576 + $0x97] sm:$0xff]
      %v987 = vld [vmem:[%s576 + $0xaf] sm:$0xff]
      %v988 = vld [vmem:[%s576 + $0x8] sm:$0xff]
      %v989 = vld [vmem:[%s576 + $0x20] sm:$0xff]
      %v990 = vld [vmem:[%s576 + $0x38] sm:$0xff]
      %v991 = vld [vmem:[%s576 + $0x50] sm:$0xff]
      %v992 = vld [vmem:[%s576 + $0x68] sm:$0xff]
      %v993 = vld [vmem:[%s576 + $0x80] sm:$0xff]
      %v994 = vld [vmem:[%s576 + $0x98] sm:$0xff]
      %v995 = vld [vmem:[%s576 + $0xb0] sm:$0xff]
      %v996 = vld [vmem:[%s576 + $0x9] sm:$0xff]
      %v997 = vld [vmem:[%s576 + $0x21] sm:$0xff]
      %v998 = vld [vmem:[%s576 + $0x39] sm:$0xff]
      %v999 = vld [vmem:[%s576 + $0x51] sm:$0xff]
      %v1000 = vld [vmem:[%s576 + $0x69] sm:$0xff]
      %v1001 = vld [vmem:[%s576 + $0x81] sm:$0xff]
      %v1002 = vld [vmem:[%s576 + $0x99] sm:$0xff]
      %v1003 = vld [vmem:[%s576 + $0xb1] sm:$0xff]
      %s1004 = scalar_lea.vmem [#allocation2], 288
      %v1005 = vld [vmem:[%s1004 + $0x7] sm:$0xff]
      %v1006 = vld [vmem:[%s1004 + $0x1f] sm:$0xff]
      %v1007 = vld [vmem:[%s1004 + $0x37] sm:$0xff]
      %v1008 = vld [vmem:[%s1004 + $0x4f] sm:$0xff]
      %v1009 = vld [vmem:[%s1004 + $0x67] sm:$0xff]
      %v1010 = vld [vmem:[%s1004 + $0x7f] sm:$0xff]
      %v1011 = vld [vmem:[%s1004 + $0x97] sm:$0xff]
      %v1012 = vld [vmem:[%s1004 + $0xaf] sm:$0xff]
      %v1013 = vld [vmem:[%s1004 + $0x8] sm:$0xff]
      %v1014 = vld [vmem:[%s1004 + $0x20] sm:$0xff]
      %v1015 = vld [vmem:[%s1004 + $0x38] sm:$0xff]
      %v1016 = vld [vmem:[%s1004 + $0x50] sm:$0xff]
      %v1017 = vld [vmem:[%s1004 + $0x68] sm:$0xff]
      %v1018 = vld [vmem:[%s1004 + $0x80] sm:$0xff]
      %v1019 = vld [vmem:[%s1004 + $0x98] sm:$0xff]
      %v1020 = vld [vmem:[%s1004 + $0xb0] sm:$0xff]
      %v1021 = vld [vmem:[%s1004 + $0x9] sm:$0xff]
      %v1022 = vld [vmem:[%s1004 + $0x21] sm:$0xff]
      %v1023 = vld [vmem:[%s1004 + $0x39] sm:$0xff]
      %v1024 = vld [vmem:[%s1004 + $0x51] sm:$0xff]
      %v1025 = vld [vmem:[%s1004 + $0x69] sm:$0xff]
      %v1026 = vld [vmem:[%s1004 + $0x81] sm:$0xff]
      %v1027 = vld [vmem:[%s1004 + $0x99] sm:$0xff]
      %v1028 = vld [vmem:[%s1004 + $0xb1] sm:$0xff]
      %v1029 = vpack.c.bf16 %v883, %v882
      %v1030 = vpack.c.bf16 %v891, %v890
      %v1031 = vpack.c.bf16 %v899, %v898
      %v1032 = vpack.c.bf16 %v907, %v906
      %v1033 = vpack.c.bf16 %v915, %v914
      %v1034 = vpack.c.bf16 %v923, %v922
      %v1035 = vpack.c.bf16 %v932, %v931
      %v1036 = vpack.c.bf16 %v940, %v939
      %v1037 = vpack.c.bf16 %v948, %v947
      %v1038 = vpack.c.bf16 %v957, %v956
      %v1039 = vpack.c.bf16 %v965, %v964
      %v1040 = vpack.c.bf16 %v973, %v972
      %v1041 = vpack.c.bf16 %v981, %v980
      %v1042 = vpack.c.bf16 %v989, %v988
      %v1043 = vpack.c.bf16 %v997, %v996
      %v1044 = vpack.c.bf16 %v1006, %v1005
      %v1045 = vpack.c.bf16 %v1014, %v1013
      %v1046 = vpack.c.bf16 %v1022, %v1021
      %v1047 = vpack.c.bf16 %v885, %v884
      %v1048 = vpack.c.bf16 %v893, %v892
      %v1049 = vpack.c.bf16 %v901, %v900
      %v1050 = vpack.c.bf16 %v909, %v908
      %v1051 = vpack.c.bf16 %v917, %v916
      %v1052 = vpack.c.bf16 %v925, %v924
      %v1053 = vpack.c.bf16 %v934, %v933
      %v1054 = vpack.c.bf16 %v942, %v941
      %v1055 = vpack.c.bf16 %v950, %v949
      %v1056 = vpack.c.bf16 %v959, %v958
      %v1057 = vpack.c.bf16 %v967, %v966
      %v1058 = vpack.c.bf16 %v975, %v974
      %v1059 = vpack.c.bf16 %v983, %v982
      %v1060 = vpack.c.bf16 %v991, %v990
      %v1061 = vpack.c.bf16 %v999, %v998
      %v1062 = vpack.c.bf16 %v1008, %v1007
      %v1063 = vpack.c.bf16 %v1016, %v1015
      %v1064 = vpack.c.bf16 %v1024, %v1023
      %v1065 = vpack.c.bf16 %v887, %v886
      %v1066 = vpack.c.bf16 %v895, %v894
      %v1067 = vpack.c.bf16 %v903, %v902
      %v1068 = vpack.c.bf16 %v911, %v910
      %v1069 = vpack.c.bf16 %v919, %v918
      %v1070 = vpack.c.bf16 %v927, %v926
      %v1071 = vpack.c.bf16 %v936, %v935
      %v1072 = vpack.c.bf16 %v944, %v943
      %v1073 = vpack.c.bf16 %v952, %v951
      %v1074 = vpack.c.bf16 %v961, %v960
      %v1075 = vpack.c.bf16 %v969, %v968
      %v1076 = vpack.c.bf16 %v977, %v976
      %v1077 = vpack.c.bf16 %v985, %v984
      %v1078 = vpack.c.bf16 %v993, %v992
      %v1079 = vpack.c.bf16 %v1001, %v1000
      %v1080 = vpack.c.bf16 %v1010, %v1009
      %v1081 = vpack.c.bf16 %v1018, %v1017
      %v1082 = vpack.c.bf16 %v1026, %v1025
      %v1083 = vpack.c.bf16 %v889, %v888
      %v1084 = vpack.c.bf16 %v897, %v896
      %v1085 = vpack.c.bf16 %v905, %v904
      %v1086 = vpack.c.bf16 %v913, %v912
      %v1087 = vpack.c.bf16 %v921, %v920
      %v1088 = vpack.c.bf16 %v929, %v928
      %v1089 = vpack.c.bf16 %v938, %v937
      %v1090 = vpack.c.bf16 %v946, %v945
      %v1091 = vpack.c.bf16 %v954, %v953
      %v1092 = vpack.c.bf16 %v963, %v962
      %v1093 = vpack.c.bf16 %v971, %v970
      %v1094 = vpack.c.bf16 %v979, %v978
      %v1095 = vpack.c.bf16 %v987, %v986
      %v1096 = vpack.c.bf16 %v995, %v994
      %v1097 = vpack.c.bf16 %v1003, %v1002
      %v1098 = vpack.c.bf16 %v1012, %v1011
      %v1099 = vpack.c.bf16 %v1020, %v1019
      %v1100 = vpack.c.bf16 %v1028, %v1027
      %v1389 = vunpack.c.l.b16 %v594
      %v1390 = vunpack.c.l.b16 %v595
      %v1391 = vunpack.c.l.b16 %v596
      %v1392 = vunpack.c.l.b16 %v597
      %v1393 = vunpack.c.l.b16 %v598
      %v1394 = vunpack.c.l.b16 %v599
      %v1395 = vunpack.c.l.b16 %v600
      %v1396 = vunpack.c.l.b16 %v601
      %v1397 = vunpack.c.l.b16 %v602
      %v1398 = vunpack.c.l.b16 %v603
      %v1399 = vunpack.c.l.b16 %v604
      %v1400 = vunpack.c.l.b16 %v605
      %v1401 = vunpack.c.l.b16 %v606
      %v1402 = vunpack.c.l.b16 %v607
      %v1403 = vunpack.c.l.b16 %v608
      %v1404 = vunpack.c.l.b16 %v609
      %v1405 = vunpack.c.l.b16 %v610
      %v1406 = vunpack.c.l.b16 %v611
      %v1407 = vunpack.c.l.b16 %v612
      %v1408 = vunpack.c.l.b16 %v613
      %v1409 = vunpack.c.l.b16 %v614
      %v1410 = vunpack.c.l.b16 %v615
      %v1411 = vunpack.c.l.b16 %v616
      %v1412 = vunpack.c.l.b16 %v617
      %v1413 = vunpack.c.l.b16 %v618
      %v1414 = vunpack.c.l.b16 %v619
      %v1415 = vunpack.c.l.b16 %v620
      %v1416 = vunpack.c.l.b16 %v621
      %v1417 = vunpack.c.l.b16 %v622
      %v1418 = vunpack.c.l.b16 %v623
      %v1419 = vunpack.c.l.b16 %v624
      %v1420 = vunpack.c.l.b16 %v625
      %v1421 = vunpack.c.l.b16 %v626
      %v1422 = vunpack.c.l.b16 %v627
      %v1423 = vunpack.c.l.b16 %v628
      %v1424 = vunpack.c.l.b16 %v629
      %v1425 = vunpack.c.l.b16 %v630
      %v1426 = vunpack.c.l.b16 %v631
      %v1427 = vunpack.c.l.b16 %v632
      %v1428 = vunpack.c.l.b16 %v633
      %v1429 = vunpack.c.l.b16 %v634
      %v1430 = vunpack.c.l.b16 %v635
      %v1431 = vunpack.c.l.b16 %v636
      %v1432 = vunpack.c.l.b16 %v637
      %v1433 = vunpack.c.l.b16 %v638
      %v1434 = vunpack.c.l.b16 %v639
      %v1435 = vunpack.c.l.b16 %v640
      %v1436 = vunpack.c.l.b16 %v641
      %v1437 = vunpack.c.l.b16 %v642
      %v1438 = vunpack.c.l.b16 %v643
      %v1439 = vunpack.c.l.b16 %v644
      %v1440 = vunpack.c.l.b16 %v645
      %v1441 = vunpack.c.l.b16 %v646
      %v1442 = vunpack.c.l.b16 %v647
      %v1443 = vunpack.c.l.b16 %v648
      %v1444 = vunpack.c.l.b16 %v649
      %v1445 = vunpack.c.l.b16 %v650
      %v1446 = vunpack.c.l.b16 %v651
      %v1447 = vunpack.c.l.b16 %v652
      %v1448 = vunpack.c.l.b16 %v653
      %v1449 = vunpack.c.l.b16 %v654
      %v1450 = vunpack.c.l.b16 %v655
      %v1451 = vunpack.c.l.b16 %v656
      %v1452 = vunpack.c.l.b16 %v657
      %v1453 = vunpack.c.l.b16 %v658
      %v1454 = vunpack.c.l.b16 %v659
      %v1455 = vunpack.c.l.b16 %v660
      %v1456 = vunpack.c.l.b16 %v661
      %v1457 = vunpack.c.l.b16 %v662
      %v1458 = vunpack.c.l.b16 %v663
      %v1459 = vunpack.c.l.b16 %v664
      %v1460 = vunpack.c.l.b16 %v665
      %v1461 = vunpack.c.l.b16 %v666
      %v1462 = vunpack.c.l.b16 %v667
      %v1463 = vunpack.c.l.b16 %v668
      %v1464 = vunpack.c.l.b16 %v669
      %v1465 = vunpack.c.l.b16 %v670
      %v1466 = vunpack.c.l.b16 %v671
      %v1467 = vunpack.c.l.b16 %v672
      %v1468 = vunpack.c.l.b16 %v673
      %v1469 = vunpack.c.l.b16 %v674
      %v1470 = vunpack.c.l.b16 %v675
      %v1471 = vunpack.c.l.b16 %v676
      %v1472 = vunpack.c.l.b16 %v677
      %v1473 = vunpack.c.l.b16 %v678
      %v1474 = vunpack.c.l.b16 %v679
      %v1475 = vunpack.c.l.b16 %v680
      %v1476 = vunpack.c.l.b16 %v681
      %v1477 = vunpack.c.l.b16 %v682
      %v1478 = vunpack.c.l.b16 %v683
      %v1479 = vunpack.c.l.b16 %v684
      %v1480 = vunpack.c.l.b16 %v685
      %v1481 = vunpack.c.l.b16 %v686
      %v1482 = vunpack.c.l.b16 %v687
      %v1483 = vunpack.c.l.b16 %v688
      %v1484 = vunpack.c.l.b16 %v689
      %v1485 = vunpack.c.l.b16 %v690
      %v1486 = vunpack.c.l.b16 %v691
      %v1487 = vunpack.c.l.b16 %v692
      %v1488 = vunpack.c.l.b16 %v693
      %v1489 = vunpack.c.l.b16 %v694
      %v1490 = vunpack.c.l.b16 %v695
      %v1491 = vunpack.c.l.b16 %v696
      %v1492 = vunpack.c.l.b16 %v697
      %v1493 = vunpack.c.l.b16 %v698
      %v1494 = vunpack.c.l.b16 %v699
      %v1495 = vunpack.c.l.b16 %v700
      %v1496 = vunpack.c.l.b16 %v701
      %v1497 = vunpack.c.l.b16 %v702
      %v1498 = vunpack.c.l.b16 %v703
      %v1499 = vunpack.c.l.b16 %v704
      %v1500 = vunpack.c.l.b16 %v705
      %v1501 = vunpack.c.l.b16 %v706
      %v1502 = vunpack.c.l.b16 %v707
      %v1503 = vunpack.c.l.b16 %v708
      %v1504 = vunpack.c.l.b16 %v709
      %v1505 = vunpack.c.l.b16 %v710
      %v1506 = vunpack.c.l.b16 %v711
      %v1507 = vunpack.c.l.b16 %v712
      %v1508 = vunpack.c.l.b16 %v713
      %v1509 = vunpack.c.l.b16 %v714
      %v1510 = vunpack.c.l.b16 %v715
      %v1511 = vunpack.c.l.b16 %v716
      %v1512 = vunpack.c.l.b16 %v717
      %v1513 = vunpack.c.l.b16 %v718
      %v1514 = vunpack.c.l.b16 %v719
      %v1515 = vunpack.c.l.b16 %v720
      %v1516 = vunpack.c.l.b16 %v721
      %v1517 = vunpack.c.l.b16 %v722
      %v1518 = vunpack.c.l.b16 %v723
      %v1519 = vunpack.c.l.b16 %v724
      %v1520 = vunpack.c.l.b16 %v725
      %v1521 = vunpack.c.l.b16 %v726
      %v1522 = vunpack.c.l.b16 %v727
      %v1523 = vunpack.c.l.b16 %v728
      %v1524 = vunpack.c.l.b16 %v729
      %v1525 = vunpack.c.l.b16 %v730
      %v1526 = vunpack.c.l.b16 %v731
      %v1527 = vunpack.c.l.b16 %v732
      %v1528 = vunpack.c.l.b16 %v733
      %v1529 = vunpack.c.l.b16 %v734
      %v1530 = vunpack.c.l.b16 %v735
      %v1531 = vunpack.c.l.b16 %v736
      %v1532 = vunpack.c.l.b16 %v737
      %v1533 = vunpack.c.l.b16 %v738
      %v1534 = vunpack.c.l.b16 %v739
      %v1535 = vunpack.c.l.b16 %v740
      %v1536 = vunpack.c.l.b16 %v741
      %v1537 = vunpack.c.l.b16 %v742
      %v1538 = vunpack.c.l.b16 %v743
      %v1539 = vunpack.c.l.b16 %v744
      %v1540 = vunpack.c.l.b16 %v745
      %v1541 = vunpack.c.l.b16 %v746
      %v1542 = vunpack.c.l.b16 %v747
      %v1543 = vunpack.c.l.b16 %v748
      %v1544 = vunpack.c.l.b16 %v749
      %v1545 = vunpack.c.l.b16 %v750
      %v1546 = vunpack.c.l.b16 %v751
      %v1547 = vunpack.c.l.b16 %v752
      %v1548 = vunpack.c.l.b16 %v753
      %v1549 = vunpack.c.l.b16 %v754
      %v1550 = vunpack.c.l.b16 %v755
      %v1551 = vunpack.c.l.b16 %v756
      %v1552 = vunpack.c.l.b16 %v757
      %v1553 = vunpack.c.l.b16 %v758
      %v1554 = vunpack.c.l.b16 %v759
      %v1555 = vunpack.c.l.b16 %v760
      %v1556 = vunpack.c.l.b16 %v761
      %v1557 = vunpack.c.l.b16 %v762
      %v1558 = vunpack.c.l.b16 %v763
      %v1559 = vunpack.c.l.b16 %v764
      %v1560 = vunpack.c.l.b16 %v765
      %v1561 = vunpack.c.l.b16 %v766
      %v1562 = vunpack.c.l.b16 %v767
      %v1563 = vunpack.c.l.b16 %v768
      %v1564 = vunpack.c.l.b16 %v769
      %v1565 = vunpack.c.l.b16 %v770
      %v1566 = vunpack.c.l.b16 %v771
      %v1567 = vunpack.c.l.b16 %v772
      %v1568 = vunpack.c.l.b16 %v773
      %v1569 = vunpack.c.l.b16 %v774
      %v1570 = vunpack.c.l.b16 %v775
      %v1571 = vunpack.c.l.b16 %v776
      %v1572 = vunpack.c.l.b16 %v777
      %v1573 = vunpack.c.l.b16 %v778
      %v1574 = vunpack.c.l.b16 %v779
      %v1575 = vunpack.c.l.b16 %v780
      %v1576 = vunpack.c.l.b16 %v781
      %v1577 = vunpack.c.l.b16 %v782
      %v1578 = vunpack.c.l.b16 %v783
      %v1579 = vunpack.c.l.b16 %v784
      %v1580 = vunpack.c.l.b16 %v785
      %v1581 = vunpack.c.l.b16 %v786
      %v1582 = vunpack.c.l.b16 %v787
      %v1583 = vunpack.c.l.b16 %v788
      %v1584 = vunpack.c.l.b16 %v789
      %v1585 = vunpack.c.l.b16 %v790
      %v1586 = vunpack.c.l.b16 %v791
      %v1587 = vunpack.c.l.b16 %v792
      %v1588 = vunpack.c.l.b16 %v793
      %v1589 = vunpack.c.l.b16 %v794
      %v1590 = vunpack.c.l.b16 %v795
      %v1591 = vunpack.c.l.b16 %v796
      %v1592 = vunpack.c.l.b16 %v797
      %v1593 = vunpack.c.l.b16 %v798
      %v1594 = vunpack.c.l.b16 %v799
      %v1595 = vunpack.c.l.b16 %v800
      %v1596 = vunpack.c.l.b16 %v801
      %v1597 = vunpack.c.l.b16 %v802
      %v1598 = vunpack.c.l.b16 %v803
      %v1599 = vunpack.c.l.b16 %v804
      %v1600 = vunpack.c.l.b16 %v805
      %v1601 = vunpack.c.l.b16 %v806
      %v1602 = vunpack.c.l.b16 %v807
      %v1603 = vunpack.c.l.b16 %v808
      %v1604 = vunpack.c.l.b16 %v809
      %v1605 = vunpack.c.l.b16 %v810
      %v1606 = vunpack.c.l.b16 %v811
      %v1607 = vunpack.c.l.b16 %v812
      %v1608 = vunpack.c.l.b16 %v813
      %v1609 = vunpack.c.l.b16 %v814
      %v1610 = vunpack.c.l.b16 %v815
      %v1611 = vunpack.c.l.b16 %v816
      %v1612 = vunpack.c.l.b16 %v817
      %v1613 = vunpack.c.l.b16 %v818
      %v1614 = vunpack.c.l.b16 %v819
      %v1615 = vunpack.c.l.b16 %v820
      %v1616 = vunpack.c.l.b16 %v821
      %v1617 = vunpack.c.l.b16 %v822
      %v1618 = vunpack.c.l.b16 %v823
      %v1619 = vunpack.c.l.b16 %v824
      %v1620 = vunpack.c.l.b16 %v825
      %v1621 = vunpack.c.l.b16 %v826
      %v1622 = vunpack.c.l.b16 %v827
      %v1623 = vunpack.c.l.b16 %v828
      %v1624 = vunpack.c.l.b16 %v829
      %v1625 = vunpack.c.l.b16 %v830
      %v1626 = vunpack.c.l.b16 %v831
      %v1627 = vunpack.c.l.b16 %v832
      %v1628 = vunpack.c.l.b16 %v833
      %v1629 = vunpack.c.l.b16 %v834
      %v1630 = vunpack.c.l.b16 %v835
      %v1631 = vunpack.c.l.b16 %v836
      %v1632 = vunpack.c.l.b16 %v837
      %v1633 = vunpack.c.l.b16 %v838
      %v1634 = vunpack.c.l.b16 %v839
      %v1635 = vunpack.c.l.b16 %v840
      %v1636 = vunpack.c.l.b16 %v841
      %v1637 = vunpack.c.l.b16 %v842
      %v1638 = vunpack.c.l.b16 %v843
      %v1639 = vunpack.c.l.b16 %v844
      %v1640 = vunpack.c.l.b16 %v845
      %v1641 = vunpack.c.l.b16 %v846
      %v1642 = vunpack.c.l.b16 %v847
      %v1643 = vunpack.c.l.b16 %v848
      %v1644 = vunpack.c.l.b16 %v849
      %v1645 = vunpack.c.l.b16 %v850
      %v1646 = vunpack.c.l.b16 %v851
      %v1647 = vunpack.c.l.b16 %v852
      %v1648 = vunpack.c.l.b16 %v853
      %v1649 = vunpack.c.l.b16 %v854
      %v1650 = vunpack.c.l.b16 %v855
      %v1651 = vunpack.c.l.b16 %v856
      %v1652 = vunpack.c.l.b16 %v857
      %v1653 = vunpack.c.l.b16 %v858
      %v1654 = vunpack.c.l.b16 %v859
      %v1655 = vunpack.c.l.b16 %v860
      %v1656 = vunpack.c.l.b16 %v861
      %v1657 = vunpack.c.l.b16 %v862
      %v1658 = vunpack.c.l.b16 %v863
      %v1659 = vunpack.c.l.b16 %v864
      %v1660 = vunpack.c.l.b16 %v865
      %v1661 = vunpack.c.l.b16 %v866
      %v1662 = vunpack.c.l.b16 %v867
      %v1663 = vunpack.c.l.b16 %v868
      %v1664 = vunpack.c.l.b16 %v869
      %v1665 = vunpack.c.l.b16 %v870
      %v1666 = vunpack.c.l.b16 %v871
      %v1667 = vunpack.c.l.b16 %v872
      %v1668 = vunpack.c.l.b16 %v873
      %v1669 = vunpack.c.l.b16 %v874
      %v1670 = vunpack.c.l.b16 %v875
      %v1671 = vunpack.c.l.b16 %v876
      %v1672 = vunpack.c.l.b16 %v877
      %v1673 = vunpack.c.l.b16 %v878
      %v1674 = vunpack.c.l.b16 %v879
      %v1675 = vunpack.c.l.b16 %v880
      %v1676 = vunpack.c.l.b16 %v881
      %v1677 = vpack.c.b16 %v1390, %v1389
      %v1678 = vpack.c.b16 %v1392, %v1391
      %v1679 = vpack.c.b16 %v1394, %v1393
      %v1680 = vpack.c.b16 %v1396, %v1395
      %v1681 = vpack.c.b16 %v1398, %v1397
      %v1682 = vpack.c.b16 %v1400, %v1399
      %v1683 = vpack.c.b16 %v1402, %v1401
      %v1684 = vpack.c.b16 %v1404, %v1403
      %v1685 = vpack.c.b16 %v1406, %v1405
      %v1686 = vpack.c.b16 %v1408, %v1407
      %v1687 = vpack.c.b16 %v1410, %v1409
      %v1688 = vpack.c.b16 %v1412, %v1411
      %v1689 = vpack.c.b16 %v1414, %v1413
      %v1690 = vpack.c.b16 %v1416, %v1415
      %v1691 = vpack.c.b16 %v1418, %v1417
      %v1692 = vpack.c.b16 %v1420, %v1419
      %v1693 = vpack.c.b16 %v1422, %v1421
      %v1694 = vpack.c.b16 %v1424, %v1423
      %v1695 = vpack.c.b16 %v1426, %v1425
      %v1696 = vpack.c.b16 %v1428, %v1427
      %v1697 = vpack.c.b16 %v1430, %v1429
      %v1698 = vpack.c.b16 %v1432, %v1431
      %v1699 = vpack.c.b16 %v1434, %v1433
      %v1700 = vpack.c.b16 %v1436, %v1435
      %v1701 = vpack.c.b16 %v1438, %v1437
      %v1702 = vpack.c.b16 %v1440, %v1439
      %v1703 = vpack.c.b16 %v1442, %v1441
      %v1704 = vpack.c.b16 %v1444, %v1443
      %v1705 = vpack.c.b16 %v1446, %v1445
      %v1706 = vpack.c.b16 %v1448, %v1447
      %v1707 = vpack.c.b16 %v1450, %v1449
      %v1708 = vpack.c.b16 %v1452, %v1451
      %v1709 = vpack.c.b16 %v1454, %v1453
      %v1710 = vpack.c.b16 %v1456, %v1455
      %v1711 = vpack.c.b16 %v1458, %v1457
      %v1712 = vpack.c.b16 %v1460, %v1459
      %v1713 = vpack.c.b16 %v1462, %v1461
      %v1714 = vpack.c.b16 %v1464, %v1463
      %v1715 = vpack.c.b16 %v1466, %v1465
      %v1716 = vpack.c.b16 %v1468, %v1467
      %v1717 = vpack.c.b16 %v1470, %v1469
      %v1718 = vpack.c.b16 %v1472, %v1471
      %v1719 = vpack.c.b16 %v1474, %v1473
      %v1720 = vpack.c.b16 %v1476, %v1475
      %v1721 = vpack.c.b16 %v1478, %v1477
      %v1722 = vpack.c.b16 %v1480, %v1479
      %v1723 = vpack.c.b16 %v1482, %v1481
      %v1724 = vpack.c.b16 %v1484, %v1483
      %v1725 = vpack.c.b16 %v1486, %v1485
      %v1726 = vpack.c.b16 %v1488, %v1487
      %v1727 = vpack.c.b16 %v1490, %v1489
      %v1728 = vpack.c.b16 %v1492, %v1491
      %v1729 = vpack.c.b16 %v1494, %v1493
      %v1730 = vpack.c.b16 %v1496, %v1495
      %v1731 = vpack.c.b16 %v1498, %v1497
      %v1732 = vpack.c.b16 %v1500, %v1499
      %v1733 = vpack.c.b16 %v1502, %v1501
      %v1734 = vpack.c.b16 %v1504, %v1503
      %v1735 = vpack.c.b16 %v1506, %v1505
      %v1736 = vpack.c.b16 %v1508, %v1507
      %v1737 = vpack.c.b16 %v1510, %v1509
      %v1738 = vpack.c.b16 %v1512, %v1511
      %v1739 = vpack.c.b16 %v1514, %v1513
      %v1740 = vpack.c.b16 %v1516, %v1515
      %v1741 = vpack.c.b16 %v1518, %v1517
      %v1742 = vpack.c.b16 %v1520, %v1519
      %v1743 = vpack.c.b16 %v1522, %v1521
      %v1744 = vpack.c.b16 %v1524, %v1523
      %v1745 = vpack.c.b16 %v1526, %v1525
      %v1746 = vpack.c.b16 %v1528, %v1527
      %v1747 = vpack.c.b16 %v1530, %v1529
      %v1748 = vpack.c.b16 %v1532, %v1531
      %v1749 = vpack.c.b16 %v1534, %v1533
      %v1750 = vpack.c.b16 %v1536, %v1535
      %v1751 = vpack.c.b16 %v1538, %v1537
      %v1752 = vpack.c.b16 %v1540, %v1539
      %v1753 = vpack.c.b16 %v1542, %v1541
      %v1754 = vpack.c.b16 %v1544, %v1543
      %v1755 = vpack.c.b16 %v1546, %v1545
      %v1756 = vpack.c.b16 %v1548, %v1547
      %v1757 = vpack.c.b16 %v1550, %v1549
      %v1758 = vpack.c.b16 %v1552, %v1551
      %v1759 = vpack.c.b16 %v1554, %v1553
      %v1760 = vpack.c.b16 %v1556, %v1555
      %v1761 = vpack.c.b16 %v1558, %v1557
      %v1762 = vpack.c.b16 %v1560, %v1559
      %v1763 = vpack.c.b16 %v1562, %v1561
      %v1764 = vpack.c.b16 %v1564, %v1563
      %v1765 = vpack.c.b16 %v1566, %v1565
      %v1766 = vpack.c.b16 %v1568, %v1567
      %v1767 = vpack.c.b16 %v1570, %v1569
      %v1768 = vpack.c.b16 %v1572, %v1571
      %v1769 = vpack.c.b16 %v1574, %v1573
      %v1770 = vpack.c.b16 %v1576, %v1575
      %v1771 = vpack.c.b16 %v1578, %v1577
      %v1772 = vpack.c.b16 %v1580, %v1579
      %v1773 = vpack.c.b16 %v1582, %v1581
      %v1774 = vpack.c.b16 %v1584, %v1583
      %v1775 = vpack.c.b16 %v1586, %v1585
      %v1776 = vpack.c.b16 %v1588, %v1587
      %v1777 = vpack.c.b16 %v1590, %v1589
      %v1778 = vpack.c.b16 %v1592, %v1591
      %v1779 = vpack.c.b16 %v1594, %v1593
      %v1780 = vpack.c.b16 %v1596, %v1595
      %v1781 = vpack.c.b16 %v1598, %v1597
      %v1782 = vpack.c.b16 %v1600, %v1599
      %v1783 = vpack.c.b16 %v1602, %v1601
      %v1784 = vpack.c.b16 %v1604, %v1603
      %v1785 = vpack.c.b16 %v1606, %v1605
      %v1786 = vpack.c.b16 %v1608, %v1607
      %v1787 = vpack.c.b16 %v1610, %v1609
      %v1788 = vpack.c.b16 %v1612, %v1611
      %v1789 = vpack.c.b16 %v1614, %v1613
      %v1790 = vpack.c.b16 %v1616, %v1615
      %v1791 = vpack.c.b16 %v1618, %v1617
      %v1792 = vpack.c.b16 %v1620, %v1619
      %v1793 = vpack.c.b16 %v1622, %v1621
      %v1794 = vpack.c.b16 %v1624, %v1623
      %v1795 = vpack.c.b16 %v1626, %v1625
      %v1796 = vpack.c.b16 %v1628, %v1627
      %v1797 = vpack.c.b16 %v1630, %v1629
      %v1798 = vpack.c.b16 %v1632, %v1631
      %v1799 = vpack.c.b16 %v1634, %v1633
      %v1800 = vpack.c.b16 %v1636, %v1635
      %v1801 = vpack.c.b16 %v1638, %v1637
      %v1802 = vpack.c.b16 %v1640, %v1639
      %v1803 = vpack.c.b16 %v1642, %v1641
      %v1804 = vpack.c.b16 %v1644, %v1643
      %v1805 = vpack.c.b16 %v1646, %v1645
      %v1806 = vpack.c.b16 %v1648, %v1647
      %v1807 = vpack.c.b16 %v1650, %v1649
      %v1808 = vpack.c.b16 %v1652, %v1651
      %v1809 = vpack.c.b16 %v1654, %v1653
      %v1810 = vpack.c.b16 %v1656, %v1655
      %v1811 = vpack.c.b16 %v1658, %v1657
      %v1812 = vpack.c.b16 %v1660, %v1659
      %v1813 = vpack.c.b16 %v1662, %v1661
      %v1814 = vpack.c.b16 %v1664, %v1663
      %v1815 = vpack.c.b16 %v1666, %v1665
      %v1816 = vpack.c.b16 %v1668, %v1667
      %v1817 = vpack.c.b16 %v1670, %v1669
      %v1818 = vpack.c.b16 %v1672, %v1671
      %v1819 = vpack.c.b16 %v1674, %v1673
      %v1820 = vpack.c.b16 %v1676, %v1675
      %1965 = vmatprep.subr.bf16.mxu0 0
      %1966 = vmatpush1.bf16.msra.mxu0 %v1677
      %1967 = vmatprep.subr.bf16.mxu0 0
      %1968 = vmatpush1.bf16.msra.mxu0 %v1678
      %1969 = vmatprep.subr.bf16.mxu0 0
      %1970 = vmatpush1.bf16.msra.mxu0 %v1679
      %1971 = vmatprep.subr.bf16.mxu0 0
      %1972 = vmatpush1.bf16.msra.mxu0 %v1680
      %1973 = vmatprep.subr.bf16.mxu0 0
      %1974 = vmatpush1.bf16.msra.mxu0 %v1681
      %1975 = vmatprep.subr.bf16.mxu0 0
      %1976 = vmatpush1.bf16.msra.mxu0 %v1682
      %1977 = vmatprep.subr.bf16.mxu0 0
      %1978 = vmatpush1.bf16.msra.mxu0 %v1683
      %1979 = vmatprep.subr.bf16.mxu0 0
      %1980 = vmatpush1.bf16.msra.mxu0 %v1684
      %1981 = vmatprep.subr.bf16.mxu0 0
      %1982 = vmatpush1.bf16.msra.mxu0 %v1685
      %1983 = vmatprep.subr.bf16.mxu0 0
      %1984 = vmatpush1.bf16.msra.mxu0 %v1686
      %1985 = vmatprep.subr.bf16.mxu0 0
      %1986 = vmatpush1.bf16.msra.mxu0 %v1687
      %1987 = vmatprep.subr.bf16.mxu0 0
      %1988 = vmatpush1.bf16.msra.mxu0 %v1688
      %1989 = vmatprep.subr.bf16.mxu0 0
      %1990 = vmatpush1.bf16.msra.mxu0 %v1689
      %1991 = vmatprep.subr.bf16.mxu0 0
      %1992 = vmatpush1.bf16.msra.mxu0 %v1690
      %1993 = vmatprep.subr.bf16.mxu0 0
      %1994 = vmatpush1.bf16.msra.mxu0 %v1691
      %1995 = vmatprep.subr.bf16.mxu0 0
      %1996 = vmatpush1.bf16.msra.mxu0 %v1692
      %1997 = vmatprep.mubr.bf16.mxu0 %v1030
      %1998 = vmatmul.mubr.bf16.gmra.mrb[0].mxu0 %v1029
      %v1999 = vpop.f32.mrb[0].mxu0
      %v2000 = vadd.f32 0.0, %v1999
      %v2001 = vpop.f32.mrb[0].mxu0
      %v2002 = vpop.f32.mrb[0].mxu0
      %v2003 = vadd.f32 0.0, %v2002
      %v2004 = vpop.f32.mrb[0].mxu0
      %2005 = vmatprep.mubr.bf16.mxu0 %v1048
      %2006 = vmatmul.mubr.bf16.gmra.mrb[0].mxu0 %v1047
      %v2007 = vpop.f32.mrb[0].mxu0
      %v2008 = vadd.f32 0.0, %v2007
      %v2009 = vpop.f32.mrb[0].mxu0
      %v2010 = vpop.f32.mrb[0].mxu0
      %v2011 = vadd.f32 0.0, %v2010
      %v2012 = vpop.f32.mrb[0].mxu0
      %2013 = vmatprep.mubr.bf16.mxu0 %v1066
      %2014 = vmatmul.mubr.bf16.gmra.mrb[0].mxu0 %v1065
      %v2015 = vpop.f32.mrb[0].mxu0
      %v2016 = vadd.f32 0.0, %v2015
      %v2017 = vpop.f32.mrb[0].mxu0
      %v2018 = vpop.f32.mrb[0].mxu0
      %v2019 = vadd.f32 0.0, %v2018
      %v2020 = vpop.f32.mrb[0].mxu0
      %2021 = vmatprep.mubr.bf16.mxu0 %v1084
      %2022 = vmatmul.mubr.bf16.gmra.mrb[0].mxu0 %v1083
      %v2023 = vpop.f32.mrb[0].mxu0
      %v2024 = vadd.f32 0.0, %v2023
      %v2025 = vpop.f32.mrb[0].mxu0
      %v2026 = vpop.f32.mrb[0].mxu0
      %v2027 = vadd.f32 0.0, %v2026
      %v2028 = vpop.f32.mrb[0].mxu0
      %2029 = vdwg.mxu0
      %2030 = vmatprep.subr.bf16.mxu0 0
      %2031 = vmatpush1.bf16.msra.mxu0 %v1693
      %2032 = vmatprep.subr.bf16.mxu0 0
      %2033 = vmatpush1.bf16.msra.mxu0 %v1694
      %2034 = vmatprep.subr.bf16.mxu0 0
      %2035 = vmatpush1.bf16.msra.mxu0 %v1695
      %2036 = vmatprep.subr.bf16.mxu0 0
      %2037 = vmatpush1.bf16.msra.mxu0 %v1696
      %2038 = vmatprep.subr.bf16.mxu0 0
      %2039 = vmatpush1.bf16.msra.mxu0 %v1697
      %2040 = vmatprep.subr.bf16.mxu0 0
      %2041 = vmatpush1.bf16.msra.mxu0 %v1698
      %2042 = vmatprep.subr.bf16.mxu0 0
      %2043 = vmatpush1.bf16.msra.mxu0 %v1699
      %2044 = vmatprep.subr.bf16.mxu0 0
      %2045 = vmatpush1.bf16.msra.mxu0 %v1700
      %2046 = vmatprep.subr.bf16.mxu0 0
      %2047 = vmatpush1.bf16.msra.mxu0 %v1701
      %2048 = vmatprep.subr.bf16.mxu0 0
      %2049 = vmatpush1.bf16.msra.mxu0 %v1702
      %2050 = vmatprep.subr.bf16.mxu0 0
      %2051 = vmatpush1.bf16.msra.mxu0 %v1703
      %2052 = vmatprep.subr.bf16.mxu0 0
      %2053 = vmatpush1.bf16.msra.mxu0 %v1704
      %2054 = vmatprep.subr.bf16.mxu0 0
      %2055 = vmatpush1.bf16.msra.mxu0 %v1705
      %2056 = vmatprep.subr.bf16.mxu0 0
      %2057 = vmatpush1.bf16.msra.mxu0 %v1706
      %2058 = vmatprep.subr.bf16.mxu0 0
      %2059 = vmatpush1.bf16.msra.mxu0 %v1707
      %2060 = vmatprep.subr.bf16.mxu0 0
      %2061 = vmatpush1.bf16.msra.mxu0 %v1708
      %2062 = vmatprep.mubr.bf16.mxu0 %v1032
      %2063 = vmatmul.mubr.bf16.gmra.mrb[0].mxu0 %v1031
      %v2064 = vpop.f32.mrb[0].mxu0
      %v2065 = vadd.f32 %v2000, %v2064
      %v2066 = vpop.f32.mrb[0].mxu0
      %v2067 = vpop.f32.mrb[0].mxu0
      %v2068 = vadd.f32 %v2003, %v2067
      %v2069 = vpop.f32.mrb[0].mxu0
      %2070 = vmatprep.mubr.bf16.mxu0 %v1050
      %2071 = vmatmul.mubr.bf16.gmra.mrb[0].mxu0 %v1049
      %v2072 = vpop.f32.mrb[0].mxu0
      %v2073 = vadd.f32 %v2008, %v2072
      %v2074 = vpop.f32.mrb[0].mxu0
      %v2075 = vpop.f32.mrb[0].mxu0
      %v2076 = vadd.f32 %v2011, %v2075
      %v2077 = vpop.f32.mrb[0].mxu0
      %2078 = vmatprep.mubr.bf16.mxu0 %v1068
      %2079 = vmatmul.mubr.bf16.gmra.mrb[0].mxu0 %v1067
      %v2080 = vpop.f32.mrb[0].mxu0
      %v2081 = vadd.f32 %v2016, %v2080
      %v2082 = vpop.f32.mrb[0].mxu0
      %v2083 = vpop.f32.mrb[0].mxu0
      %v2084 = vadd.f32 %v2019, %v2083
      %v2085 = vpop.f32.mrb[0].mxu0
      %2086 = vmatprep.mubr.bf16.mxu0 %v1086
      %2087 = vmatmul.mubr.bf16.gmra.mrb[0].mxu0 %v1085
      %v2088 = vpop.f32.mrb[0].mxu0
      %v2089 = vadd.f32 %v2024, %v2088
      %v2090 = vpop.f32.mrb[0].mxu0
      %v2091 = vpop.f32.mrb[0].mxu0
      %v2092 = vadd.f32 %v2027, %v2091
      %v2093 = vpop.f32.mrb[0].mxu0
      %2094 = vdwg.mxu0
      %2095 = vmatprep.subr.bf16.mxu0 0
      %2096 = vmatpush1.bf16.msra.mxu0 %v1709
      %2097 = vmatprep.subr.bf16.mxu0 0
      %2098 = vmatpush1.bf16.msra.mxu0 %v1710
      %2099 = vmatprep.subr.bf16.mxu0 0
      %2100 = vmatpush1.bf16.msra.mxu0 %v1711
      %2101 = vmatprep.subr.bf16.mxu0 0
      %2102 = vmatpush1.bf16.msra.mxu0 %v1712
      %2103 = vmatprep.subr.bf16.mxu0 0
      %2104 = vmatpush1.bf16.msra.mxu0 %v1713
      %2105 = vmatprep.subr.bf16.mxu0 0
      %2106 = vmatpush1.bf16.msra.mxu0 %v1714
      %2107 = vmatprep.subr.bf16.mxu0 0
      %2108 = vmatpush1.bf16.msra.mxu0 %v1715
      %2109 = vmatprep.subr.bf16.mxu0 0
      %2110 = vmatpush1.bf16.msra.mxu0 %v1716
      %2111 = vmatprep.subr.bf16.mxu0 0
      %2112 = vmatpush1.bf16.msra.mxu0 %v1717
      %2113 = vmatprep.subr.bf16.mxu0 0
      %2114 = vmatpush1.bf16.msra.mxu0 %v1718
      %2115 = vmatprep.subr.bf16.mxu0 0
      %2116 = vmatpush1.bf16.msra.mxu0 %v1719
      %2117 = vmatprep.subr.bf16.mxu0 0
      %2118 = vmatpush1.bf16.msra.mxu0 %v1720
      %2119 = vmatprep.subr.bf16.mxu0 0
      %2120 = vmatpush1.bf16.msra.mxu0 %v1721
      %2121 = vmatprep.subr.bf16.mxu0 0
      %2122 = vmatpush1.bf16.msra.mxu0 %v1722
      %2123 = vmatprep.subr.bf16.mxu0 0
      %2124 = vmatpush1.bf16.msra.mxu0 %v1723
      %2125 = vmatprep.subr.bf16.mxu0 0
      %2126 = vmatpush1.bf16.msra.mxu0 %v1724
      %2127 = vmatprep.mubr.bf16.mxu0 %v1034
      %2128 = vmatmul.mubr.bf16.gmra.mrb[0].mxu0 %v1033
      %v2129 = vpop.f32.mrb[0].mxu0
      %v2130 = vadd.f32 %v2065, %v2129
      %v2131 = vpop.f32.mrb[0].mxu0
      %v2132 = vpop.f32.mrb[0].mxu0
      %v2133 = vadd.f32 %v2068, %v2132
      %v2134 = vpop.f32.mrb[0].mxu0
      %2135 = vmatprep.mubr.bf16.mxu0 %v1052
      %2136 = vmatmul.mubr.bf16.gmra.mrb[0].mxu0 %v1051
      %v2137 = vpop.f32.mrb[0].mxu0
      %v2138 = vadd.f32 %v2073, %v2137
      %v2139 = vpop.f32.mrb[0].mxu0
      %v2140 = vpop.f32.mrb[0].mxu0
      %v2141 = vadd.f32 %v2076, %v2140
      %v2142 = vpop.f32.mrb[0].mxu0
      %2143 = vmatprep.mubr.bf16.mxu0 %v1070
      %2144 = vmatmul.mubr.bf16.gmra.mrb[0].mxu0 %v1069
      %v2145 = vpop.f32.mrb[0].mxu0
      %v2146 = vadd.f32 %v2081, %v2145
      %v2147 = vpop.f32.mrb[0].mxu0
      %v2148 = vpop.f32.mrb[0].mxu0
      %v2149 = vadd.f32 %v2084, %v2148
      %v2150 = vpop.f32.mrb[0].mxu0
      %2151 = vmatprep.mubr.bf16.mxu0 %v1088
      %2152 = vmatmul.mubr.bf16.gmra.mrb[0].mxu0 %v1087
      %v2153 = vpop.f32.mrb[0].mxu0
      %v2154 = vadd.f32 %v2089, %v2153
      %v2155 = vpop.f32.mrb[0].mxu0
      %v2156 = vpop.f32.mrb[0].mxu0
      %v2157 = vadd.f32 %v2092, %v2156
      %v2158 = vpop.f32.mrb[0].mxu0
      %2159 = vdwg.mxu0
      %2160 = vmatprep.subr.bf16.mxu0 0
      %2161 = vmatpush1.bf16.msra.mxu0 %v1725
      %2162 = vmatprep.subr.bf16.mxu0 0
      %2163 = vmatpush1.bf16.msra.mxu0 %v1726
      %2164 = vmatprep.subr.bf16.mxu0 0
      %2165 = vmatpush1.bf16.msra.mxu0 %v1727
      %2166 = vmatprep.subr.bf16.mxu0 0
      %2167 = vmatpush1.bf16.msra.mxu0 %v1728
      %2168 = vmatprep.subr.bf16.mxu0 0
      %2169 = vmatpush1.bf16.msra.mxu0 %v1729
      %2170 = vmatprep.subr.bf16.mxu0 0
      %2171 = vmatpush1.bf16.msra.mxu0 %v1730
      %2172 = vmatprep.subr.bf16.mxu0 0
      %2173 = vmatpush1.bf16.msra.mxu0 %v1731
      %2174 = vmatprep.subr.bf16.mxu0 0
      %2175 = vmatpush1.bf16.msra.mxu0 %v1732
      %2176 = vmatprep.subr.bf16.mxu0 0
      %2177 = vmatpush1.bf16.msra.mxu0 %v1733
      %2178 = vmatprep.subr.bf16.mxu0 0
      %2179 = vmatpush1.bf16.msra.mxu0 %v1734
      %2180 = vmatprep.subr.bf16.mxu0 0
      %2181 = vmatpush1.bf16.msra.mxu0 %v1735
      %2182 = vmatprep.subr.bf16.mxu0 0
      %2183 = vmatpush1.bf16.msra.mxu0 %v1736
      %2184 = vmatprep.subr.bf16.mxu0 0
      %2185 = vmatpush1.bf16.msra.mxu0 %v1737
      %2186 = vmatprep.subr.bf16.mxu0 0
      %2187 = vmatpush1.bf16.msra.mxu0 %v1738
      %2188 = vmatprep.subr.bf16.mxu0 0
      %2189 = vmatpush1.bf16.msra.mxu0 %v1739
      %2190 = vmatprep.subr.bf16.mxu0 0
      %2191 = vmatpush1.bf16.msra.mxu0 %v1740
      %2192 = vmatprep.mubr.bf16.mxu0 %v1036
      %2193 = vmatmul.mubr.bf16.gmra.mrb[0].mxu0 %v1035
      %v2194 = vpop.f32.mrb[0].mxu0
      %v2195 = vadd.f32 %v2130, %v2194
      %v2196 = vpop.f32.mrb[0].mxu0
      %v2197 = vpop.f32.mrb[0].mxu0
      %v2198 = vadd.f32 %v2133, %v2197
      %v2199 = vpop.f32.mrb[0].mxu0
      %2200 = vmatprep.mubr.bf16.mxu0 %v1054
      %2201 = vmatmul.mubr.bf16.gmra.mrb[0].mxu0 %v1053
      %v2202 = vpop.f32.mrb[0].mxu0
      %v2203 = vadd.f32 %v2138, %v2202
      %v2204 = vpop.f32.mrb[0].mxu0
      %v2205 = vpop.f32.mrb[0].mxu0
      %v2206 = vadd.f32 %v2141, %v2205
      %v2207 = vpop.f32.mrb[0].mxu0
      %2208 = vmatprep.mubr.bf16.mxu0 %v1072
      %2209 = vmatmul.mubr.bf16.gmra.mrb[0].mxu0 %v1071
      %v2210 = vpop.f32.mrb[0].mxu0
      %v2211 = vadd.f32 %v2146, %v2210
      %v2212 = vpop.f32.mrb[0].mxu0
      %v2213 = vpop.f32.mrb[0].mxu0
      %v2214 = vadd.f32 %v2149, %v2213
      %v2215 = vpop.f32.mrb[0].mxu0
      %2216 = vmatprep.mubr.bf16.mxu0 %v1090
      %2217 = vmatmul.mubr.bf16.gmra.mrb[0].mxu0 %v1089
      %v2218 = vpop.f32.mrb[0].mxu0
      %v2219 = vadd.f32 %v2154, %v2218
      %v2220 = vpop.f32.mrb[0].mxu0
      %v2221 = vpop.f32.mrb[0].mxu0
      %v2222 = vadd.f32 %v2157, %v2221
      %v2223 = vpop.f32.mrb[0].mxu0
      %2224 = vdwg.mxu0
      %2225 = vmatprep.subr.bf16.mxu0 0
      %2226 = vmatpush1.bf16.msra.mxu0 %v1741
      %2227 = vmatprep.subr.bf16.mxu0 0
      %2228 = vmatpush1.bf16.msra.mxu0 %v1742
      %2229 = vmatprep.subr.bf16.mxu0 0
      %2230 = vmatpush1.bf16.msra.mxu0 %v1743
      %2231 = vmatprep.subr.bf16.mxu0 0
      %2232 = vmatpush1.bf16.msra.mxu0 %v1744
      %2233 = vmatprep.subr.bf16.mxu0 0
      %2234 = vmatpush1.bf16.msra.mxu0 %v1745
      %2235 = vmatprep.subr.bf16.mxu0 0
      %2236 = vmatpush1.bf16.msra.mxu0 %v1746
      %2237 = vmatprep.subr.bf16.mxu0 0
      %2238 = vmatpush1.bf16.msra.mxu0 %v1747
      %2239 = vmatprep.subr.bf16.mxu0 0
      %2240 = vmatpush1.bf16.msra.mxu0 %v1748
      %2241 = vmatprep.subr.bf16.mxu0 0
      %2242 = vmatpush1.bf16.msra.mxu0 %v1749
      %2243 = vmatprep.subr.bf16.mxu0 0
      %2244 = vmatpush1.bf16.msra.mxu0 %v1750
      %2245 = vmatprep.subr.bf16.mxu0 0
      %2246 = vmatpush1.bf16.msra.mxu0 %v1751
      %2247 = vmatprep.subr.bf16.mxu0 0
      %2248 = vmatpush1.bf16.msra.mxu0 %v1752
      %2249 = vmatprep.subr.bf16.mxu0 0
      %2250 = vmatpush1.bf16.msra.mxu0 %v1753
      %2251 = vmatprep.subr.bf16.mxu0 0
      %2252 = vmatpush1.bf16.msra.mxu0 %v1754
      %2253 = vmatprep.subr.bf16.mxu0 0
      %2254 = vmatpush1.bf16.msra.mxu0 %v1755
      %2255 = vmatprep.subr.bf16.mxu0 0
      %2256 = vmatpush1.bf16.msra.mxu0 %v1756
      %2257 = vmatprep.mubr.bf16.mxu0 %v1038
      %2258 = vmatmul.mubr.bf16.gmra.mrb[0].mxu0 %v1037
      %v2259 = vpop.f32.mrb[0].mxu0
      %v2260 = vadd.f32 %v2195, %v2259
      %v2261 = vpop.f32.mrb[0].mxu0
      %v2262 = vpop.f32.mrb[0].mxu0
      %v2263 = vadd.f32 %v2198, %v2262
      %v2264 = vpop.f32.mrb[0].mxu0
      %2265 = vmatprep.mubr.bf16.mxu0 %v1056
      %2266 = vmatmul.mubr.bf16.gmra.mrb[0].mxu0 %v1055
      %v2267 = vpop.f32.mrb[0].mxu0
      %v2268 = vadd.f32 %v2203, %v2267
      %v2269 = vpop.f32.mrb[0].mxu0
      %v2270 = vpop.f32.mrb[0].mxu0
      %v2271 = vadd.f32 %v2206, %v2270
      %v2272 = vpop.f32.mrb[0].mxu0
      %2273 = vmatprep.mubr.bf16.mxu0 %v1074
      %2274 = vmatmul.mubr.bf16.gmra.mrb[0].mxu0 %v1073
      %v2275 = vpop.f32.mrb[0].mxu0
      %v2276 = vadd.f32 %v2211, %v2275
      %v2277 = vpop.f32.mrb[0].mxu0
      %v2278 = vpop.f32.mrb[0].mxu0
      %v2279 = vadd.f32 %v2214, %v2278
      %v2280 = vpop.f32.mrb[0].mxu0
      %2281 = vmatprep.mubr.bf16.mxu0 %v1092
      %2282 = vmatmul.mubr.bf16.gmra.mrb[0].mxu0 %v1091
      %v2283 = vpop.f32.mrb[0].mxu0
      %v2284 = vadd.f32 %v2219, %v2283
      %v2285 = vpop.f32.mrb[0].mxu0
      %v2286 = vpop.f32.mrb[0].mxu0
      %v2287 = vadd.f32 %v2222, %v2286
      %v2288 = vpop.f32.mrb[0].mxu0
      %2289 = vdwg.mxu0
      %2290 = vmatprep.subr.bf16.mxu0 0
      %2291 = vmatpush1.bf16.msra.mxu0 %v1757
      %2292 = vmatprep.subr.bf16.mxu0 0
      %2293 = vmatpush1.bf16.msra.mxu0 %v1758
      %2294 = vmatprep.subr.bf16.mxu0 0
      %2295 = vmatpush1.bf16.msra.mxu0 %v1759
      %2296 = vmatprep.subr.bf16.mxu0 0
      %2297 = vmatpush1.bf16.msra.mxu0 %v1760
      %2298 = vmatprep.subr.bf16.mxu0 0
      %2299 = vmatpush1.bf16.msra.mxu0 %v1761
      %2300 = vmatprep.subr.bf16.mxu0 0
      %2301 = vmatpush1.bf16.msra.mxu0 %v1762
      %2302 = vmatprep.subr.bf16.mxu0 0
      %2303 = vmatpush1.bf16.msra.mxu0 %v1763
      %2304 = vmatprep.subr.bf16.mxu0 0
      %2305 = vmatpush1.bf16.msra.mxu0 %v1764
      %2306 = vmatprep.subr.bf16.mxu0 0
      %2307 = vmatpush1.bf16.msra.mxu0 %v1765
      %2308 = vmatprep.subr.bf16.mxu0 0
      %2309 = vmatpush1.bf16.msra.mxu0 %v1766
      %2310 = vmatprep.subr.bf16.mxu0 0
      %2311 = vmatpush1.bf16.msra.mxu0 %v1767
      %2312 = vmatprep.subr.bf16.mxu0 0
      %2313 = vmatpush1.bf16.msra.mxu0 %v1768
      %2314 = vmatprep.subr.bf16.mxu0 0
      %2315 = vmatpush1.bf16.msra.mxu0 %v1769
      %2316 = vmatprep.subr.bf16.mxu0 0
      %2317 = vmatpush1.bf16.msra.mxu0 %v1770
      %2318 = vmatprep.subr.bf16.mxu0 0
      %2319 = vmatpush1.bf16.msra.mxu0 %v1771
      %2320 = vmatprep.subr.bf16.mxu0 0
      %2321 = vmatpush1.bf16.msra.mxu0 %v1772
      %2322 = vmatprep.mubr.bf16.mxu0 %v1040
      %2323 = vmatmul.mubr.bf16.gmra.mrb[0].mxu0 %v1039
      %v2324 = vpop.f32.mrb[0].mxu0
      %v2325 = vadd.f32 %v2260, %v2324
      %v2326 = vpop.f32.mrb[0].mxu0
      %v2327 = vpop.f32.mrb[0].mxu0
      %v2328 = vadd.f32 %v2263, %v2327
      %v2329 = vpop.f32.mrb[0].mxu0
      %2330 = vmatprep.mubr.bf16.mxu0 %v1058
      %2331 = vmatmul.mubr.bf16.gmra.mrb[0].mxu0 %v1057
      %v2332 = vpop.f32.mrb[0].mxu0
      %v2333 = vadd.f32 %v2268, %v2332
      %v2334 = vpop.f32.mrb[0].mxu0
      %v2335 = vpop.f32.mrb[0].mxu0
      %v2336 = vadd.f32 %v2271, %v2335
      %v2337 = vpop.f32.mrb[0].mxu0
      %2338 = vmatprep.mubr.bf16.mxu0 %v1076
      %2339 = vmatmul.mubr.bf16.gmra.mrb[0].mxu0 %v1075
      %v2340 = vpop.f32.mrb[0].mxu0
      %v2341 = vadd.f32 %v2276, %v2340
      %v2342 = vpop.f32.mrb[0].mxu0
      %v2343 = vpop.f32.mrb[0].mxu0
      %v2344 = vadd.f32 %v2279, %v2343
      %v2345 = vpop.f32.mrb[0].mxu0
      %2346 = vmatprep.mubr.bf16.mxu0 %v1094
      %2347 = vmatmul.mubr.bf16.gmra.mrb[0].mxu0 %v1093
      %v2348 = vpop.f32.mrb[0].mxu0
      %v2349 = vadd.f32 %v2284, %v2348
      %v2350 = vpop.f32.mrb[0].mxu0
      %v2351 = vpop.f32.mrb[0].mxu0
      %v2352 = vadd.f32 %v2287, %v2351
      %v2353 = vpop.f32.mrb[0].mxu0
      %2354 = vdwg.mxu0
      %2355 = vmatprep.subr.bf16.mxu0 0
      %2356 = vmatpush1.bf16.msra.mxu0 %v1773
      %2357 = vmatprep.subr.bf16.mxu0 0
      %2358 = vmatpush1.bf16.msra.mxu0 %v1774
      %2359 = vmatprep.subr.bf16.mxu0 0
      %2360 = vmatpush1.bf16.msra.mxu0 %v1775
      %2361 = vmatprep.subr.bf16.mxu0 0
      %2362 = vmatpush1.bf16.msra.mxu0 %v1776
      %2363 = vmatprep.subr.bf16.mxu0 0
      %2364 = vmatpush1.bf16.msra.mxu0 %v1777
      %2365 = vmatprep.subr.bf16.mxu0 0
      %2366 = vmatpush1.bf16.msra.mxu0 %v1778
      %2367 = vmatprep.subr.bf16.mxu0 0
      %2368 = vmatpush1.bf16.msra.mxu0 %v1779
      %2369 = vmatprep.subr.bf16.mxu0 0
      %2370 = vmatpush1.bf16.msra.mxu0 %v1780
      %2371 = vmatprep.subr.bf16.mxu0 0
      %2372 = vmatpush1.bf16.msra.mxu0 %v1781
      %2373 = vmatprep.subr.bf16.mxu0 0
      %2374 = vmatpush1.bf16.msra.mxu0 %v1782
      %2375 = vmatprep.subr.bf16.mxu0 0
      %2376 = vmatpush1.bf16.msra.mxu0 %v1783
      %2377 = vmatprep.subr.bf16.mxu0 0
      %2378 = vmatpush1.bf16.msra.mxu0 %v1784
      %2379 = vmatprep.subr.bf16.mxu0 0
      %2380 = vmatpush1.bf16.msra.mxu0 %v1785
      %2381 = vmatprep.subr.bf16.mxu0 0
      %2382 = vmatpush1.bf16.msra.mxu0 %v1786
      %2383 = vmatprep.subr.bf16.mxu0 0
      %2384 = vmatpush1.bf16.msra.mxu0 %v1787
      %2385 = vmatprep.subr.bf16.mxu0 0
      %2386 = vmatpush1.bf16.msra.mxu0 %v1788
      %2387 = vmatprep.mubr.bf16.mxu0 %v1042
      %2388 = vmatmul.mubr.bf16.gmra.mrb[0].mxu0 %v1041
      %v2389 = vpop.f32.mrb[0].mxu0
      %v2390 = vadd.f32 %v2325, %v2389
      %v2391 = vpop.f32.mrb[0].mxu0
      %v2392 = vpop.f32.mrb[0].mxu0
      %v2393 = vadd.f32 %v2328, %v2392
      %v2394 = vpop.f32.mrb[0].mxu0
      %2395 = vmatprep.mubr.bf16.mxu0 %v1060
      %2396 = vmatmul.mubr.bf16.gmra.mrb[0].mxu0 %v1059
      %v2397 = vpop.f32.mrb[0].mxu0
      %v2398 = vadd.f32 %v2333, %v2397
      %v2399 = vpop.f32.mrb[0].mxu0
      %v2400 = vpop.f32.mrb[0].mxu0
      %v2401 = vadd.f32 %v2336, %v2400
      %v2402 = vpop.f32.mrb[0].mxu0
      %2403 = vmatprep.mubr.bf16.mxu0 %v1078
      %2404 = vmatmul.mubr.bf16.gmra.mrb[0].mxu0 %v1077
      %v2405 = vpop.f32.mrb[0].mxu0
      %v2406 = vadd.f32 %v2341, %v2405
      %v2407 = vpop.f32.mrb[0].mxu0
      %v2408 = vpop.f32.mrb[0].mxu0
      %v2409 = vadd.f32 %v2344, %v2408
      %v2410 = vpop.f32.mrb[0].mxu0
      %2411 = vmatprep.mubr.bf16.mxu0 %v1096
      %2412 = vmatmul.mubr.bf16.gmra.mrb[0].mxu0 %v1095
      %v2413 = vpop.f32.mrb[0].mxu0
      %v2414 = vadd.f32 %v2349, %v2413
      %v2415 = vpop.f32.mrb[0].mxu0
      %v2416 = vpop.f32.mrb[0].mxu0
      %v2417 = vadd.f32 %v2352, %v2416
      %v2418 = vpop.f32.mrb[0].mxu0
      %2419 = vdwg.mxu0
      %2420 = vmatprep.subr.bf16.mxu0 0
      %2421 = vmatpush1.bf16.msra.mxu0 %v1789
      %2422 = vmatprep.subr.bf16.mxu0 0
      %2423 = vmatpush1.bf16.msra.mxu0 %v1790
      %2424 = vmatprep.subr.bf16.mxu0 0
      %2425 = vmatpush1.bf16.msra.mxu0 %v1791
      %2426 = vmatprep.subr.bf16.mxu0 0
      %2427 = vmatpush1.bf16.msra.mxu0 %v1792
      %2428 = vmatprep.subr.bf16.mxu0 0
      %2429 = vmatpush1.bf16.msra.mxu0 %v1793
      %2430 = vmatprep.subr.bf16.mxu0 0
      %2431 = vmatpush1.bf16.msra.mxu0 %v1794
      %2432 = vmatprep.subr.bf16.mxu0 0
      %2433 = vmatpush1.bf16.msra.mxu0 %v1795
      %2434 = vmatprep.subr.bf16.mxu0 0
      %2435 = vmatpush1.bf16.msra.mxu0 %v1796
      %2436 = vmatprep.subr.bf16.mxu0 0
      %2437 = vmatpush1.bf16.msra.mxu0 %v1797
      %2438 = vmatprep.subr.bf16.mxu0 0
      %2439 = vmatpush1.bf16.msra.mxu0 %v1798
      %2440 = vmatprep.subr.bf16.mxu0 0
      %2441 = vmatpush1.bf16.msra.mxu0 %v1799
      %2442 = vmatprep.subr.bf16.mxu0 0
      %2443 = vmatpush1.bf16.msra.mxu0 %v1800
      %2444 = vmatprep.subr.bf16.mxu0 0
      %2445 = vmatpush1.bf16.msra.mxu0 %v1801
      %2446 = vmatprep.subr.bf16.mxu0 0
      %2447 = vmatpush1.bf16.msra.mxu0 %v1802
      %2448 = vmatprep.subr.bf16.mxu0 0
      %2449 = vmatpush1.bf16.msra.mxu0 %v1803
      %2450 = vmatprep.subr.bf16.mxu0 0
      %2451 = vmatpush1.bf16.msra.mxu0 %v1804
      %2452 = vmatprep.mubr.bf16.mxu0 %v1044
      %2453 = vmatmul.mubr.bf16.gmra.mrb[0].mxu0 %v1043
      %v2454 = vpop.f32.mrb[0].mxu0
      %v2455 = vadd.f32 %v2390, %v2454
      %v2456 = vpop.f32.mrb[0].mxu0
      %v2457 = vpop.f32.mrb[0].mxu0
      %v2458 = vadd.f32 %v2393, %v2457
      %v2459 = vpop.f32.mrb[0].mxu0
      %2460 = vmatprep.mubr.bf16.mxu0 %v1062
      %2461 = vmatmul.mubr.bf16.gmra.mrb[0].mxu0 %v1061
      %v2462 = vpop.f32.mrb[0].mxu0
      %v2463 = vadd.f32 %v2398, %v2462
      %v2464 = vpop.f32.mrb[0].mxu0
      %v2465 = vpop.f32.mrb[0].mxu0
      %v2466 = vadd.f32 %v2401, %v2465
      %v2467 = vpop.f32.mrb[0].mxu0
      %2468 = vmatprep.mubr.bf16.mxu0 %v1080
      %2469 = vmatmul.mubr.bf16.gmra.mrb[0].mxu0 %v1079
      %v2470 = vpop.f32.mrb[0].mxu0
      %v2471 = vadd.f32 %v2406, %v2470
      %v2472 = vpop.f32.mrb[0].mxu0
      %v2473 = vpop.f32.mrb[0].mxu0
      %v2474 = vadd.f32 %v2409, %v2473
      %v2475 = vpop.f32.mrb[0].mxu0
      %2476 = vmatprep.mubr.bf16.mxu0 %v1098
      %2477 = vmatmul.mubr.bf16.gmra.mrb[0].mxu0 %v1097
      %v2478 = vpop.f32.mrb[0].mxu0
      %v2479 = vadd.f32 %v2414, %v2478
      %v2480 = vpop.f32.mrb[0].mxu0
      %v2481 = vpop.f32.mrb[0].mxu0
      %v2482 = vadd.f32 %v2417, %v2481
      %v2483 = vpop.f32.mrb[0].mxu0
      %2484 = vdwg.mxu0
      %2485 = vmatprep.subr.bf16.mxu0 0
      %2486 = vmatpush1.bf16.msra.mxu0 %v1805
      %2487 = vmatprep.subr.bf16.mxu0 0
      %2488 = vmatpush1.bf16.msra.mxu0 %v1806
      %2489 = vmatprep.subr.bf16.mxu0 0
      %2490 = vmatpush1.bf16.msra.mxu0 %v1807
      %2491 = vmatprep.subr.bf16.mxu0 0
      %2492 = vmatpush1.bf16.msra.mxu0 %v1808
      %2493 = vmatprep.subr.bf16.mxu0 0
      %2494 = vmatpush1.bf16.msra.mxu0 %v1809
      %2495 = vmatprep.subr.bf16.mxu0 0
      %2496 = vmatpush1.bf16.msra.mxu0 %v1810
      %2497 = vmatprep.subr.bf16.mxu0 0
      %2498 = vmatpush1.bf16.msra.mxu0 %v1811
      %2499 = vmatprep.subr.bf16.mxu0 0
      %2500 = vmatpush1.bf16.msra.mxu0 %v1812
      %2501 = vmatprep.subr.bf16.mxu0 0
      %2502 = vmatpush1.bf16.msra.mxu0 %v1813
      %2503 = vmatprep.subr.bf16.mxu0 0
      %2504 = vmatpush1.bf16.msra.mxu0 %v1814
      %2505 = vmatprep.subr.bf16.mxu0 0
      %2506 = vmatpush1.bf16.msra.mxu0 %v1815
      %2507 = vmatprep.subr.bf16.mxu0 0
      %2508 = vmatpush1.bf16.msra.mxu0 %v1816
      %2509 = vmatprep.subr.bf16.mxu0 0
      %2510 = vmatpush1.bf16.msra.mxu0 %v1817
      %2511 = vmatprep.subr.bf16.mxu0 0
      %2512 = vmatpush1.bf16.msra.mxu0 %v1818
      %2513 = vmatprep.subr.bf16.mxu0 0
      %2514 = vmatpush1.bf16.msra.mxu0 %v1819
      %2515 = vmatprep.subr.bf16.mxu0 0
      %2516 = vmatpush1.bf16.msra.mxu0 %v1820
      %2517 = vmatprep.mubr.bf16.mxu0 %v1046
      %2518 = vmatmul.mubr.bf16.gmra.mrb[0].mxu0 %v1045
      %v2519 = vpop.f32.mrb[0].mxu0
      %v2520 = vadd.f32 %v2455, %v2519
      %v2521 = vpop.f32.mrb[0].mxu0
      %v2522 = vpop.f32.mrb[0].mxu0
      %v2523 = vadd.f32 %v2458, %v2522
      %v2524 = vpop.f32.mrb[0].mxu0
      %2525 = vmatprep.mubr.bf16.mxu0 %v1064
      %2526 = vmatmul.mubr.bf16.gmra.mrb[0].mxu0 %v1063
      %v2527 = vpop.f32.mrb[0].mxu0
      %v2528 = vadd.f32 %v2463, %v2527
      %v2529 = vpop.f32.mrb[0].mxu0
      %v2530 = vpop.f32.mrb[0].mxu0
      %v2531 = vadd.f32 %v2466, %v2530
      %v2532 = vpop.f32.mrb[0].mxu0
      %2533 = vmatprep.mubr.bf16.mxu0 %v1082
      %2534 = vmatmul.mubr.bf16.gmra.mrb[0].mxu0 %v1081
      %v2535 = vpop.f32.mrb[0].mxu0
      %v2536 = vadd.f32 %v2471, %v2535
      %v2537 = vpop.f32.mrb[0].mxu0
      %v2538 = vpop.f32.mrb[0].mxu0
      %v2539 = vadd.f32 %v2474, %v2538
      %v2540 = vpop.f32.mrb[0].mxu0
      %2541 = vmatprep.mubr.bf16.mxu0 %v1100
      %2542 = vmatmul.mubr.bf16.gmra.mrb[0].mxu0 %v1099
      %v2543 = vpop.f32.mrb[0].mxu0
      %v2544 = vadd.f32 %v2479, %v2543
      %v2545 = vpop.f32.mrb[0].mxu0
      %v2546 = vpop.f32.mrb[0].mxu0
      %v2547 = vadd.f32 %v2482, %v2546
      %v2548 = vpop.f32.mrb[0].mxu0
      %2549 = vdwg.mxu0
      %v2550 = vmax.f32 %v2520, 0.0
      %v2551 = vmax.f32 %v2523, 0.0
      %v2552 = vmax.f32 %v2528, 0.0
      %v2553 = vmax.f32 %v2531, 0.0
      %v2554 = vmax.f32 %v2536, 0.0
      %v2555 = vmax.f32 %v2539, 0.0
      %v2556 = vmax.f32 %v2544, 0.0
      %v2557 = vmax.f32 %v2547, 0.0
      %vm2558 = vcmask 523264
      %v2559 = vsel %vm2558, %v2550, 0.0
      %v2560 = vsel %vm2558, %v2551, 0.0
      %v2561 = vadd.f32 %v2559, %v2560
      %v2562 = vsel %vm2558, %v2552, 0.0
      %v2563 = vadd.f32 %v2561, %v2562
      %v2564 = vsel %vm2558, %v2553, 0.0
      %v2565 = vadd.f32 %v2563, %v2564
      %v2566 = vsel %vm2558, %v2554, 0.0
      %v2567 = vadd.f32 %v2565, %v2566
      %v2568 = vsel %vm2558, %v2555, 0.0
      %v2569 = vadd.f32 %v2567, %v2568
      %v2570 = vsel %vm2558, %v2556, 0.0
      %v2571 = vadd.f32 %v2569, %v2570
      %v2572 = vsel %vm2558, %v2557, 0.0
      %v2573 = vadd.f32 %v2571, %v2572
      %v2574 = vrot.slane %v2573, 4
      %v2575 = vadd.f32 %v2573, %v2574
      %v2576 = vrot.slane %v2575, 2
      %v2577 = vadd.f32 %v2575, %v2576
      %v2578 = vrot.slane %v2577, 1
      %v2579 = vadd.f32 %v2577, %v2578
      %v2580 = vmul.f32 %v2579, 0.015625
      %v2581 = vadd.f32 %v2580, 0.0
      %s2582 = scalar_lea.vmem [#allocation2], 480
      %v2583 = vld [vmem:[%s2582 + $0x7] sm:$0xff]
      %v2584 = vld [vmem:[%s2582 + $0x1f] sm:$0xff]
      %v2585 = vld [vmem:[%s2582 + $0x37] sm:$0xff]
      %v2586 = vld [vmem:[%s2582 + $0x4f] sm:$0xff]
      %v2587 = vld [vmem:[%s2582 + $0x67] sm:$0xff]
      %v2588 = vld [vmem:[%s2582 + $0x7f] sm:$0xff]
      %v2589 = vld [vmem:[%s2582 + $0x97] sm:$0xff]
      %v2590 = vld [vmem:[%s2582 + $0xaf] sm:$0xff]
      %v2591 = vld [vmem:[%s2582 + $0x8] sm:$0xff]
      %v2592 = vld [vmem:[%s2582 + $0x20] sm:$0xff]
      %v2593 = vld [vmem:[%s2582 + $0x38] sm:$0xff]
      %v2594 = vld [vmem:[%s2582 + $0x50] sm:$0xff]
      %v2595 = vld [vmem:[%s2582 + $0x68] sm:$0xff]
      %v2596 = vld [vmem:[%s2582 + $0x80] sm:$0xff]
      %v2597 = vld [vmem:[%s2582 + $0x98] sm:$0xff]
      %v2598 = vld [vmem:[%s2582 + $0xb0] sm:$0xff]
      %v2599 = vld [vmem:[%s2582 + $0x9] sm:$0xff]
      %v2600 = vld [vmem:[%s2582 + $0x21] sm:$0xff]
      %v2601 = vld [vmem:[%s2582 + $0x39] sm:$0xff]
      %v2602 = vld [vmem:[%s2582 + $0x51] sm:$0xff]
      %v2603 = vld [vmem:[%s2582 + $0x69] sm:$0xff]
      %v2604 = vld [vmem:[%s2582 + $0x81] sm:$0xff]
      %v2605 = vld [vmem:[%s2582 + $0x99] sm:$0xff]
      %v2606 = vld [vmem:[%s2582 + $0xb1] sm:$0xff]
      %v2607 = vld [vmem:[%s585 + $0x7] sm:$0xff]
      %v2608 = vld [vmem:[%s585 + $0x1f] sm:$0xff]
      %v2609 = vld [vmem:[%s585 + $0x37] sm:$0xff]
      %v2610 = vld [vmem:[%s585 + $0x4f] sm:$0xff]
      %v2611 = vld [vmem:[%s585 + $0x67] sm:$0xff]
      %v2612 = vld [vmem:[%s585 + $0x7f] sm:$0xff]
      %v2613 = vld [vmem:[%s585 + $0x97] sm:$0xff]
      %v2614 = vld [vmem:[%s585 + $0xaf] sm:$0xff]
      %v2615 = vld [vmem:[%s585 + $0x8] sm:$0xff]
      %v2616 = vld [vmem:[%s585 + $0x20] sm:$0xff]
      %v2617 = vld [vmem:[%s585 + $0x38] sm:$0xff]
      %v2618 = vld [vmem:[%s585 + $0x50] sm:$0xff]
      %v2619 = vld [vmem:[%s585 + $0x68] sm:$0xff]
      %v2620 = vld [vmem:[%s585 + $0x80] sm:$0xff]
      %v2621 = vld [vmem:[%s585 + $0x98] sm:$0xff]
      %v2622 = vld [vmem:[%s585 + $0xb0] sm:$0xff]
      %v2623 = vld [vmem:[%s585 + $0x9] sm:$0xff]
      %v2624 = vld [vmem:[%s585 + $0x21] sm:$0xff]
      %v2625 = vld [vmem:[%s585 + $0x39] sm:$0xff]
      %v2626 = vld [vmem:[%s585 + $0x51] sm:$0xff]
      %v2627 = vld [vmem:[%s585 + $0x69] sm:$0xff]
      %v2628 = vld [vmem:[%s585 + $0x81] sm:$0xff]
      %v2629 = vld [vmem:[%s585 + $0x99] sm:$0xff]
      %v2630 = vld [vmem:[%s585 + $0xb1] sm:$0xff]
      %s2631 = scalar_lea.vmem [#allocation2], 528
      %v2632 = vld [vmem:[%s2631 + $0x7] sm:$0xff]
      %v2633 = vld [vmem:[%s2631 + $0x1f] sm:$0xff]
      %v2634 = vld [vmem:[%s2631 + $0x37] sm:$0xff]
      %v2635 = vld [vmem:[%s2631 + $0x4f] sm:$0xff]
      %v2636 = vld [vmem:[%s2631 + $0x67] sm:$0xff]
      %v2637 = vld [vmem:[%s2631 + $0x7f] sm:$0xff]
      %v2638 = vld [vmem:[%s2631 + $0x97] sm:$0xff]
      %v2639 = vld [vmem:[%s2631 + $0xaf] sm:$0xff]
      %v2640 = vld [vmem:[%s2631 + $0x8] sm:$0xff]
      %v2641 = vld [vmem:[%s2631 + $0x20] sm:$0xff]
      %v2642 = vld [vmem:[%s2631 + $0x38] sm:$0xff]
      %v2643 = vld [vmem:[%s2631 + $0x50] sm:$0xff]
      %v2644 = vld [vmem:[%s2631 + $0x68] sm:$0xff]
      %v2645 = vld [vmem:[%s2631 + $0x80] sm:$0xff]
      %v2646 = vld [vmem:[%s2631 + $0x98] sm:$0xff]
      %v2647 = vld [vmem:[%s2631 + $0xb0] sm:$0xff]
      %v2648 = vld [vmem:[%s2631 + $0x9] sm:$0xff]
      %v2649 = vld [vmem:[%s2631 + $0x21] sm:$0xff]
      %v2650 = vld [vmem:[%s2631 + $0x39] sm:$0xff]
      %v2651 = vld [vmem:[%s2631 + $0x51] sm:$0xff]
      %v2652 = vld [vmem:[%s2631 + $0x69] sm:$0xff]
      %v2653 = vld [vmem:[%s2631 + $0x81] sm:$0xff]
      %v2654 = vld [vmem:[%s2631 + $0x99] sm:$0xff]
      %v2655 = vld [vmem:[%s2631 + $0xb1] sm:$0xff]
      %v2656 = vpack.c.bf16 %v2584, %v2583
      %v2657 = vpack.c.bf16 %v2592, %v2591
      %v2658 = vpack.c.bf16 %v2600, %v2599
      %v2659 = vpack.c.bf16 %v2608, %v2607
      %v2660 = vpack.c.bf16 %v2616, %v2615
      %v2661 = vpack.c.bf16 %v2624, %v2623
      %v2662 = vpack.c.bf16 %v2633, %v2632
      %v2663 = vpack.c.bf16 %v2641, %v2640
      %v2664 = vpack.c.bf16 %v2649, %v2648
      %v2665 = vpack.c.bf16 %v2586, %v2585
      %v2666 = vpack.c.bf16 %v2594, %v2593
      %v2667 = vpack.c.bf16 %v2602, %v2601
      %v2668 = vpack.c.bf16 %v2610, %v2609
      %v2669 = vpack.c.bf16 %v2618, %v2617
      %v2670 = vpack.c.bf16 %v2626, %v2625
      %v2671 = vpack.c.bf16 %v2635, %v2634
      %v2672 = vpack.c.bf16 %v2643, %v2642
      %v2673 = vpack.c.bf16 %v2651, %v2650
      %v2674 = vpack.c.bf16 %v2588, %v2587
      %v2675 = vpack.c.bf16 %v2596, %v2595
      %v2676 = vpack.c.bf16 %v2604, %v2603
      %v2677 = vpack.c.bf16 %v2612, %v2611
      %v2678 = vpack.c.bf16 %v2620, %v2619
      %v2679 = vpack.c.bf16 %v2628, %v2627
      %v2680 = vpack.c.bf16 %v2637, %v2636
      %v2681 = vpack.c.bf16 %v2645, %v2644
      %v2682 = vpack.c.bf16 %v2653, %v2652
      %v2683 = vpack.c.bf16 %v2590, %v2589
      %v2684 = vpack.c.bf16 %v2598, %v2597
      %v2685 = vpack.c.bf16 %v2606, %v2605
      %v2686 = vpack.c.bf16 %v2614, %v2613
      %v2687 = vpack.c.bf16 %v2622, %v2621
      %v2688 = vpack.c.bf16 %v2630, %v2629
      %v2689 = vpack.c.bf16 %v2639, %v2638
      %v2690 = vpack.c.bf16 %v2647, %v2646
      %v2691 = vpack.c.bf16 %v2655, %v2654
      %2692 = vmatprep.subr.bf16.mxu0 0
      %2693 = vmatpush1.bf16.msra.mxu0 %v1677
      %2694 = vmatprep.subr.bf16.mxu0 0
      %2695 = vmatpush1.bf16.msra.mxu0 %v1678
      %2696 = vmatprep.subr.bf16.mxu0 0
      %2697 = vmatpush1.bf16.msra.mxu0 %v1679
      %2698 = vmatprep.subr.bf16.mxu0 0
      %2699 = vmatpush1.bf16.msra.mxu0 %v1680
      %2700 = vmatprep.subr.bf16.mxu0 0
      %2701 = vmatpush1.bf16.msra.mxu0 %v1681
      %2702 = vmatprep.subr.bf16.mxu0 0
      %2703 = vmatpush1.bf16.msra.mxu0 %v1682
      %2704 = vmatprep.subr.bf16.mxu0 0
      %2705 = vmatpush1.bf16.msra.mxu0 %v1683
      %2706 = vmatprep.subr.bf16.mxu0 0
      %2707 = vmatpush1.bf16.msra.mxu0 %v1684
      %2708 = vmatprep.subr.bf16.mxu0 0
      %2709 = vmatpush1.bf16.msra.mxu0 %v1685
      %2710 = vmatprep.subr.bf16.mxu0 0
      %2711 = vmatpush1.bf16.msra.mxu0 %v1686
      %2712 = vmatprep.subr.bf16.mxu0 0
      %2713 = vmatpush1.bf16.msra.mxu0 %v1687
      %2714 = vmatprep.subr.bf16.mxu0 0
      %2715 = vmatpush1.bf16.msra.mxu0 %v1688
      %2716 = vmatprep.subr.bf16.mxu0 0
      %2717 = vmatpush1.bf16.msra.mxu0 %v1689
      %2718 = vmatprep.subr.bf16.mxu0 0
      %2719 = vmatpush1.bf16.msra.mxu0 %v1690
      %2720 = vmatprep.subr.bf16.mxu0 0
      %2721 = vmatpush1.bf16.msra.mxu0 %v1691
      %2722 = vmatprep.subr.bf16.mxu0 0
      %2723 = vmatpush1.bf16.msra.mxu0 %v1692
      %2724 = vmatprep.mubr.bf16.mxu0 %v1039
      %2725 = vmatmul.mubr.bf16.gmra.mrb[0].mxu0 %v1038
      %v2726 = vpop.f32.mrb[0].mxu0
      %v2727 = vadd.f32 0.0, %v2726
      %v2728 = vpop.f32.mrb[0].mxu0
      %v2729 = vpop.f32.mrb[0].mxu0
      %v2730 = vadd.f32 0.0, %v2729
      %v2731 = vpop.f32.mrb[0].mxu0
      %2732 = vmatprep.mubr.bf16.mxu0 %v1057
      %2733 = vmatmul.mubr.bf16.gmra.mrb[0].mxu0 %v1056
      %v2734 = vpop.f32.mrb[0].mxu0
      %v2735 = vadd.f32 0.0, %v2734
      %v2736 = vpop.f32.mrb[0].mxu0
      %v2737 = vpop.f32.mrb[0].mxu0
      %v2738 = vadd.f32 0.0, %v2737
      %v2739 = vpop.f32.mrb[0].mxu0
      %2740 = vmatprep.mubr.bf16.mxu0 %v1075
      %2741 = vmatmul.mubr.bf16.gmra.mrb[0].mxu0 %v1074
      %v2742 = vpop.f32.mrb[0].mxu0
      %v2743 = vadd.f32 0.0, %v2742
      %v2744 = vpop.f32.mrb[0].mxu0
      %v2745 = vpop.f32.mrb[0].mxu0
      %v2746 = vadd.f32 0.0, %v2745
      %v2747 = vpop.f32.mrb[0].mxu0
      %2748 = vmatprep.mubr.bf16.mxu0 %v1093
      %2749 = vmatmul.mubr.bf16.gmra.mrb[0].mxu0 %v1092
      %v2750 = vpop.f32.mrb[0].mxu0
      %v2751 = vadd.f32 0.0, %v2750
      %v2752 = vpop.f32.mrb[0].mxu0
      %v2753 = vpop.f32.mrb[0].mxu0
      %v2754 = vadd.f32 0.0, %v2753
      %v2755 = vpop.f32.mrb[0].mxu0
      %2756 = vdwg.mxu0
      %2757 = vmatprep.subr.bf16.mxu0 0
      %2758 = vmatpush1.bf16.msra.mxu0 %v1693
      %2759 = vmatprep.subr.bf16.mxu0 0
      %2760 = vmatpush1.bf16.msra.mxu0 %v1694
      %2761 = vmatprep.subr.bf16.mxu0 0
      %2762 = vmatpush1.bf16.msra.mxu0 %v1695
      %2763 = vmatprep.subr.bf16.mxu0 0
      %2764 = vmatpush1.bf16.msra.mxu0 %v1696
      %2765 = vmatprep.subr.bf16.mxu0 0
      %2766 = vmatpush1.bf16.msra.mxu0 %v1697
      %2767 = vmatprep.subr.bf16.mxu0 0
      %2768 = vmatpush1.bf16.msra.mxu0 %v1698
      %2769 = vmatprep.subr.bf16.mxu0 0
      %2770 = vmatpush1.bf16.msra.mxu0 %v1699
      %2771 = vmatprep.subr.bf16.mxu0 0
      %2772 = vmatpush1.bf16.msra.mxu0 %v1700
      %2773 = vmatprep.subr.bf16.mxu0 0
      %2774 = vmatpush1.bf16.msra.mxu0 %v1701
      %2775 = vmatprep.subr.bf16.mxu0 0
      %2776 = vmatpush1.bf16.msra.mxu0 %v1702
      %2777 = vmatprep.subr.bf16.mxu0 0
      %2778 = vmatpush1.bf16.msra.mxu0 %v1703
      %2779 = vmatprep.subr.bf16.mxu0 0
      %2780 = vmatpush1.bf16.msra.mxu0 %v1704
      %2781 = vmatprep.subr.bf16.mxu0 0
      %2782 = vmatpush1.bf16.msra.mxu0 %v1705
      %2783 = vmatprep.subr.bf16.mxu0 0
      %2784 = vmatpush1.bf16.msra.mxu0 %v1706
      %2785 = vmatprep.subr.bf16.mxu0 0
      %2786 = vmatpush1.bf16.msra.mxu0 %v1707
      %2787 = vmatprep.subr.bf16.mxu0 0
      %2788 = vmatpush1.bf16.msra.mxu0 %v1708
      %2789 = vmatprep.mubr.bf16.mxu0 %v1041
      %2790 = vmatmul.mubr.bf16.gmra.mrb[0].mxu0 %v1040
      %v2791 = vpop.f32.mrb[0].mxu0
      %v2792 = vadd.f32 %v2727, %v2791
      %v2793 = vpop.f32.mrb[0].mxu0
      %v2794 = vpop.f32.mrb[0].mxu0
      %v2795 = vadd.f32 %v2730, %v2794
      %v2796 = vpop.f32.mrb[0].mxu0
      %2797 = vmatprep.mubr.bf16.mxu0 %v1059
      %2798 = vmatmul.mubr.bf16.gmra.mrb[0].mxu0 %v1058
      %v2799 = vpop.f32.mrb[0].mxu0
      %v2800 = vadd.f32 %v2735, %v2799
      %v2801 = vpop.f32.mrb[0].mxu0
      %v2802 = vpop.f32.mrb[0].mxu0
      %v2803 = vadd.f32 %v2738, %v2802
      %v2804 = vpop.f32.mrb[0].mxu0
      %2805 = vmatprep.mubr.bf16.mxu0 %v1077
      %2806 = vmatmul.mubr.bf16.gmra.mrb[0].mxu0 %v1076
      %v2807 = vpop.f32.mrb[0].mxu0
      %v2808 = vadd.f32 %v2743, %v2807
      %v2809 = vpop.f32.mrb[0].mxu0
      %v2810 = vpop.f32.mrb[0].mxu0
      %v2811 = vadd.f32 %v2746, %v2810
      %v2812 = vpop.f32.mrb[0].mxu0
      %2813 = vmatprep.mubr.bf16.mxu0 %v1095
      %2814 = vmatmul.mubr.bf16.gmra.mrb[0].mxu0 %v1094
      %v2815 = vpop.f32.mrb[0].mxu0
      %v2816 = vadd.f32 %v2751, %v2815
      %v2817 = vpop.f32.mrb[0].mxu0
      %v2818 = vpop.f32.mrb[0].mxu0
      %v2819 = vadd.f32 %v2754, %v2818
      %v2820 = vpop.f32.mrb[0].mxu0
      %2821 = vdwg.mxu0
      %2822 = vmatprep.subr.bf16.mxu0 0
      %2823 = vmatpush1.bf16.msra.mxu0 %v1709
      %2824 = vmatprep.subr.bf16.mxu0 0
      %2825 = vmatpush1.bf16.msra.mxu0 %v1710
      %2826 = vmatprep.subr.bf16.mxu0 0
      %2827 = vmatpush1.bf16.msra.mxu0 %v1711
      %2828 = vmatprep.subr.bf16.mxu0 0
      %2829 = vmatpush1.bf16.msra.mxu0 %v1712
      %2830 = vmatprep.subr.bf16.mxu0 0
      %2831 = vmatpush1.bf16.msra.mxu0 %v1713
      %2832 = vmatprep.subr.bf16.mxu0 0
      %2833 = vmatpush1.bf16.msra.mxu0 %v1714
      %2834 = vmatprep.subr.bf16.mxu0 0
      %2835 = vmatpush1.bf16.msra.mxu0 %v1715
      %2836 = vmatprep.subr.bf16.mxu0 0
      %2837 = vmatpush1.bf16.msra.mxu0 %v1716
      %2838 = vmatprep.subr.bf16.mxu0 0
      %2839 = vmatpush1.bf16.msra.mxu0 %v1717
      %2840 = vmatprep.subr.bf16.mxu0 0
      %2841 = vmatpush1.bf16.msra.mxu0 %v1718
      %2842 = vmatprep.subr.bf16.mxu0 0
      %2843 = vmatpush1.bf16.msra.mxu0 %v1719
      %2844 = vmatprep.subr.bf16.mxu0 0
      %2845 = vmatpush1.bf16.msra.mxu0 %v1720
      %2846 = vmatprep.subr.bf16.mxu0 0
      %2847 = vmatpush1.bf16.msra.mxu0 %v1721
      %2848 = vmatprep.subr.bf16.mxu0 0
      %2849 = vmatpush1.bf16.msra.mxu0 %v1722
      %2850 = vmatprep.subr.bf16.mxu0 0
      %2851 = vmatpush1.bf16.msra.mxu0 %v1723
      %2852 = vmatprep.subr.bf16.mxu0 0
      %2853 = vmatpush1.bf16.msra.mxu0 %v1724
      %2854 = vmatprep.mubr.bf16.mxu0 %v1043
      %2855 = vmatmul.mubr.bf16.gmra.mrb[0].mxu0 %v1042
      %v2856 = vpop.f32.mrb[0].mxu0
      %v2857 = vadd.f32 %v2792, %v2856
      %v2858 = vpop.f32.mrb[0].mxu0
      %v2859 = vpop.f32.mrb[0].mxu0
      %v2860 = vadd.f32 %v2795, %v2859
      %v2861 = vpop.f32.mrb[0].mxu0
      %2862 = vmatprep.mubr.bf16.mxu0 %v1061
      %2863 = vmatmul.mubr.bf16.gmra.mrb[0].mxu0 %v1060
      %v2864 = vpop.f32.mrb[0].mxu0
      %v2865 = vadd.f32 %v2800, %v2864
      %v2866 = vpop.f32.mrb[0].mxu0
      %v2867 = vpop.f32.mrb[0].mxu0
      %v2868 = vadd.f32 %v2803, %v2867
      %v2869 = vpop.f32.mrb[0].mxu0
      %2870 = vmatprep.mubr.bf16.mxu0 %v1079
      %2871 = vmatmul.mubr.bf16.gmra.mrb[0].mxu0 %v1078
      %v2872 = vpop.f32.mrb[0].mxu0
      %v2873 = vadd.f32 %v2808, %v2872
      %v2874 = vpop.f32.mrb[0].mxu0
      %v2875 = vpop.f32.mrb[0].mxu0
      %v2876 = vadd.f32 %v2811, %v2875
      %v2877 = vpop.f32.mrb[0].mxu0
      %2878 = vmatprep.mubr.bf16.mxu0 %v1097
      %2879 = vmatmul.mubr.bf16.gmra.mrb[0].mxu0 %v1096
      %v2880 = vpop.f32.mrb[0].mxu0
      %v2881 = vadd.f32 %v2816, %v2880
      %v2882 = vpop.f32.mrb[0].mxu0
      %v2883 = vpop.f32.mrb[0].mxu0
      %v2884 = vadd.f32 %v2819, %v2883
      %v2885 = vpop.f32.mrb[0].mxu0
      %2886 = vdwg.mxu0
      %2887 = vmatprep.subr.bf16.mxu0 0
      %2888 = vmatpush1.bf16.msra.mxu0 %v1725
      %2889 = vmatprep.subr.bf16.mxu0 0
      %2890 = vmatpush1.bf16.msra.mxu0 %v1726
      %2891 = vmatprep.subr.bf16.mxu0 0
      %2892 = vmatpush1.bf16.msra.mxu0 %v1727
      %2893 = vmatprep.subr.bf16.mxu0 0
      %2894 = vmatpush1.bf16.msra.mxu0 %v1728
      %2895 = vmatprep.subr.bf16.mxu0 0
      %2896 = vmatpush1.bf16.msra.mxu0 %v1729
      %2897 = vmatprep.subr.bf16.mxu0 0
      %2898 = vmatpush1.bf16.msra.mxu0 %v1730
      %2899 = vmatprep.subr.bf16.mxu0 0
      %2900 = vmatpush1.bf16.msra.mxu0 %v1731
      %2901 = vmatprep.subr.bf16.mxu0 0
      %2902 = vmatpush1.bf16.msra.mxu0 %v1732
      %2903 = vmatprep.subr.bf16.mxu0 0
      %2904 = vmatpush1.bf16.msra.mxu0 %v1733
      %2905 = vmatprep.subr.bf16.mxu0 0
      %2906 = vmatpush1.bf16.msra.mxu0 %v1734
      %2907 = vmatprep.subr.bf16.mxu0 0
      %2908 = vmatpush1.bf16.msra.mxu0 %v1735
      %2909 = vmatprep.subr.bf16.mxu0 0
      %2910 = vmatpush1.bf16.msra.mxu0 %v1736
      %2911 = vmatprep.subr.bf16.mxu0 0
      %2912 = vmatpush1.bf16.msra.mxu0 %v1737
      %2913 = vmatprep.subr.bf16.mxu0 0
      %2914 = vmatpush1.bf16.msra.mxu0 %v1738
      %2915 = vmatprep.subr.bf16.mxu0 0
      %2916 = vmatpush1.bf16.msra.mxu0 %v1739
      %2917 = vmatprep.subr.bf16.mxu0 0
      %2918 = vmatpush1.bf16.msra.mxu0 %v1740
      %2919 = vmatprep.mubr.bf16.mxu0 %v1045
      %2920 = vmatmul.mubr.bf16.gmra.mrb[0].mxu0 %v1044
      %v2921 = vpop.f32.mrb[0].mxu0
      %v2922 = vadd.f32 %v2857, %v2921
      %v2923 = vpop.f32.mrb[0].mxu0
      %v2924 = vpop.f32.mrb[0].mxu0
      %v2925 = vadd.f32 %v2860, %v2924
      %v2926 = vpop.f32.mrb[0].mxu0
      %2927 = vmatprep.mubr.bf16.mxu0 %v1063
      %2928 = vmatmul.mubr.bf16.gmra.mrb[0].mxu0 %v1062
      %v2929 = vpop.f32.mrb[0].mxu0
      %v2930 = vadd.f32 %v2865, %v2929
      %v2931 = vpop.f32.mrb[0].mxu0
      %v2932 = vpop.f32.mrb[0].mxu0
      %v2933 = vadd.f32 %v2868, %v2932
      %v2934 = vpop.f32.mrb[0].mxu0
      %2935 = vmatprep.mubr.bf16.mxu0 %v1081
      %2936 = vmatmul.mubr.bf16.gmra.mrb[0].mxu0 %v1080
      %v2937 = vpop.f32.mrb[0].mxu0
      %v2938 = vadd.f32 %v2873, %v2937
      %v2939 = vpop.f32.mrb[0].mxu0
      %v2940 = vpop.f32.mrb[0].mxu0
      %v2941 = vadd.f32 %v2876, %v2940
      %v2942 = vpop.f32.mrb[0].mxu0
      %2943 = vmatprep.mubr.bf16.mxu0 %v1099
      %2944 = vmatmul.mubr.bf16.gmra.mrb[0].mxu0 %v1098
      %v2945 = vpop.f32.mrb[0].mxu0
      %v2946 = vadd.f32 %v2881, %v2945
      %v2947 = vpop.f32.mrb[0].mxu0
      %v2948 = vpop.f32.mrb[0].mxu0
      %v2949 = vadd.f32 %v2884, %v2948
      %v2950 = vpop.f32.mrb[0].mxu0
      %2951 = vdwg.mxu0
      %2952 = vmatprep.subr.bf16.mxu0 0
      %2953 = vmatpush1.bf16.msra.mxu0 %v1741
      %2954 = vmatprep.subr.bf16.mxu0 0
      %2955 = vmatpush1.bf16.msra.mxu0 %v1742
      %2956 = vmatprep.subr.bf16.mxu0 0
      %2957 = vmatpush1.bf16.msra.mxu0 %v1743
      %2958 = vmatprep.subr.bf16.mxu0 0
      %2959 = vmatpush1.bf16.msra.mxu0 %v1744
      %2960 = vmatprep.subr.bf16.mxu0 0
      %2961 = vmatpush1.bf16.msra.mxu0 %v1745
      %2962 = vmatprep.subr.bf16.mxu0 0
      %2963 = vmatpush1.bf16.msra.mxu0 %v1746
      %2964 = vmatprep.subr.bf16.mxu0 0
      %2965 = vmatpush1.bf16.msra.mxu0 %v1747
      %2966 = vmatprep.subr.bf16.mxu0 0
      %2967 = vmatpush1.bf16.msra.mxu0 %v1748
      %2968 = vmatprep.subr.bf16.mxu0 0
      %2969 = vmatpush1.bf16.msra.mxu0 %v1749
      %2970 = vmatprep.subr.bf16.mxu0 0
      %2971 = vmatpush1.bf16.msra.mxu0 %v1750
      %2972 = vmatprep.subr.bf16.mxu0 0
      %2973 = vmatpush1.bf16.msra.mxu0 %v1751
      %2974 = vmatprep.subr.bf16.mxu0 0
      %2975 = vmatpush1.bf16.msra.mxu0 %v1752
      %2976 = vmatprep.subr.bf16.mxu0 0
      %2977 = vmatpush1.bf16.msra.mxu0 %v1753
      %2978 = vmatprep.subr.bf16.mxu0 0
      %2979 = vmatpush1.bf16.msra.mxu0 %v1754
      %2980 = vmatprep.subr.bf16.mxu0 0
      %2981 = vmatpush1.bf16.msra.mxu0 %v1755
      %2982 = vmatprep.subr.bf16.mxu0 0
      %2983 = vmatpush1.bf16.msra.mxu0 %v1756
      %2984 = vmatprep.mubr.bf16.mxu0 %v2656
      %2985 = vmatmul.mubr.bf16.gmra.mrb[0].mxu0 %v1046
      %v2986 = vpop.f32.mrb[0].mxu0
      %v2987 = vadd.f32 %v2922, %v2986
      %v2988 = vpop.f32.mrb[0].mxu0
      %v2989 = vpop.f32.mrb[0].mxu0
      %v2990 = vadd.f32 %v2925, %v2989
      %v2991 = vpop.f32.mrb[0].mxu0
      %2992 = vmatprep.mubr.bf16.mxu0 %v2665
      %2993 = vmatmul.mubr.bf16.gmra.mrb[0].mxu0 %v1064
      %v2994 = vpop.f32.mrb[0].mxu0
      %v2995 = vadd.f32 %v2930, %v2994
      %v2996 = vpop.f32.mrb[0].mxu0
      %v2997 = vpop.f32.mrb[0].mxu0
      %v2998 = vadd.f32 %v2933, %v2997
      %v2999 = vpop.f32.mrb[0].mxu0
      %3000 = vmatprep.mubr.bf16.mxu0 %v2674
      %3001 = vmatmul.mubr.bf16.gmra.mrb[0].mxu0 %v1082
      %v3002 = vpop.f32.mrb[0].mxu0
      %v3003 = vadd.f32 %v2938, %v3002
      %v3004 = vpop.f32.mrb[0].mxu0
      %v3005 = vpop.f32.mrb[0].mxu0
      %v3006 = vadd.f32 %v2941, %v3005
      %v3007 = vpop.f32.mrb[0].mxu0
      %3008 = vmatprep.mubr.bf16.mxu0 %v2683
      %3009 = vmatmul.mubr.bf16.gmra.mrb[0].mxu0 %v1100
      %v3010 = vpop.f32.mrb[0].mxu0
      %v3011 = vadd.f32 %v2946, %v3010
      %v3012 = vpop.f32.mrb[0].mxu0
      %v3013 = vpop.f32.mrb[0].mxu0
      %v3014 = vadd.f32 %v2949, %v3013
      %v3015 = vpop.f32.mrb[0].mxu0
      %3016 = vdwg.mxu0
      %3017 = vmatprep.subr.bf16.mxu0 0
      %3018 = vmatpush1.bf16.msra.mxu0 %v1757
      %3019 = vmatprep.subr.bf16.mxu0 0
      %3020 = vmatpush1.bf16.msra.mxu0 %v1758
      %3021 = vmatprep.subr.bf16.mxu0 0
      %3022 = vmatpush1.bf16.msra.mxu0 %v1759
      %3023 = vmatprep.subr.bf16.mxu0 0
      %3024 = vmatpush1.bf16.msra.mxu0 %v1760
      %3025 = vmatprep.subr.bf16.mxu0 0
      %3026 = vmatpush1.bf16.msra.mxu0 %v1761
      %3027 = vmatprep.subr.bf16.mxu0 0
      %3028 = vmatpush1.bf16.msra.mxu0 %v1762
      %3029 = vmatprep.subr.bf16.mxu0 0
      %3030 = vmatpush1.bf16.msra.mxu0 %v1763
      %3031 = vmatprep.subr.bf16.mxu0 0
      %3032 = vmatpush1.bf16.msra.mxu0 %v1764
      %3033 = vmatprep.subr.bf16.mxu0 0
      %3034 = vmatpush1.bf16.msra.mxu0 %v1765
      %3035 = vmatprep.subr.bf16.mxu0 0
      %3036 = vmatpush1.bf16.msra.mxu0 %v1766
      %3037 = vmatprep.subr.bf16.mxu0 0
      %3038 = vmatpush1.bf16.msra.mxu0 %v1767
      %3039 = vmatprep.subr.bf16.mxu0 0
      %3040 = vmatpush1.bf16.msra.mxu0 %v1768
      %3041 = vmatprep.subr.bf16.mxu0 0
      %3042 = vmatpush1.bf16.msra.mxu0 %v1769
      %3043 = vmatprep.subr.bf16.mxu0 0
      %3044 = vmatpush1.bf16.msra.mxu0 %v1770
      %3045 = vmatprep.subr.bf16.mxu0 0
      %3046 = vmatpush1.bf16.msra.mxu0 %v1771
      %3047 = vmatprep.subr.bf16.mxu0 0
      %3048 = vmatpush1.bf16.msra.mxu0 %v1772
      %3049 = vmatprep.mubr.bf16.mxu0 %v2658
      %3050 = vmatmul.mubr.bf16.gmra.mrb[0].mxu0 %v2657
      %v3051 = vpop.f32.mrb[0].mxu0
      %v3052 = vadd.f32 %v2987, %v3051
      %v3053 = vpop.f32.mrb[0].mxu0
      %v3054 = vpop.f32.mrb[0].mxu0
      %v3055 = vadd.f32 %v2990, %v3054
      %v3056 = vpop.f32.mrb[0].mxu0
      %3057 = vmatprep.mubr.bf16.mxu0 %v2667
      %3058 = vmatmul.mubr.bf16.gmra.mrb[0].mxu0 %v2666
      %v3059 = vpop.f32.mrb[0].mxu0
      %v3060 = vadd.f32 %v2995, %v3059
      %v3061 = vpop.f32.mrb[0].mxu0
      %v3062 = vpop.f32.mrb[0].mxu0
      %v3063 = vadd.f32 %v2998, %v3062
      %v3064 = vpop.f32.mrb[0].mxu0
      %3065 = vmatprep.mubr.bf16.mxu0 %v2676
      %3066 = vmatmul.mubr.bf16.gmra.mrb[0].mxu0 %v2675
      %v3067 = vpop.f32.mrb[0].mxu0
      %v3068 = vadd.f32 %v3003, %v3067
      %v3069 = vpop.f32.mrb[0].mxu0
      %v3070 = vpop.f32.mrb[0].mxu0
      %v3071 = vadd.f32 %v3006, %v3070
      %v3072 = vpop.f32.mrb[0].mxu0
      %3073 = vmatprep.mubr.bf16.mxu0 %v2685
      %3074 = vmatmul.mubr.bf16.gmra.mrb[0].mxu0 %v2684
      %v3075 = vpop.f32.mrb[0].mxu0
      %v3076 = vadd.f32 %v3011, %v3075
      %v3077 = vpop.f32.mrb[0].mxu0
      %v3078 = vpop.f32.mrb[0].mxu0
      %v3079 = vadd.f32 %v3014, %v3078
      %v3080 = vpop.f32.mrb[0].mxu0
      %3081 = vdwg.mxu0
      %3082 = vmatprep.subr.bf16.mxu0 0
      %3083 = vmatpush1.bf16.msra.mxu0 %v1773
      %3084 = vmatprep.subr.bf16.mxu0 0
      %3085 = vmatpush1.bf16.msra.mxu0 %v1774
      %3086 = vmatprep.subr.bf16.mxu0 0
      %3087 = vmatpush1.bf16.msra.mxu0 %v1775
      %3088 = vmatprep.subr.bf16.mxu0 0
      %3089 = vmatpush1.bf16.msra.mxu0 %v1776
      %3090 = vmatprep.subr.bf16.mxu0 0
      %3091 = vmatpush1.bf16.msra.mxu0 %v1777
      %3092 = vmatprep.subr.bf16.mxu0 0
      %3093 = vmatpush1.bf16.msra.mxu0 %v1778
      %3094 = vmatprep.subr.bf16.mxu0 0
      %3095 = vmatpush1.bf16.msra.mxu0 %v1779
      %3096 = vmatprep.subr.bf16.mxu0 0
      %3097 = vmatpush1.bf16.msra.mxu0 %v1780
      %3098 = vmatprep.subr.bf16.mxu0 0
      %3099 = vmatpush1.bf16.msra.mxu0 %v1781
      %3100 = vmatprep.subr.bf16.mxu0 0
      %3101 = vmatpush1.bf16.msra.mxu0 %v1782
      %3102 = vmatprep.subr.bf16.mxu0 0
      %3103 = vmatpush1.bf16.msra.mxu0 %v1783
      %3104 = vmatprep.subr.bf16.mxu0 0
      %3105 = vmatpush1.bf16.msra.mxu0 %v1784
      %3106 = vmatprep.subr.bf16.mxu0 0
      %3107 = vmatpush1.bf16.msra.mxu0 %v1785
      %3108 = vmatprep.subr.bf16.mxu0 0
      %3109 = vmatpush1.bf16.msra.mxu0 %v1786
      %3110 = vmatprep.subr.bf16.mxu0 0
      %3111 = vmatpush1.bf16.msra.mxu0 %v1787
      %3112 = vmatprep.subr.bf16.mxu0 0
      %3113 = vmatpush1.bf16.msra.mxu0 %v1788
      %3114 = vmatprep.mubr.bf16.mxu0 %v2660
      %3115 = vmatmul.mubr.bf16.gmra.mrb[0].mxu0 %v2659
      %v3116 = vpop.f32.mrb[0].mxu0
      %v3117 = vadd.f32 %v3052, %v3116
      %v3118 = vpop.f32.mrb[0].mxu0
      %v3119 = vpop.f32.mrb[0].mxu0
      %v3120 = vadd.f32 %v3055, %v3119
      %v3121 = vpop.f32.mrb[0].mxu0
      %3122 = vmatprep.mubr.bf16.mxu0 %v2669
      %3123 = vmatmul.mubr.bf16.gmra.mrb[0].mxu0 %v2668
      %v3124 = vpop.f32.mrb[0].mxu0
      %v3125 = vadd.f32 %v3060, %v3124
      %v3126 = vpop.f32.mrb[0].mxu0
      %v3127 = vpop.f32.mrb[0].mxu0
      %v3128 = vadd.f32 %v3063, %v3127
      %v3129 = vpop.f32.mrb[0].mxu0
      %3130 = vmatprep.mubr.bf16.mxu0 %v2678
      %3131 = vmatmul.mubr.bf16.gmra.mrb[0].mxu0 %v2677
      %v3132 = vpop.f32.mrb[0].mxu0
      %v3133 = vadd.f32 %v3068, %v3132
      %v3134 = vpop.f32.mrb[0].mxu0
      %v3135 = vpop.f32.mrb[0].mxu0
      %v3136 = vadd.f32 %v3071, %v3135
      %v3137 = vpop.f32.mrb[0].mxu0
      %3138 = vmatprep.mubr.bf16.mxu0 %v2687
      %3139 = vmatmul.mubr.bf16.gmra.mrb[0].mxu0 %v2686
      %v3140 = vpop.f32.mrb[0].mxu0
      %v3141 = vadd.f32 %v3076, %v3140
      %v3142 = vpop.f32.mrb[0].mxu0
      %v3143 = vpop.f32.mrb[0].mxu0
      %v3144 = vadd.f32 %v3079, %v3143
      %v3145 = vpop.f32.mrb[0].mxu0
      %3146 = vdwg.mxu0
      %3147 = vmatprep.subr.bf16.mxu0 0
      %3148 = vmatpush1.bf16.msra.mxu0 %v1789
      %3149 = vmatprep.subr.bf16.mxu0 0
      %3150 = vmatpush1.bf16.msra.mxu0 %v1790
      %3151 = vmatprep.subr.bf16.mxu0 0
      %3152 = vmatpush1.bf16.msra.mxu0 %v1791
      %3153 = vmatprep.subr.bf16.mxu0 0
      %3154 = vmatpush1.bf16.msra.mxu0 %v1792
      %3155 = vmatprep.subr.bf16.mxu0 0
      %3156 = vmatpush1.bf16.msra.mxu0 %v1793
      %3157 = vmatprep.subr.bf16.mxu0 0
      %3158 = vmatpush1.bf16.msra.mxu0 %v1794
      %3159 = vmatprep.subr.bf16.mxu0 0
      %3160 = vmatpush1.bf16.msra.mxu0 %v1795
      %3161 = vmatprep.subr.bf16.mxu0 0
      %3162 = vmatpush1.bf16.msra.mxu0 %v1796
      %3163 = vmatprep.subr.bf16.mxu0 0
      %3164 = vmatpush1.bf16.msra.mxu0 %v1797
      %3165 = vmatprep.subr.bf16.mxu0 0
      %3166 = vmatpush1.bf16.msra.mxu0 %v1798
      %3167 = vmatprep.subr.bf16.mxu0 0
      %3168 = vmatpush1.bf16.msra.mxu0 %v1799
      %3169 = vmatprep.subr.bf16.mxu0 0
      %3170 = vmatpush1.bf16.msra.mxu0 %v1800
      %3171 = vmatprep.subr.bf16.mxu0 0
      %3172 = vmatpush1.bf16.msra.mxu0 %v1801
      %3173 = vmatprep.subr.bf16.mxu0 0
      %3174 = vmatpush1.bf16.msra.mxu0 %v1802
      %3175 = vmatprep.subr.bf16.mxu0 0
      %3176 = vmatpush1.bf16.msra.mxu0 %v1803
      %3177 = vmatprep.subr.bf16.mxu0 0
      %3178 = vmatpush1.bf16.msra.mxu0 %v1804
      %3179 = vmatprep.mubr.bf16.mxu0 %v2662
      %3180 = vmatmul.mubr.bf16.gmra.mrb[0].mxu0 %v2661
      %v3181 = vpop.f32.mrb[0].mxu0
      %v3182 = vadd.f32 %v3117, %v3181
      %v3183 = vpop.f32.mrb[0].mxu0
      %v3184 = vpop.f32.mrb[0].mxu0
      %v3185 = vadd.f32 %v3120, %v3184
      %v3186 = vpop.f32.mrb[0].mxu0
      %3187 = vmatprep.mubr.bf16.mxu0 %v2671
      %3188 = vmatmul.mubr.bf16.gmra.mrb[0].mxu0 %v2670
      %v3189 = vpop.f32.mrb[0].mxu0
      %v3190 = vadd.f32 %v3125, %v3189
      %v3191 = vpop.f32.mrb[0].mxu0
      %v3192 = vpop.f32.mrb[0].mxu0
      %v3193 = vadd.f32 %v3128, %v3192
      %v3194 = vpop.f32.mrb[0].mxu0
      %3195 = vmatprep.mubr.bf16.mxu0 %v2680
      %3196 = vmatmul.mubr.bf16.gmra.mrb[0].mxu0 %v2679
      %v3197 = vpop.f32.mrb[0].mxu0
      %v3198 = vadd.f32 %v3133, %v3197
      %v3199 = vpop.f32.mrb[0].mxu0
      %v3200 = vpop.f32.mrb[0].mxu0
      %v3201 = vadd.f32 %v3136, %v3200
      %v3202 = vpop.f32.mrb[0].mxu0
      %3203 = vmatprep.mubr.bf16.mxu0 %v2689
      %3204 = vmatmul.mubr.bf16.gmra.mrb[0].mxu0 %v2688
      %v3205 = vpop.f32.mrb[0].mxu0
      %v3206 = vadd.f32 %v3141, %v3205
      %v3207 = vpop.f32.mrb[0].mxu0
      %v3208 = vpop.f32.mrb[0].mxu0
      %v3209 = vadd.f32 %v3144, %v3208
      %v3210 = vpop.f32.mrb[0].mxu0
      %3211 = vdwg.mxu0
      %3212 = vmatprep.subr.bf16.mxu0 0
      %3213 = vmatpush1.bf16.msra.mxu0 %v1805
      %3214 = vmatprep.subr.bf16.mxu0 0
      %3215 = vmatpush1.bf16.msra.mxu0 %v1806
      %3216 = vmatprep.subr.bf16.mxu0 0
      %3217 = vmatpush1.bf16.msra.mxu0 %v1807
      %3218 = vmatprep.subr.bf16.mxu0 0
      %3219 = vmatpush1.bf16.msra.mxu0 %v1808
      %3220 = vmatprep.subr.bf16.mxu0 0
      %3221 = vmatpush1.bf16.msra.mxu0 %v1809
      %3222 = vmatprep.subr.bf16.mxu0 0
      %3223 = vmatpush1.bf16.msra.mxu0 %v1810
      %3224 = vmatprep.subr.bf16.mxu0 0
      %3225 = vmatpush1.bf16.msra.mxu0 %v1811
      %3226 = vmatprep.subr.bf16.mxu0 0
      %3227 = vmatpush1.bf16.msra.mxu0 %v1812
      %3228 = vmatprep.subr.bf16.mxu0 0
      %3229 = vmatpush1.bf16.msra.mxu0 %v1813
      %3230 = vmatprep.subr.bf16.mxu0 0
      %3231 = vmatpush1.bf16.msra.mxu0 %v1814
      %3232 = vmatprep.subr.bf16.mxu0 0
      %3233 = vmatpush1.bf16.msra.mxu0 %v1815
      %3234 = vmatprep.subr.bf16.mxu0 0
      %3235 = vmatpush1.bf16.msra.mxu0 %v1816
      %3236 = vmatprep.subr.bf16.mxu0 0
      %3237 = vmatpush1.bf16.msra.mxu0 %v1817
      %3238 = vmatprep.subr.bf16.mxu0 0
      %3239 = vmatpush1.bf16.msra.mxu0 %v1818
      %3240 = vmatprep.subr.bf16.mxu0 0
      %3241 = vmatpush1.bf16.msra.mxu0 %v1819
      %3242 = vmatprep.subr.bf16.mxu0 0
      %3243 = vmatpush1.bf16.msra.mxu0 %v1820
      %3244 = vmatprep.mubr.bf16.mxu0 %v2664
      %3245 = vmatmul.mubr.bf16.gmra.mrb[0].mxu0 %v2663
      %v3246 = vpop.f32.mrb[0].mxu0
      %v3247 = vadd.f32 %v3182, %v3246
      %v3248 = vpop.f32.mrb[0].mxu0
      %v3249 = vpop.f32.mrb[0].mxu0
      %v3250 = vadd.f32 %v3185, %v3249
      %v3251 = vpop.f32.mrb[0].mxu0
      %3252 = vmatprep.mubr.bf16.mxu0 %v2673
      %3253 = vmatmul.mubr.bf16.gmra.mrb[0].mxu0 %v2672
      %v3254 = vpop.f32.mrb[0].mxu0
      %v3255 = vadd.f32 %v3190, %v3254
      %v3256 = vpop.f32.mrb[0].mxu0
      %v3257 = vpop.f32.mrb[0].mxu0
      %v3258 = vadd.f32 %v3193, %v3257
      %v3259 = vpop.f32.mrb[0].mxu0
      %3260 = vmatprep.mubr.bf16.mxu0 %v2682
      %3261 = vmatmul.mubr.bf16.gmra.mrb[0].mxu0 %v2681
      %v3262 = vpop.f32.mrb[0].mxu0
      %v3263 = vadd.f32 %v3198, %v3262
      %v3264 = vpop.f32.mrb[0].mxu0
      %v3265 = vpop.f32.mrb[0].mxu0
      %v3266 = vadd.f32 %v3201, %v3265
      %v3267 = vpop.f32.mrb[0].mxu0
      %3268 = vmatprep.mubr.bf16.mxu0 %v2691
      %3269 = vmatmul.mubr.bf16.gmra.mrb[0].mxu0 %v2690
      %v3270 = vpop.f32.mrb[0].mxu0
      %v3271 = vadd.f32 %v3206, %v3270
      %v3272 = vpop.f32.mrb[0].mxu0
      %v3273 = vpop.f32.mrb[0].mxu0
      %v3274 = vadd.f32 %v3209, %v3273
      %v3275 = vpop.f32.mrb[0].mxu0
      %3276 = vdwg.mxu0
      %v3277 = vmax.f32 %v3247, 0.0
      %v3278 = vmax.f32 %v3250, 0.0
      %v3279 = vmax.f32 %v3255, 0.0
      %v3280 = vmax.f32 %v3258, 0.0
      %v3281 = vmax.f32 %v3263, 0.0
      %v3282 = vmax.f32 %v3266, 0.0
      %v3283 = vmax.f32 %v3271, 0.0
      %v3284 = vmax.f32 %v3274, 0.0
      %v3285 = vsel %vm2558, %v3277, 0.0
      %v3286 = vsel %vm2558, %v3278, 0.0
      %v3287 = vadd.f32 %v3285, %v3286
      %v3288 = vsel %vm2558, %v3279, 0.0
      %v3289 = vadd.f32 %v3287, %v3288
      %v3290 = vsel %vm2558, %v3280, 0.0
      %v3291 = vadd.f32 %v3289, %v3290
      %v3292 = vsel %vm2558, %v3281, 0.0
      %v3293 = vadd.f32 %v3291, %v3292
      %v3294 = vsel %vm2558, %v3282, 0.0
      %v3295 = vadd.f32 %v3293, %v3294
      %v3296 = vsel %vm2558, %v3283, 0.0
      %v3297 = vadd.f32 %v3295, %v3296
      %v3298 = vsel %vm2558, %v3284, 0.0
      %v3299 = vadd.f32 %v3297, %v3298
      %v3300 = vrot.slane %v3299, 4
      %v3301 = vadd.f32 %v3299, %v3300
      %v3302 = vrot.slane %v3301, 2
      %v3303 = vadd.f32 %v3301, %v3302
      %v3304 = vrot.slane %v3303, 1
      %v3305 = vadd.f32 %v3303, %v3304
      %v3306 = vmul.f32 %v3305, 0.009843133
      %v3307 = vadd.f32 %v2581, %v3306
      %s3308 = scalar_lea.vmem [#allocation2], 720
      %v3309 = vld [vmem:[%s3308 + $0x7] sm:$0xff]
      %v3310 = vld [vmem:[%s3308 + $0x1f] sm:$0xff]
      %v3311 = vld [vmem:[%s3308 + $0x37] sm:$0xff]
      %v3312 = vld [vmem:[%s3308 + $0x4f] sm:$0xff]
      %v3313 = vld [vmem:[%s3308 + $0x67] sm:$0xff]
      %v3314 = vld [vmem:[%s3308 + $0x7f] sm:$0xff]
      %v3315 = vld [vmem:[%s3308 + $0x97] sm:$0xff]
      %v3316 = vld [vmem:[%s3308 + $0xaf] sm:$0xff]
      %v3317 = vld [vmem:[%s3308 + $0x8] sm:$0xff]
      %v3318 = vld [vmem:[%s3308 + $0x20] sm:$0xff]
      %v3319 = vld [vmem:[%s3308 + $0x38] sm:$0xff]
      %v3320 = vld [vmem:[%s3308 + $0x50] sm:$0xff]
      %v3321 = vld [vmem:[%s3308 + $0x68] sm:$0xff]
      %v3322 = vld [vmem:[%s3308 + $0x80] sm:$0xff]
      %v3323 = vld [vmem:[%s3308 + $0x98] sm:$0xff]
      %v3324 = vld [vmem:[%s3308 + $0xb0] sm:$0xff]
      %v3325 = vld [vmem:[%s3308 + $0x9] sm:$0xff]
      %v3326 = vld [vmem:[%s3308 + $0x21] sm:$0xff]
      %v3327 = vld [vmem:[%s3308 + $0x39] sm:$0xff]
      %v3328 = vld [vmem:[%s3308 + $0x51] sm:$0xff]
      %v3329 = vld [vmem:[%s3308 + $0x69] sm:$0xff]
      %v3330 = vld [vmem:[%s3308 + $0x81] sm:$0xff]
      %v3331 = vld [vmem:[%s3308 + $0x99] sm:$0xff]
      %v3332 = vld [vmem:[%s3308 + $0xb1] sm:$0xff]
      %s3333 = scalar_lea.vmem [#allocation2], 744
      %v3334 = vld [vmem:[%s3333 + $0x7] sm:$0xff]
      %v3335 = vld [vmem:[%s3333 + $0x1f] sm:$0xff]
      %v3336 = vld [vmem:[%s3333 + $0x37] sm:$0xff]
      %v3337 = vld [vmem:[%s3333 + $0x4f] sm:$0xff]
      %v3338 = vld [vmem:[%s3333 + $0x67] sm:$0xff]
      %v3339 = vld [vmem:[%s3333 + $0x7f] sm:$0xff]
      %v3340 = vld [vmem:[%s3333 + $0x97] sm:$0xff]
      %v3341 = vld [vmem:[%s3333 + $0xaf] sm:$0xff]
      %v3342 = vld [vmem:[%s3333 + $0x8] sm:$0xff]
      %v3343 = vld [vmem:[%s3333 + $0x20] sm:$0xff]
      %v3344 = vld [vmem:[%s3333 + $0x38] sm:$0xff]
      %v3345 = vld [vmem:[%s3333 + $0x50] sm:$0xff]
      %v3346 = vld [vmem:[%s3333 + $0x68] sm:$0xff]
      %v3347 = vld [vmem:[%s3333 + $0x80] sm:$0xff]
      %v3348 = vld [vmem:[%s3333 + $0x98] sm:$0xff]
      %v3349 = vld [vmem:[%s3333 + $0xb0] sm:$0xff]
      %v3350 = vld [vmem:[%s3333 + $0x9] sm:$0xff]
      %v3351 = vld [vmem:[%s3333 + $0x21] sm:$0xff]
      %v3352 = vld [vmem:[%s3333 + $0x39] sm:$0xff]
      %v3353 = vld [vmem:[%s3333 + $0x51] sm:$0xff]
      %v3354 = vld [vmem:[%s3333 + $0x69] sm:$0xff]
      %v3355 = vld [vmem:[%s3333 + $0x81] sm:$0xff]
      %v3356 = vld [vmem:[%s3333 + $0x99] sm:$0xff]
      %v3357 = vld [vmem:[%s3333 + $0xb1] sm:$0xff]
      %s3358 = scalar_lea.vmem [#allocation2], 768
      %v3359 = vld [vmem:[%s3358 + $0x7] sm:$0xff]
      %v3360 = vld [vmem:[%s3358 + $0x1f] sm:$0xff]
      %v3361 = vld [vmem:[%s3358 + $0x37] sm:$0xff]
      %v3362 = vld [vmem:[%s3358 + $0x4f] sm:$0xff]
      %v3363 = vld [vmem:[%s3358 + $0x67] sm:$0xff]
      %v3364 = vld [vmem:[%s3358 + $0x7f] sm:$0xff]
      %v3365 = vld [vmem:[%s3358 + $0x97] sm:$0xff]
      %v3366 = vld [vmem:[%s3358 + $0xaf] sm:$0xff]
      %v3367 = vld [vmem:[%s3358 + $0x8] sm:$0xff]
      %v3368 = vld [vmem:[%s3358 + $0x20] sm:$0xff]
      %v3369 = vld [vmem:[%s3358 + $0x38] sm:$0xff]
      %v3370 = vld [vmem:[%s3358 + $0x50] sm:$0xff]
      %v3371 = vld [vmem:[%s3358 + $0x68] sm:$0xff]
      %v3372 = vld [vmem:[%s3358 + $0x80] sm:$0xff]
      %v3373 = vld [vmem:[%s3358 + $0x98] sm:$0xff]
      %v3374 = vld [vmem:[%s3358 + $0xb0] sm:$0xff]
      %v3375 = vld [vmem:[%s3358 + $0x9] sm:$0xff]
      %v3376 = vld [vmem:[%s3358 + $0x21] sm:$0xff]
      %v3377 = vld [vmem:[%s3358 + $0x39] sm:$0xff]
      %v3378 = vld [vmem:[%s3358 + $0x51] sm:$0xff]
      %v3379 = vld [vmem:[%s3358 + $0x69] sm:$0xff]
      %v3380 = vld [vmem:[%s3358 + $0x81] sm:$0xff]
      %v3381 = vld [vmem:[%s3358 + $0x99] sm:$0xff]
      %v3382 = vld [vmem:[%s3358 + $0xb1] sm:$0xff]
      %v3383 = vpack.c.bf16 %v3310, %v3309
      %v3384 = vpack.c.bf16 %v3318, %v3317
      %v3385 = vpack.c.bf16 %v3326, %v3325
      %v3386 = vpack.c.bf16 %v3335, %v3334
      %v3387 = vpack.c.bf16 %v3343, %v3342
      %v3388 = vpack.c.bf16 %v3351, %v3350
      %v3389 = vpack.c.bf16 %v3360, %v3359
      %v3390 = vpack.c.bf16 %v3368, %v3367
      %v3391 = vpack.c.bf16 %v3376, %v3375
      %v3392 = vpack.c.bf16 %v3312, %v3311
      %v3393 = vpack.c.bf16 %v3320, %v3319
      %v3394 = vpack.c.bf16 %v3328, %v3327
      %v3395 = vpack.c.bf16 %v3337, %v3336
      %v3396 = vpack.c.bf16 %v3345, %v3344
      %v3397 = vpack.c.bf16 %v3353, %v3352
      %v3398 = vpack.c.bf16 %v3362, %v3361
      %v3399 = vpack.c.bf16 %v3370, %v3369
      %v3400 = vpack.c.bf16 %v3378, %v3377
      %v3401 = vpack.c.bf16 %v3314, %v3313
      %v3402 = vpack.c.bf16 %v3322, %v3321
      %v3403 = vpack.c.bf16 %v3330, %v3329
      %v3404 = vpack.c.bf16 %v3339, %v3338
      %v3405 = vpack.c.bf16 %v3347, %v3346
      %v3406 = vpack.c.bf16 %v3355, %v3354
      %v3407 = vpack.c.bf16 %v3364, %v3363
      %v3408 = vpack.c.bf16 %v3372, %v3371
      %v3409 = vpack.c.bf16 %v3380, %v3379
      %v3410 = vpack.c.bf16 %v3316, %v3315
      %v3411 = vpack.c.bf16 %v3324, %v3323
      %v3412 = vpack.c.bf16 %v3332, %v3331
      %v3413 = vpack.c.bf16 %v3341, %v3340
      %v3414 = vpack.c.bf16 %v3349, %v3348
      %v3415 = vpack.c.bf16 %v3357, %v3356
      %v3416 = vpack.c.bf16 %v3366, %v3365
      %v3417 = vpack.c.bf16 %v3374, %v3373
      %v3418 = vpack.c.bf16 %v3382, %v3381
      %3419 = vmatprep.subr.bf16.mxu0 0
      %3420 = vmatpush1.bf16.msra.mxu0 %v1677
      %3421 = vmatprep.subr.bf16.mxu0 0
      %3422 = vmatpush1.bf16.msra.mxu0 %v1678
      %3423 = vmatprep.subr.bf16.mxu0 0
      %3424 = vmatpush1.bf16.msra.mxu0 %v1679
      %3425 = vmatprep.subr.bf16.mxu0 0
      %3426 = vmatpush1.bf16.msra.mxu0 %v1680
      %3427 = vmatprep.subr.bf16.mxu0 0
      %3428 = vmatpush1.bf16.msra.mxu0 %v1681
      %3429 = vmatprep.subr.bf16.mxu0 0
      %3430 = vmatpush1.bf16.msra.mxu0 %v1682
      %3431 = vmatprep.subr.bf16.mxu0 0
      %3432 = vmatpush1.bf16.msra.mxu0 %v1683
      %3433 = vmatprep.subr.bf16.mxu0 0
      %3434 = vmatpush1.bf16.msra.mxu0 %v1684
      %3435 = vmatprep.subr.bf16.mxu0 0
      %3436 = vmatpush1.bf16.msra.mxu0 %v1685
      %3437 = vmatprep.subr.bf16.mxu0 0
      %3438 = vmatpush1.bf16.msra.mxu0 %v1686
      %3439 = vmatprep.subr.bf16.mxu0 0
      %3440 = vmatpush1.bf16.msra.mxu0 %v1687
      %3441 = vmatprep.subr.bf16.mxu0 0
      %3442 = vmatpush1.bf16.msra.mxu0 %v1688
      %3443 = vmatprep.subr.bf16.mxu0 0
      %3444 = vmatpush1.bf16.msra.mxu0 %v1689
      %3445 = vmatprep.subr.bf16.mxu0 0
      %3446 = vmatpush1.bf16.msra.mxu0 %v1690
      %3447 = vmatprep.subr.bf16.mxu0 0
      %3448 = vmatpush1.bf16.msra.mxu0 %v1691
      %3449 = vmatprep.subr.bf16.mxu0 0
      %3450 = vmatpush1.bf16.msra.mxu0 %v1692
      %3451 = vmatprep.mubr.bf16.mxu0 %v2657
      %3452 = vmatmul.mubr.bf16.gmra.mrb[0].mxu0 %v2656
      %v3453 = vpop.f32.mrb[0].mxu0
      %v3454 = vadd.f32 0.0, %v3453
      %v3455 = vpop.f32.mrb[0].mxu0
      %v3456 = vpop.f32.mrb[0].mxu0
      %v3457 = vadd.f32 0.0, %v3456
      %v3458 = vpop.f32.mrb[0].mxu0
      %3459 = vmatprep.mubr.bf16.mxu0 %v2666
      %3460 = vmatmul.mubr.bf16.gmra.mrb[0].mxu0 %v2665
      %v3461 = vpop.f32.mrb[0].mxu0
      %v3462 = vadd.f32 0.0, %v3461
      %v3463 = vpop.f32.mrb[0].mxu0
      %v3464 = vpop.f32.mrb[0].mxu0
      %v3465 = vadd.f32 0.0, %v3464
      %v3466 = vpop.f32.mrb[0].mxu0
      %3467 = vmatprep.mubr.bf16.mxu0 %v2675
      %3468 = vmatmul.mubr.bf16.gmra.mrb[0].mxu0 %v2674
      %v3469 = vpop.f32.mrb[0].mxu0
      %v3470 = vadd.f32 0.0, %v3469
      %v3471 = vpop.f32.mrb[0].mxu0
      %v3472 = vpop.f32.mrb[0].mxu0
      %v3473 = vadd.f32 0.0, %v3472
      %v3474 = vpop.f32.mrb[0].mxu0
      %3475 = vmatprep.mubr.bf16.mxu0 %v2684
      %3476 = vmatmul.mubr.bf16.gmra.mrb[0].mxu0 %v2683
      %v3477 = vpop.f32.mrb[0].mxu0
      %v3478 = vadd.f32 0.0, %v3477
      %v3479 = vpop.f32.mrb[0].mxu0
      %v3480 = vpop.f32.mrb[0].mxu0
      %v3481 = vadd.f32 0.0, %v3480
      %v3482 = vpop.f32.mrb[0].mxu0
      %3483 = vdwg.mxu0
      %3484 = vmatprep.subr.bf16.mxu0 0
      %3485 = vmatpush1.bf16.msra.mxu0 %v1693
      %3486 = vmatprep.subr.bf16.mxu0 0
      %3487 = vmatpush1.bf16.msra.mxu0 %v1694
      %3488 = vmatprep.subr.bf16.mxu0 0
      %3489 = vmatpush1.bf16.msra.mxu0 %v1695
      %3490 = vmatprep.subr.bf16.mxu0 0
      %3491 = vmatpush1.bf16.msra.mxu0 %v1696
      %3492 = vmatprep.subr.bf16.mxu0 0
      %3493 = vmatpush1.bf16.msra.mxu0 %v1697
      %3494 = vmatprep.subr.bf16.mxu0 0
      %3495 = vmatpush1.bf16.msra.mxu0 %v1698
      %3496 = vmatprep.subr.bf16.mxu0 0
      %3497 = vmatpush1.bf16.msra.mxu0 %v1699
      %3498 = vmatprep.subr.bf16.mxu0 0
      %3499 = vmatpush1.bf16.msra.mxu0 %v1700
      %3500 = vmatprep.subr.bf16.mxu0 0
      %3501 = vmatpush1.bf16.msra.mxu0 %v1701
      %3502 = vmatprep.subr.bf16.mxu0 0
      %3503 = vmatpush1.bf16.msra.mxu0 %v1702
      %3504 = vmatprep.subr.bf16.mxu0 0
      %3505 = vmatpush1.bf16.msra.mxu0 %v1703
      %3506 = vmatprep.subr.bf16.mxu0 0
      %3507 = vmatpush1.bf16.msra.mxu0 %v1704
      %3508 = vmatprep.subr.bf16.mxu0 0
      %3509 = vmatpush1.bf16.msra.mxu0 %v1705
      %3510 = vmatprep.subr.bf16.mxu0 0
      %3511 = vmatpush1.bf16.msra.mxu0 %v1706
      %3512 = vmatprep.subr.bf16.mxu0 0
      %3513 = vmatpush1.bf16.msra.mxu0 %v1707
      %3514 = vmatprep.subr.bf16.mxu0 0
      %3515 = vmatpush1.bf16.msra.mxu0 %v1708
      %3516 = vmatprep.mubr.bf16.mxu0 %v2659
      %3517 = vmatmul.mubr.bf16.gmra.mrb[0].mxu0 %v2658
      %v3518 = vpop.f32.mrb[0].mxu0
      %v3519 = vadd.f32 %v3454, %v3518
      %v3520 = vpop.f32.mrb[0].mxu0
      %v3521 = vpop.f32.mrb[0].mxu0
      %v3522 = vadd.f32 %v3457, %v3521
      %v3523 = vpop.f32.mrb[0].mxu0
      %3524 = vmatprep.mubr.bf16.mxu0 %v2668
      %3525 = vmatmul.mubr.bf16.gmra.mrb[0].mxu0 %v2667
      %v3526 = vpop.f32.mrb[0].mxu0
      %v3527 = vadd.f32 %v3462, %v3526
      %v3528 = vpop.f32.mrb[0].mxu0
      %v3529 = vpop.f32.mrb[0].mxu0
      %v3530 = vadd.f32 %v3465, %v3529
      %v3531 = vpop.f32.mrb[0].mxu0
      %3532 = vmatprep.mubr.bf16.mxu0 %v2677
      %3533 = vmatmul.mubr.bf16.gmra.mrb[0].mxu0 %v2676
      %v3534 = vpop.f32.mrb[0].mxu0
      %v3535 = vadd.f32 %v3470, %v3534
      %v3536 = vpop.f32.mrb[0].mxu0
      %v3537 = vpop.f32.mrb[0].mxu0
      %v3538 = vadd.f32 %v3473, %v3537
      %v3539 = vpop.f32.mrb[0].mxu0
      %3540 = vmatprep.mubr.bf16.mxu0 %v2686
      %3541 = vmatmul.mubr.bf16.gmra.mrb[0].mxu0 %v2685
      %v3542 = vpop.f32.mrb[0].mxu0
      %v3543 = vadd.f32 %v3478, %v3542
      %v3544 = vpop.f32.mrb[0].mxu0
      %v3545 = vpop.f32.mrb[0].mxu0
      %v3546 = vadd.f32 %v3481, %v3545
      %v3547 = vpop.f32.mrb[0].mxu0
      %3548 = vdwg.mxu0
      %3549 = vmatprep.subr.bf16.mxu0 0
      %3550 = vmatpush1.bf16.msra.mxu0 %v1709
      %3551 = vmatprep.subr.bf16.mxu0 0
      %3552 = vmatpush1.bf16.msra.mxu0 %v1710
      %3553 = vmatprep.subr.bf16.mxu0 0
      %3554 = vmatpush1.bf16.msra.mxu0 %v1711
      %3555 = vmatprep.subr.bf16.mxu0 0
      %3556 = vmatpush1.bf16.msra.mxu0 %v1712
      %3557 = vmatprep.subr.bf16.mxu0 0
      %3558 = vmatpush1.bf16.msra.mxu0 %v1713
      %3559 = vmatprep.subr.bf16.mxu0 0
      %3560 = vmatpush1.bf16.msra.mxu0 %v1714
      %3561 = vmatprep.subr.bf16.mxu0 0
      %3562 = vmatpush1.bf16.msra.mxu0 %v1715
      %3563 = vmatprep.subr.bf16.mxu0 0
      %3564 = vmatpush1.bf16.msra.mxu0 %v1716
      %3565 = vmatprep.subr.bf16.mxu0 0
      %3566 = vmatpush1.bf16.msra.mxu0 %v1717
      %3567 = vmatprep.subr.bf16.mxu0 0
      %3568 = vmatpush1.bf16.msra.mxu0 %v1718
      %3569 = vmatprep.subr.bf16.mxu0 0
      %3570 = vmatpush1.bf16.msra.mxu0 %v1719
      %3571 = vmatprep.subr.bf16.mxu0 0
      %3572 = vmatpush1.bf16.msra.mxu0 %v1720
      %3573 = vmatprep.subr.bf16.mxu0 0
      %3574 = vmatpush1.bf16.msra.mxu0 %v1721
      %3575 = vmatprep.subr.bf16.mxu0 0
      %3576 = vmatpush1.bf16.msra.mxu0 %v1722
      %3577 = vmatprep.subr.bf16.mxu0 0
      %3578 = vmatpush1.bf16.msra.mxu0 %v1723
      %3579 = vmatprep.subr.bf16.mxu0 0
      %3580 = vmatpush1.bf16.msra.mxu0 %v1724
      %3581 = vmatprep.mubr.bf16.mxu0 %v2661
      %3582 = vmatmul.mubr.bf16.gmra.mrb[0].mxu0 %v2660
      %v3583 = vpop.f32.mrb[0].mxu0
      %v3584 = vadd.f32 %v3519, %v3583
      %v3585 = vpop.f32.mrb[0].mxu0
      %v3586 = vpop.f32.mrb[0].mxu0
      %v3587 = vadd.f32 %v3522, %v3586
      %v3588 = vpop.f32.mrb[0].mxu0
      %3589 = vmatprep.mubr.bf16.mxu0 %v2670
      %3590 = vmatmul.mubr.bf16.gmra.mrb[0].mxu0 %v2669
      %v3591 = vpop.f32.mrb[0].mxu0
      %v3592 = vadd.f32 %v3527, %v3591
      %v3593 = vpop.f32.mrb[0].mxu0
      %v3594 = vpop.f32.mrb[0].mxu0
      %v3595 = vadd.f32 %v3530, %v3594
      %v3596 = vpop.f32.mrb[0].mxu0
      %3597 = vmatprep.mubr.bf16.mxu0 %v2679
      %3598 = vmatmul.mubr.bf16.gmra.mrb[0].mxu0 %v2678
      %v3599 = vpop.f32.mrb[0].mxu0
      %v3600 = vadd.f32 %v3535, %v3599
      %v3601 = vpop.f32.mrb[0].mxu0
      %v3602 = vpop.f32.mrb[0].mxu0
      %v3603 = vadd.f32 %v3538, %v3602
      %v3604 = vpop.f32.mrb[0].mxu0
      %3605 = vmatprep.mubr.bf16.mxu0 %v2688
      %3606 = vmatmul.mubr.bf16.gmra.mrb[0].mxu0 %v2687
      %v3607 = vpop.f32.mrb[0].mxu0
      %v3608 = vadd.f32 %v3543, %v3607
      %v3609 = vpop.f32.mrb[0].mxu0
      %v3610 = vpop.f32.mrb[0].mxu0
      %v3611 = vadd.f32 %v3546, %v3610
      %v3612 = vpop.f32.mrb[0].mxu0
      %3613 = vdwg.mxu0
      %3614 = vmatprep.subr.bf16.mxu0 0
      %3615 = vmatpush1.bf16.msra.mxu0 %v1725
      %3616 = vmatprep.subr.bf16.mxu0 0
      %3617 = vmatpush1.bf16.msra.mxu0 %v1726
      %3618 = vmatprep.subr.bf16.mxu0 0
      %3619 = vmatpush1.bf16.msra.mxu0 %v1727
      %3620 = vmatprep.subr.bf16.mxu0 0
      %3621 = vmatpush1.bf16.msra.mxu0 %v1728
      %3622 = vmatprep.subr.bf16.mxu0 0
      %3623 = vmatpush1.bf16.msra.mxu0 %v1729
      %3624 = vmatprep.subr.bf16.mxu0 0
      %3625 = vmatpush1.bf16.msra.mxu0 %v1730
      %3626 = vmatprep.subr.bf16.mxu0 0
      %3627 = vmatpush1.bf16.msra.mxu0 %v1731
      %3628 = vmatprep.subr.bf16.mxu0 0
      %3629 = vmatpush1.bf16.msra.mxu0 %v1732
      %3630 = vmatprep.subr.bf16.mxu0 0
      %3631 = vmatpush1.bf16.msra.mxu0 %v1733
      %3632 = vmatprep.subr.bf16.mxu0 0
      %3633 = vmatpush1.bf16.msra.mxu0 %v1734
      %3634 = vmatprep.subr.bf16.mxu0 0
      %3635 = vmatpush1.bf16.msra.mxu0 %v1735
      %3636 = vmatprep.subr.bf16.mxu0 0
      %3637 = vmatpush1.bf16.msra.mxu0 %v1736
      %3638 = vmatprep.subr.bf16.mxu0 0
      %3639 = vmatpush1.bf16.msra.mxu0 %v1737
      %3640 = vmatprep.subr.bf16.mxu0 0
      %3641 = vmatpush1.bf16.msra.mxu0 %v1738
      %3642 = vmatprep.subr.bf16.mxu0 0
      %3643 = vmatpush1.bf16.msra.mxu0 %v1739
      %3644 = vmatprep.subr.bf16.mxu0 0
      %3645 = vmatpush1.bf16.msra.mxu0 %v1740
      %3646 = vmatprep.mubr.bf16.mxu0 %v2663
      %3647 = vmatmul.mubr.bf16.gmra.mrb[0].mxu0 %v2662
      %v3648 = vpop.f32.mrb[0].mxu0
      %v3649 = vadd.f32 %v3584, %v3648
      %v3650 = vpop.f32.mrb[0].mxu0
      %v3651 = vpop.f32.mrb[0].mxu0
      %v3652 = vadd.f32 %v3587, %v3651
      %v3653 = vpop.f32.mrb[0].mxu0
      %3654 = vmatprep.mubr.bf16.mxu0 %v2672
      %3655 = vmatmul.mubr.bf16.gmra.mrb[0].mxu0 %v2671
      %v3656 = vpop.f32.mrb[0].mxu0
      %v3657 = vadd.f32 %v3592, %v3656
      %v3658 = vpop.f32.mrb[0].mxu0
      %v3659 = vpop.f32.mrb[0].mxu0
      %v3660 = vadd.f32 %v3595, %v3659
      %v3661 = vpop.f32.mrb[0].mxu0
      %3662 = vmatprep.mubr.bf16.mxu0 %v2681
      %3663 = vmatmul.mubr.bf16.gmra.mrb[0].mxu0 %v2680
      %v3664 = vpop.f32.mrb[0].mxu0
      %v3665 = vadd.f32 %v3600, %v3664
      %v3666 = vpop.f32.mrb[0].mxu0
      %v3667 = vpop.f32.mrb[0].mxu0
      %v3668 = vadd.f32 %v3603, %v3667
      %v3669 = vpop.f32.mrb[0].mxu0
      %3670 = vmatprep.mubr.bf16.mxu0 %v2690
      %3671 = vmatmul.mubr.bf16.gmra.mrb[0].mxu0 %v2689
      %v3672 = vpop.f32.mrb[0].mxu0
      %v3673 = vadd.f32 %v3608, %v3672
      %v3674 = vpop.f32.mrb[0].mxu0
      %v3675 = vpop.f32.mrb[0].mxu0
      %v3676 = vadd.f32 %v3611, %v3675
      %v3677 = vpop.f32.mrb[0].mxu0
      %3678 = vdwg.mxu0
      %3679 = vmatprep.subr.bf16.mxu0 0
      %3680 = vmatpush1.bf16.msra.mxu0 %v1741
      %3681 = vmatprep.subr.bf16.mxu0 0
      %3682 = vmatpush1.bf16.msra.mxu0 %v1742
      %3683 = vmatprep.subr.bf16.mxu0 0
      %3684 = vmatpush1.bf16.msra.mxu0 %v1743
      %3685 = vmatprep.subr.bf16.mxu0 0
      %3686 = vmatpush1.bf16.msra.mxu0 %v1744
      %3687 = vmatprep.subr.bf16.mxu0 0
      %3688 = vmatpush1.bf16.msra.mxu0 %v1745
      %3689 = vmatprep.subr.bf16.mxu0 0
      %3690 = vmatpush1.bf16.msra.mxu0 %v1746
      %3691 = vmatprep.subr.bf16.mxu0 0
      %3692 = vmatpush1.bf16.msra.mxu0 %v1747
      %3693 = vmatprep.subr.bf16.mxu0 0
      %3694 = vmatpush1.bf16.msra.mxu0 %v1748
      %3695 = vmatprep.subr.bf16.mxu0 0
      %3696 = vmatpush1.bf16.msra.mxu0 %v1749
      %3697 = vmatprep.subr.bf16.mxu0 0
      %3698 = vmatpush1.bf16.msra.mxu0 %v1750
      %3699 = vmatprep.subr.bf16.mxu0 0
      %3700 = vmatpush1.bf16.msra.mxu0 %v1751
      %3701 = vmatprep.subr.bf16.mxu0 0
      %3702 = vmatpush1.bf16.msra.mxu0 %v1752
      %3703 = vmatprep.subr.bf16.mxu0 0
      %3704 = vmatpush1.bf16.msra.mxu0 %v1753
      %3705 = vmatprep.subr.bf16.mxu0 0
      %3706 = vmatpush1.bf16.msra.mxu0 %v1754
      %3707 = vmatprep.subr.bf16.mxu0 0
      %3708 = vmatpush1.bf16.msra.mxu0 %v1755
      %3709 = vmatprep.subr.bf16.mxu0 0
      %3710 = vmatpush1.bf16.msra.mxu0 %v1756
      %3711 = vmatprep.mubr.bf16.mxu0 %v3383
      %3712 = vmatmul.mubr.bf16.gmra.mrb[0].mxu0 %v2664
      %v3713 = vpop.f32.mrb[0].mxu0
      %v3714 = vadd.f32 %v3649, %v3713
      %v3715 = vpop.f32.mrb[0].mxu0
      %v3716 = vpop.f32.mrb[0].mxu0
      %v3717 = vadd.f32 %v3652, %v3716
      %v3718 = vpop.f32.mrb[0].mxu0
      %3719 = vmatprep.mubr.bf16.mxu0 %v3392
      %3720 = vmatmul.mubr.bf16.gmra.mrb[0].mxu0 %v2673
      %v3721 = vpop.f32.mrb[0].mxu0
      %v3722 = vadd.f32 %v3657, %v3721
      %v3723 = vpop.f32.mrb[0].mxu0
      %v3724 = vpop.f32.mrb[0].mxu0
      %v3725 = vadd.f32 %v3660, %v3724
      %v3726 = vpop.f32.mrb[0].mxu0
      %3727 = vmatprep.mubr.bf16.mxu0 %v3401
      %3728 = vmatmul.mubr.bf16.gmra.mrb[0].mxu0 %v2682
      %v3729 = vpop.f32.mrb[0].mxu0
      %v3730 = vadd.f32 %v3665, %v3729
      %v3731 = vpop.f32.mrb[0].mxu0
      %v3732 = vpop.f32.mrb[0].mxu0
      %v3733 = vadd.f32 %v3668, %v3732
      %v3734 = vpop.f32.mrb[0].mxu0
      %3735 = vmatprep.mubr.bf16.mxu0 %v3410
      %3736 = vmatmul.mubr.bf16.gmra.mrb[0].mxu0 %v2691
      %v3737 = vpop.f32.mrb[0].mxu0
      %v3738 = vadd.f32 %v3673, %v3737
      %v3739 = vpop.f32.mrb[0].mxu0
      %v3740 = vpop.f32.mrb[0].mxu0
      %v3741 = vadd.f32 %v3676, %v3740
      %v3742 = vpop.f32.mrb[0].mxu0
      %3743 = vdwg.mxu0
      %3744 = vmatprep.subr.bf16.mxu0 0
      %3745 = vmatpush1.bf16.msra.mxu0 %v1757
      %3746 = vmatprep.subr.bf16.mxu0 0
      %3747 = vmatpush1.bf16.msra.mxu0 %v1758
      %3748 = vmatprep.subr.bf16.mxu0 0
      %3749 = vmatpush1.bf16.msra.mxu0 %v1759
      %3750 = vmatprep.subr.bf16.mxu0 0
      %3751 = vmatpush1.bf16.msra.mxu0 %v1760
      %3752 = vmatprep.subr.bf16.mxu0 0
      %3753 = vmatpush1.bf16.msra.mxu0 %v1761
      %3754 = vmatprep.subr.bf16.mxu0 0
      %3755 = vmatpush1.bf16.msra.mxu0 %v1762
      %3756 = vmatprep.subr.bf16.mxu0 0
      %3757 = vmatpush1.bf16.msra.mxu0 %v1763
      %3758 = vmatprep.subr.bf16.mxu0 0
      %3759 = vmatpush1.bf16.msra.mxu0 %v1764
      %3760 = vmatprep.subr.bf16.mxu0 0
      %3761 = vmatpush1.bf16.msra.mxu0 %v1765
      %3762 = vmatprep.subr.bf16.mxu0 0
      %3763 = vmatpush1.bf16.msra.mxu0 %v1766
      %3764 = vmatprep.subr.bf16.mxu0 0
      %3765 = vmatpush1.bf16.msra.mxu0 %v1767
      %3766 = vmatprep.subr.bf16.mxu0 0
      %3767 = vmatpush1.bf16.msra.mxu0 %v1768
      %3768 = vmatprep.subr.bf16.mxu0 0
      %3769 = vmatpush1.bf16.msra.mxu0 %v1769
      %3770 = vmatprep.subr.bf16.mxu0 0
      %3771 = vmatpush1.bf16.msra.mxu0 %v1770
      %3772 = vmatprep.subr.bf16.mxu0 0
      %3773 = vmatpush1.bf16.msra.mxu0 %v1771
      %3774 = vmatprep.subr.bf16.mxu0 0
      %3775 = vmatpush1.bf16.msra.mxu0 %v1772
      %3776 = vmatprep.mubr.bf16.mxu0 %v3385
      %3777 = vmatmul.mubr.bf16.gmra.mrb[0].mxu0 %v3384
      %v3778 = vpop.f32.mrb[0].mxu0
      %v3779 = vadd.f32 %v3714, %v3778
      %v3780 = vpop.f32.mrb[0].mxu0
      %v3781 = vpop.f32.mrb[0].mxu0
      %v3782 = vadd.f32 %v3717, %v3781
      %v3783 = vpop.f32.mrb[0].mxu0
      %3784 = vmatprep.mubr.bf16.mxu0 %v3394
      %3785 = vmatmul.mubr.bf16.gmra.mrb[0].mxu0 %v3393
      %v3786 = vpop.f32.mrb[0].mxu0
      %v3787 = vadd.f32 %v3722, %v3786
      %v3788 = vpop.f32.mrb[0].mxu0
      %v3789 = vpop.f32.mrb[0].mxu0
      %v3790 = vadd.f32 %v3725, %v3789
      %v3791 = vpop.f32.mrb[0].mxu0
      %3792 = vmatprep.mubr.bf16.mxu0 %v3403
      %3793 = vmatmul.mubr.bf16.gmra.mrb[0].mxu0 %v3402
      %v3794 = vpop.f32.mrb[0].mxu0
      %v3795 = vadd.f32 %v3730, %v3794
      %v3796 = vpop.f32.mrb[0].mxu0
      %v3797 = vpop.f32.mrb[0].mxu0
      %v3798 = vadd.f32 %v3733, %v3797
      %v3799 = vpop.f32.mrb[0].mxu0
      %3800 = vmatprep.mubr.bf16.mxu0 %v3412
      %3801 = vmatmul.mubr.bf16.gmra.mrb[0].mxu0 %v3411
      %v3802 = vpop.f32.mrb[0].mxu0
      %v3803 = vadd.f32 %v3738, %v3802
      %v3804 = vpop.f32.mrb[0].mxu0
      %v3805 = vpop.f32.mrb[0].mxu0
      %v3806 = vadd.f32 %v3741, %v3805
      %v3807 = vpop.f32.mrb[0].mxu0
      %3808 = vdwg.mxu0
      %3809 = vmatprep.subr.bf16.mxu0 0
      %3810 = vmatpush1.bf16.msra.mxu0 %v1773
      %3811 = vmatprep.subr.bf16.mxu0 0
      %3812 = vmatpush1.bf16.msra.mxu0 %v1774
      %3813 = vmatprep.subr.bf16.mxu0 0
      %3814 = vmatpush1.bf16.msra.mxu0 %v1775
      %3815 = vmatprep.subr.bf16.mxu0 0
      %3816 = vmatpush1.bf16.msra.mxu0 %v1776
      %3817 = vmatprep.subr.bf16.mxu0 0
      %3818 = vmatpush1.bf16.msra.mxu0 %v1777
      %3819 = vmatprep.subr.bf16.mxu0 0
      %3820 = vmatpush1.bf16.msra.mxu0 %v1778
      %3821 = vmatprep.subr.bf16.mxu0 0
      %3822 = vmatpush1.bf16.msra.mxu0 %v1779
      %3823 = vmatprep.subr.bf16.mxu0 0
      %3824 = vmatpush1.bf16.msra.mxu0 %v1780
      %3825 = vmatprep.subr.bf16.mxu0 0
      %3826 = vmatpush1.bf16.msra.mxu0 %v1781
      %3827 = vmatprep.subr.bf16.mxu0 0
      %3828 = vmatpush1.bf16.msra.mxu0 %v1782
      %3829 = vmatprep.subr.bf16.mxu0 0
      %3830 = vmatpush1.bf16.msra.mxu0 %v1783
      %3831 = vmatprep.subr.bf16.mxu0 0
      %3832 = vmatpush1.bf16.msra.mxu0 %v1784
      %3833 = vmatprep.subr.bf16.mxu0 0
      %3834 = vmatpush1.bf16.msra.mxu0 %v1785
      %3835 = vmatprep.subr.bf16.mxu0 0
      %3836 = vmatpush1.bf16.msra.mxu0 %v1786
      %3837 = vmatprep.subr.bf16.mxu0 0
      %3838 = vmatpush1.bf16.msra.mxu0 %v1787
      %3839 = vmatprep.subr.bf16.mxu0 0
      %3840 = vmatpush1.bf16.msra.mxu0 %v1788
      %3841 = vmatprep.mubr.bf16.mxu0 %v3387
      %3842 = vmatmul.mubr.bf16.gmra.mrb[0].mxu0 %v3386
      %v3843 = vpop.f32.mrb[0].mxu0
      %v3844 = vadd.f32 %v3779, %v3843
      %v3845 = vpop.f32.mrb[0].mxu0
      %v3846 = vpop.f32.mrb[0].mxu0
      %v3847 = vadd.f32 %v3782, %v3846
      %v3848 = vpop.f32.mrb[0].mxu0
      %3849 = vmatprep.mubr.bf16.mxu0 %v3396
      %3850 = vmatmul.mubr.bf16.gmra.mrb[0].mxu0 %v3395
      %v3851 = vpop.f32.mrb[0].mxu0
      %v3852 = vadd.f32 %v3787, %v3851
      %v3853 = vpop.f32.mrb[0].mxu0
      %v3854 = vpop.f32.mrb[0].mxu0
      %v3855 = vadd.f32 %v3790, %v3854
      %v3856 = vpop.f32.mrb[0].mxu0
      %3857 = vmatprep.mubr.bf16.mxu0 %v3405
      %3858 = vmatmul.mubr.bf16.gmra.mrb[0].mxu0 %v3404
      %v3859 = vpop.f32.mrb[0].mxu0
      %v3860 = vadd.f32 %v3795, %v3859
      %v3861 = vpop.f32.mrb[0].mxu0
      %v3862 = vpop.f32.mrb[0].mxu0
      %v3863 = vadd.f32 %v3798, %v3862
      %v3864 = vpop.f32.mrb[0].mxu0
      %3865 = vmatprep.mubr.bf16.mxu0 %v3414
      %3866 = vmatmul.mubr.bf16.gmra.mrb[0].mxu0 %v3413
      %v3867 = vpop.f32.mrb[0].mxu0
      %v3868 = vadd.f32 %v3803, %v3867
      %v3869 = vpop.f32.mrb[0].mxu0
      %v3870 = vpop.f32.mrb[0].mxu0
      %v3871 = vadd.f32 %v3806, %v3870
      %v3872 = vpop.f32.mrb[0].mxu0
      %3873 = vdwg.mxu0
      %3874 = vmatprep.subr.bf16.mxu0 0
      %3875 = vmatpush1.bf16.msra.mxu0 %v1789
      %3876 = vmatprep.subr.bf16.mxu0 0
      %3877 = vmatpush1.bf16.msra.mxu0 %v1790
      %3878 = vmatprep.subr.bf16.mxu0 0
      %3879 = vmatpush1.bf16.msra.mxu0 %v1791
      %3880 = vmatprep.subr.bf16.mxu0 0
      %3881 = vmatpush1.bf16.msra.mxu0 %v1792
      %3882 = vmatprep.subr.bf16.mxu0 0
      %3883 = vmatpush1.bf16.msra.mxu0 %v1793
      %3884 = vmatprep.subr.bf16.mxu0 0
      %3885 = vmatpush1.bf16.msra.mxu0 %v1794
      %3886 = vmatprep.subr.bf16.mxu0 0
      %3887 = vmatpush1.bf16.msra.mxu0 %v1795
      %3888 = vmatprep.subr.bf16.mxu0 0
      %3889 = vmatpush1.bf16.msra.mxu0 %v1796
      %3890 = vmatprep.subr.bf16.mxu0 0
      %3891 = vmatpush1.bf16.msra.mxu0 %v1797
      %3892 = vmatprep.subr.bf16.mxu0 0
      %3893 = vmatpush1.bf16.msra.mxu0 %v1798
      %3894 = vmatprep.subr.bf16.mxu0 0
      %3895 = vmatpush1.bf16.msra.mxu0 %v1799
      %3896 = vmatprep.subr.bf16.mxu0 0
      %3897 = vmatpush1.bf16.msra.mxu0 %v1800
      %3898 = vmatprep.subr.bf16.mxu0 0
      %3899 = vmatpush1.bf16.msra.mxu0 %v1801
      %3900 = vmatprep.subr.bf16.mxu0 0
      %3901 = vmatpush1.bf16.msra.mxu0 %v1802
      %3902 = vmatprep.subr.bf16.mxu0 0
      %3903 = vmatpush1.bf16.msra.mxu0 %v1803
      %3904 = vmatprep.subr.bf16.mxu0 0
      %3905 = vmatpush1.bf16.msra.mxu0 %v1804
      %3906 = vmatprep.mubr.bf16.mxu0 %v3389
      %3907 = vmatmul.mubr.bf16.gmra.mrb[0].mxu0 %v3388
      %v3908 = vpop.f32.mrb[0].mxu0
      %v3909 = vadd.f32 %v3844, %v3908
      %v3910 = vpop.f32.mrb[0].mxu0
      %v3911 = vpop.f32.mrb[0].mxu0
      %v3912 = vadd.f32 %v3847, %v3911
      %v3913 = vpop.f32.mrb[0].mxu0
      %3914 = vmatprep.mubr.bf16.mxu0 %v3398
      %3915 = vmatmul.mubr.bf16.gmra.mrb[0].mxu0 %v3397
      %v3916 = vpop.f32.mrb[0].mxu0
      %v3917 = vadd.f32 %v3852, %v3916
      %v3918 = vpop.f32.mrb[0].mxu0
      %v3919 = vpop.f32.mrb[0].mxu0
      %v3920 = vadd.f32 %v3855, %v3919
      %v3921 = vpop.f32.mrb[0].mxu0
      %3922 = vmatprep.mubr.bf16.mxu0 %v3407
      %3923 = vmatmul.mubr.bf16.gmra.mrb[0].mxu0 %v3406
      %v3924 = vpop.f32.mrb[0].mxu0
      %v3925 = vadd.f32 %v3860, %v3924
      %v3926 = vpop.f32.mrb[0].mxu0
      %v3927 = vpop.f32.mrb[0].mxu0
      %v3928 = vadd.f32 %v3863, %v3927
      %v3929 = vpop.f32.mrb[0].mxu0
      %3930 = vmatprep.mubr.bf16.mxu0 %v3416
      %3931 = vmatmul.mubr.bf16.gmra.mrb[0].mxu0 %v3415
      %v3932 = vpop.f32.mrb[0].mxu0
      %v3933 = vadd.f32 %v3868, %v3932
      %v3934 = vpop.f32.mrb[0].mxu0
      %v3935 = vpop.f32.mrb[0].mxu0
      %v3936 = vadd.f32 %v3871, %v3935
      %v3937 = vpop.f32.mrb[0].mxu0
      %3938 = vdwg.mxu0
      %3939 = vmatprep.subr.bf16.mxu0 0
      %3940 = vmatpush1.bf16.msra.mxu0 %v1805
      %3941 = vmatprep.subr.bf16.mxu0 0
      %3942 = vmatpush1.bf16.msra.mxu0 %v1806
      %3943 = vmatprep.subr.bf16.mxu0 0
      %3944 = vmatpush1.bf16.msra.mxu0 %v1807
      %3945 = vmatprep.subr.bf16.mxu0 0
      %3946 = vmatpush1.bf16.msra.mxu0 %v1808
      %3947 = vmatprep.subr.bf16.mxu0 0
      %3948 = vmatpush1.bf16.msra.mxu0 %v1809
      %3949 = vmatprep.subr.bf16.mxu0 0
      %3950 = vmatpush1.bf16.msra.mxu0 %v1810
      %3951 = vmatprep.subr.bf16.mxu0 0
      %3952 = vmatpush1.bf16.msra.mxu0 %v1811
      %3953 = vmatprep.subr.bf16.mxu0 0
      %3954 = vmatpush1.bf16.msra.mxu0 %v1812
      %3955 = vmatprep.subr.bf16.mxu0 0
      %3956 = vmatpush1.bf16.msra.mxu0 %v1813
      %3957 = vmatprep.subr.bf16.mxu0 0
      %3958 = vmatpush1.bf16.msra.mxu0 %v1814
      %3959 = vmatprep.subr.bf16.mxu0 0
      %3960 = vmatpush1.bf16.msra.mxu0 %v1815
      %3961 = vmatprep.subr.bf16.mxu0 0
      %3962 = vmatpush1.bf16.msra.mxu0 %v1816
      %3963 = vmatprep.subr.bf16.mxu0 0
      %3964 = vmatpush1.bf16.msra.mxu0 %v1817
      %3965 = vmatprep.subr.bf16.mxu0 0
      %3966 = vmatpush1.bf16.msra.mxu0 %v1818
      %3967 = vmatprep.subr.bf16.mxu0 0
      %3968 = vmatpush1.bf16.msra.mxu0 %v1819
      %3969 = vmatprep.subr.bf16.mxu0 0
      %3970 = vmatpush1.bf16.msra.mxu0 %v1820
      %3971 = vmatprep.mubr.bf16.mxu0 %v3391
      %3972 = vmatmul.mubr.bf16.gmra.mrb[0].mxu0 %v3390
      %v3973 = vpop.f32.mrb[0].mxu0
      %v3974 = vadd.f32 %v3909, %v3973
      %v3975 = vpop.f32.mrb[0].mxu0
      %v3976 = vpop.f32.mrb[0].mxu0
      %v3977 = vadd.f32 %v3912, %v3976
      %v3978 = vpop.f32.mrb[0].mxu0
      %3979 = vmatprep.mubr.bf16.mxu0 %v3400
      %3980 = vmatmul.mubr.bf16.gmra.mrb[0].mxu0 %v3399
      %v3981 = vpop.f32.mrb[0].mxu0
      %v3982 = vadd.f32 %v3917, %v3981
      %v3983 = vpop.f32.mrb[0].mxu0
      %v3984 = vpop.f32.mrb[0].mxu0
      %v3985 = vadd.f32 %v3920, %v3984
      %v3986 = vpop.f32.mrb[0].mxu0
      %3987 = vmatprep.mubr.bf16.mxu0 %v3409
      %3988 = vmatmul.mubr.bf16.gmra.mrb[0].mxu0 %v3408
      %v3989 = vpop.f32.mrb[0].mxu0
      %v3990 = vadd.f32 %v3925, %v3989
      %v3991 = vpop.f32.mrb[0].mxu0
      %v3992 = vpop.f32.mrb[0].mxu0
      %v3993 = vadd.f32 %v3928, %v3992
      %v3994 = vpop.f32.mrb[0].mxu0
      %3995 = vmatprep.mubr.bf16.mxu0 %v3418
      %3996 = vmatmul.mubr.bf16.gmra.mrb[0].mxu0 %v3417
      %v3997 = vpop.f32.mrb[0].mxu0
      %v3998 = vadd.f32 %v3933, %v3997
      %v3999 = vpop.f32.mrb[0].mxu0
      %v4000 = vpop.f32.mrb[0].mxu0
      %v4001 = vadd.f32 %v3936, %v4000
      %v4002 = vpop.f32.mrb[0].mxu0
      %4003 = vdwg.mxu0
      %v4004 = vmax.f32 %v3974, 0.0
      %v4005 = vmax.f32 %v3977, 0.0
      %v4006 = vmax.f32 %v3982, 0.0
      %v4007 = vmax.f32 %v3985, 0.0
      %v4008 = vmax.f32 %v3990, 0.0
      %v4009 = vmax.f32 %v3993, 0.0
      %v4010 = vmax.f32 %v3998, 0.0
      %v4011 = vmax.f32 %v4001, 0.0
      %v4012 = vsel %vm2558, %v4004, 0.0
      %v4013 = vsel %vm2558, %v4005, 0.0
      %v4014 = vadd.f32 %v4012, %v4013
      %v4015 = vsel %vm2558, %v4006, 0.0
      %v4016 = vadd.f32 %v4014, %v4015
      %v4017 = vsel %vm2558, %v4007, 0.0
      %v4018 = vadd.f32 %v4016, %v4017
      %v4019 = vsel %vm2558, %v4008, 0.0
      %v4020 = vadd.f32 %v4018, %v4019
      %v4021 = vsel %vm2558, %v4009, 0.0
      %v4022 = vadd.f32 %v4020, %v4021
      %v4023 = vsel %vm2558, %v4010, 0.0
      %v4024 = vadd.f32 %v4022, %v4023
      %v4025 = vsel %vm2558, %v4011, 0.0
      %v4026 = vadd.f32 %v4024, %v4025
      %v4027 = vrot.slane %v4026, 4
      %v4028 = vadd.f32 %v4026, %v4027
      %v4029 = vrot.slane %v4028, 2
      %v4030 = vadd.f32 %v4028, %v4029
      %v4031 = vrot.slane %v4030, 1
      %v4032 = vadd.f32 %v4030, %v4031
      %v4033 = vmul.f32 %v4032, 0.0062007853
      %v4034 = vadd.f32 %v3307, %v4033
      %v4035 = vpack.c.bf16 %v4034, %v4034
      %v4036 = vld [vmem:[%s3] sm:$0xff]
      %v4037 = vld [vmem:[%s3 + $0x8] sm:$0xff]
      %v4038 = vld [vmem:[%s3 + $0x10] sm:$0xff]
      %v4039 = vld [vmem:[%s3 + $0x18] sm:$0xff]
      %v4040 = vld [vmem:[%s3 + $0x20] sm:$0xff]
      %v4041 = vld [vmem:[%s3 + $0x28] sm:$0xff]
      %v4042 = vld [vmem:[%s3 + $0x30] sm:$0xff]
      %v4043 = vld [vmem:[%s3 + $0x38] sm:$0xff]
      %v4044 = vld [vmem:[%s4] sm:$0x3]
      %v4046 = vlaneseq
      %v4047 = vshrl.u32 %v4046, 7
      %v4048 = vsub.s32 0, %v4047
      %v4049 = vrot.slane %v4044, %v4048
      %v4050 = vlaneseq
      %v4051 = vshrl.u32 %v4050, 7
      %v4052 = vsub.s32 1, %v4051
      %v4053 = vrot.slane %v4044, %v4052
      %v4064 = vunpack.c.l.b16 %v4036
      %v4065 = vunpack.c.h.b16 %v4036
      %v4066 = vunpack.c.l.b16 %v4037
      %v4067 = vunpack.c.h.b16 %v4037
      %v4068 = vunpack.c.l.b16 %v4038
      %v4069 = vunpack.c.h.b16 %v4038
      %v4070 = vunpack.c.l.b16 %v4039
      %v4071 = vunpack.c.h.b16 %v4039
      %v4072 = vunpack.c.l.b16 %v4040
      %v4073 = vunpack.c.h.b16 %v4040
      %v4074 = vunpack.c.l.b16 %v4041
      %v4075 = vunpack.c.h.b16 %v4041
      %v4076 = vunpack.c.l.b16 %v4042
      %v4077 = vunpack.c.h.b16 %v4042
      %v4078 = vunpack.c.l.b16 %v4043
      %v4079 = vunpack.c.h.b16 %v4043
      %v4080 = vpack.c.b16 %v4066, %v4064
      %v4081 = vpack.c.b16 %v4067, %v4065
      %v4082 = vpack.c.b16 %v4070, %v4068
      %v4083 = vpack.c.b16 %v4071, %v4069
      %v4084 = vpack.c.b16 %v4074, %v4072
      %v4085 = vpack.c.b16 %v4075, %v4073
      %v4086 = vpack.c.b16 %v4078, %v4076
      %v4087 = vpack.c.b16 %v4079, %v4077
      %v4097 = vsel %vm2558, %v4035, 0
      %4099 = vmatprep.subr.bf16.mxu0 %v4081
      %4100 = vmatpush1.bf16.msra.mxu0 %v4080
      %4101 = vmatprep.subr.bf16.mxu0 %v4083
      %4102 = vmatpush1.bf16.msra.mxu0 %v4082
      %4103 = vmatprep.subr.bf16.mxu0 %v4085
      %4104 = vmatpush1.bf16.msra.mxu0 %v4084
      %4105 = vmatprep.subr.bf16.mxu0 %v4087
      %4106 = vmatpush1.bf16.msra.mxu0 %v4086
      %4107 = vmatprep.subr.bf16.mxu0 0
      %4108 = vmatpush1.bf16.msra.mxu0 0
      %4109 = vmatprep.subr.bf16.mxu0 0
      %4110 = vmatpush1.bf16.msra.mxu0 0
      %4111 = vmatprep.subr.bf16.mxu0 0
      %4112 = vmatpush1.bf16.msra.mxu0 0
      %4113 = vmatprep.subr.bf16.mxu0 0
      %4114 = vmatpush1.bf16.msra.mxu0 0
      %4115 = vmatprep.subr.bf16.mxu0 0
      %4116 = vmatpush1.bf16.msra.mxu0 0
      %4117 = vmatprep.subr.bf16.mxu0 0
      %4118 = vmatpush1.bf16.msra.mxu0 0
      %4119 = vmatprep.subr.bf16.mxu0 0
      %4120 = vmatpush1.bf16.msra.mxu0 0
      %4121 = vmatprep.subr.bf16.mxu0 0
      %4122 = vmatpush1.bf16.msra.mxu0 0
      %4123 = vmatprep.subr.bf16.mxu0 0
      %4124 = vmatpush1.bf16.msra.mxu0 0
      %4125 = vmatprep.subr.bf16.mxu0 0
      %4126 = vmatpush1.bf16.msra.mxu0 0
      %4127 = vmatprep.subr.bf16.mxu0 0
      %4128 = vmatpush1.bf16.msra.mxu0 0
      %4129 = vmatprep.subr.bf16.mxu0 0
      %4130 = vmatpush1.bf16.msra.mxu0 0
      %4131 = vmatprep.mubr.bf16.mxu0 0
      %4132 = vmatmul.mubr.bf16.gmra.mrb[0].mxu0 %v4097
      %v4133 = vpop.f32.mrb[0].mxu0
      %v4134 = vadd.f32 %v4049, %v4133
      %v4135 = vpop.f32.mrb[0].mxu0
      %v4136 = vadd.f32 %v4053, %v4135
      %v4137 = vpop.f32.mrb[0].mxu0
      %v4138 = vpop.f32.mrb[0].mxu0
      %4139 = vdwg.mxu0
      %v4140 = vmax.f32 %v4134, 0.0
      %v4141 = vmax.f32 %v4136, 0.0
      %v4142 = vpack.c.bf16 %v4140, %v4140
      %v4143 = vpack.c.bf16 %v4141, %v4141
      %v4144 = vld [vmem:[%s5] sm:$0xf]
      %v4145 = vld [vmem:[%s5 + $0x4] sm:$0xf]
      %v4146 = vld [vmem:[%s5 + $0x8] sm:$0xf]
      %v4147 = vld [vmem:[%s5 + $0xc] sm:$0xf]
      %v4148 = vld [vmem:[%s5 + $0x10] sm:$0xf]
      %v4149 = vld [vmem:[%s5 + $0x14] sm:$0xf]
      %v4150 = vld [vmem:[%s5 + $0x18] sm:$0xf]
      %v4151 = vld [vmem:[%s5 + $0x1c] sm:$0xf]
      %v4152 = vld [vmem:[%s5 + $0x20] sm:$0xf]
      %v4153 = vld [vmem:[%s5 + $0x24] sm:$0xf]
      %v4154 = vld [vmem:[%s5 + $0x28] sm:$0xf]
      %v4155 = vld [vmem:[%s5 + $0x2c] sm:$0xf]
      %v4156 = vld [vmem:[%s5 + $0x30] sm:$0xf]
      %v4157 = vld [vmem:[%s5 + $0x34] sm:$0xf]
      %v4158 = vld [vmem:[%s5 + $0x38] sm:$0xf]
      %v4159 = vld [vmem:[%s5 + $0x3c] sm:$0xf]
      %v4160 = vld [vmem:[%s5 + $0x40] sm:$0xf]
      %v4161 = vld [vmem:[%s5 + $0x44] sm:$0xf]
      %v4162 = vld [vmem:[%s5 + $0x48] sm:$0x7]
      %v4163 = vld [vmem:[%s6] sm:$0x1]
      %v4165 = vlaneseq
      %v4166 = vshrl.u32 %v4165, 7
      %v4167 = vsub.s32 0, %v4166
      %v4168 = vrot.slane %v4163, %v4167
      %v4189 = vunpack.c.l.b16 %v4144
      %v4190 = vunpack.c.l.b16 %v4145
      %v4191 = vunpack.c.l.b16 %v4146
      %v4192 = vunpack.c.l.b16 %v4147
      %v4193 = vunpack.c.l.b16 %v4148
      %v4194 = vunpack.c.l.b16 %v4149
      %v4195 = vunpack.c.l.b16 %v4150
      %v4196 = vunpack.c.l.b16 %v4151
      %v4197 = vunpack.c.l.b16 %v4152
      %v4198 = vunpack.c.l.b16 %v4153
      %v4199 = vunpack.c.l.b16 %v4154
      %v4200 = vunpack.c.l.b16 %v4155
      %v4201 = vunpack.c.l.b16 %v4156
      %v4202 = vunpack.c.l.b16 %v4157
      %v4203 = vunpack.c.l.b16 %v4158
      %v4204 = vunpack.c.l.b16 %v4159
      %v4205 = vunpack.c.l.b16 %v4160
      %v4206 = vunpack.c.l.b16 %v4161
      %v4207 = vunpack.c.l.b16 %v4162
      %v4208 = vpack.c.b16 %v4190, %v4189
      %v4209 = vpack.c.b16 %v4192, %v4191
      %v4210 = vpack.c.b16 %v4194, %v4193
      %v4211 = vpack.c.b16 %v4196, %v4195
      %v4212 = vpack.c.b16 %v4198, %v4197
      %v4213 = vpack.c.b16 %v4200, %v4199
      %v4214 = vpack.c.b16 %v4202, %v4201
      %v4215 = vpack.c.b16 %v4204, %v4203
      %v4216 = vpack.c.b16 %v4206, %v4205
      %v4217 = vpack.c.b16 %v4207, %v4207
      %vm4227 = vcmask 179200
      %v4229 = vsel %vm4227, %v4143, 0
      %vm4231 = vcmask 1042432
      %v4233 = vsel %vm4231, %v4217, 0
      %4235 = vmatprep.subr.bf16.mxu0 0
      %4236 = vmatpush1.bf16.msra.mxu0 %v4208
      %4237 = vmatprep.subr.bf16.mxu0 0
      %4238 = vmatpush1.bf16.msra.mxu0 %v4209
      %4239 = vmatprep.subr.bf16.mxu0 0
      %4240 = vmatpush1.bf16.msra.mxu0 %v4210
      %4241 = vmatprep.subr.bf16.mxu0 0
      %4242 = vmatpush1.bf16.msra.mxu0 %v4211
      %4243 = vmatprep.subr.bf16.mxu0 0
      %4244 = vmatpush1.bf16.msra.mxu0 %v4212
      %4245 = vmatprep.subr.bf16.mxu0 0
      %4246 = vmatpush1.bf16.msra.mxu0 %v4213
      %4247 = vmatprep.subr.bf16.mxu0 0
      %4248 = vmatpush1.bf16.msra.mxu0 %v4214
      %4249 = vmatprep.subr.bf16.mxu0 0
      %4250 = vmatpush1.bf16.msra.mxu0 %v4215
      %4251 = vmatprep.subr.bf16.mxu0 0
      %4252 = vmatpush1.bf16.msra.mxu0 %v4216
      %4253 = vmatprep.subr.bf16.mxu0 0
      %4254 = vmatpush1.bf16.msra.mxu0 %v4233
      %4255 = vmatprep.subr.bf16.mxu0 0
      %4256 = vmatpush1.bf16.msra.mxu0 0
      %4257 = vmatprep.subr.bf16.mxu0 0
      %4258 = vmatpush1.bf16.msra.mxu0 0
      %4259 = vmatprep.subr.bf16.mxu0 0
      %4260 = vmatpush1.bf16.msra.mxu0 0
      %4261 = vmatprep.subr.bf16.mxu0 0
      %4262 = vmatpush1.bf16.msra.mxu0 0
      %4263 = vmatprep.subr.bf16.mxu0 0
      %4264 = vmatpush1.bf16.msra.mxu0 0
      %4265 = vmatprep.subr.bf16.mxu0 0
      %4266 = vmatpush1.bf16.msra.mxu0 0
      %4267 = vmatprep.mubr.bf16.mxu0 %v4229
      %4268 = vmatmul.mubr.bf16.gmra.mrb[0].mxu0 %v4142
      %v4269 = vpop.f32.mrb[0].mxu0
      %v4270 = vadd.f32 %v4168, %v4269
      %v4271 = vpop.f32.mrb[0].mxu0
      %v4272 = vpop.f32.mrb[0].mxu0
      %v4273 = vpop.f32.mrb[0].mxu0
      %4274 = vdwg.mxu0
      %4275 = vst [vmem:[%s276] sm:$0xff] %v4270
      %p4276 = scmp.lt.s32.totalorder %s18, 1
      %s4277 = scalar_select %p4276, %s18, 1
      %s4278 = smul.addr %s4277, 8
      %s4279 = scalar_lea.vmem %s7, %s4278
      // Predicated region
      $region49: #{kanazawa_forward.1} parent=47 // pred_check
        %p4280 = pneg %p188
      $region50: #{kanazawa_forward.1} parent=47 // pred_check_branch
        %4282 = sbr.rel (%p4280) target = $region52
      $region51: #{kanazawa_forward.1} parent=47 // pred_region
        _
      $region52: #{kanazawa_forward.1} parent=47 // pred_fallthru
        _
    $region48: #{kanazawa_forward.1} parent=5 // pred_fallthru
      _
    %p4283 = scmp.le.s32.totalorder 2, %s13
    // Predicated region
    $region53: #{kanazawa_forward.1} parent=5 // pred_check
      %p4284 = pneg %p4283
    $region54: #{kanazawa_forward.1} parent=5 // pred_check_branch
      %4286 = sbr.rel (%p4284) target = $region56
    $region55: #{kanazawa_forward.1} parent=5 // pred_region
      %s4287 = ssub.s32 %s13, 2
      // Predicated region
      $region57: #{kanazawa_forward.1} parent=55 // pred_check
        %p4288 = pneg %p194
      $region58: #{kanazawa_forward.1} parent=55 // pred_check_branch
        %4290 = sbr.rel (%p4288) target = $region60
      $region59: #{kanazawa_forward.1} parent=55 // pred_region
        %p4291 = scmp.lt.s32.totalorder %s19, 1
        %s4292 = scalar_select %p4291, %s19, 1
        %s4293 = smul.addr %s4292, 8
        %s4294 = scalar_lea.vmem %s7, %s4293
      $region60: #{kanazawa_forward.1} parent=55 // pred_fallthru
        _
    $region56: #{kanazawa_forward.1} parent=5 // pred_fallthru
      _
  $region6: #{kanazawa_forward.1} parent=0 // loop_footer
    %s17 = sadd.s32 1, %s13
  $region7: #{kanazawa_forward.1} parent=0 // loop_footer_branch
    %12 = sbr.rel target = $region3
  $region8: #{kanazawa_forward.1} parent=0 // loop_exit
    _

</llo_original>
